<compile_context>
chip_gen: v7x
topology: tpu7x:2x2x1
jax: 0.10.0
libtpu: 0.0.40
codegen_flags: <defaults>
</compile_context>

<pallas_src>
import functools

import jax
import jax.numpy as jnp
import numpy as np
from jax.experimental import pallas as pl
from jax.experimental.pallas import tpu as pltpu

FEAT_DIM = 512          # fixed by DecoderBase (feat_dim = 512)
LATENT_DIM = 128        # configs.model.latent_dim (chosen lane-aligned)
DIN = 2 * FEAT_DIM + LATENT_DIM
H1, H2, H3 = 512, 512, 256
BASE_ENERGY_WEIGHT = 0.1  # configs.model.base_energy_weight


def _round_up(x, m):
    return ((x + m - 1) // m) * m


def _energy_kernel(f_ref, c_ref, p_ref,
                   w1f_ref, w1c_ref, w1p_ref, b1_ref,
                   w2_ref, b2_ref, w3_ref, b3_ref,
                   w4_ref, b4_ref, out_ref, *, base_weight, combination):
    """One (sample, target-tile): full e_net MLP + l2 base energy, all classes."""
    f32 = jnp.float32
    bf16 = jnp.bfloat16

    f = f_ref[0].astype(f32)           # (TQ, D)   targets tile (f32 for base energy)
    cm = c_ref[0].astype(f32)          # (C,  D)   all class means of this sample
    ph = p_ref[0].astype(f32)          # (1,  L)   phi of this sample

    tq = f.shape[0]
    n_cls = cm.shape[0]

    # Layer-1 partial products — computed ONCE per tile (not per (t, c) row).
    a = jnp.dot(f.astype(bf16), w1f_ref[...], preferred_element_type=f32)       # (TQ, H1)
    bcls = jnp.dot(cm.astype(bf16), w1c_ref[...], preferred_element_type=f32)   # (C,  H1)
    pb = jnp.dot(ph.astype(bf16), w1p_ref[...], preferred_element_type=f32) \
        + b1_ref[...]                                                            # (1,  H1)

    w4 = w4_ref[...]                   # (1, H3) f32
    b4 = b4_ref[...]                   # (1, 1)  f32

    lane = jax.lax.broadcasted_iota(jnp.int32, (tq, n_cls), 1)
    acc = jnp.zeros((tq, n_cls), f32)

    # Static unroll over classes (few-shot C is small); all ops stay rank-2.
    for c in range(n_cls):
        h = a + bcls[c:c + 1, :] + pb                                            # (TQ, H1)
        h = h * jax.nn.sigmoid(h)                                                # SiLU (f32)
        h = jnp.dot(h.astype(bf16), w2_ref[...],
                    preferred_element_type=f32) + b2_ref[...]                    # (TQ, H2)
        h = h * jax.nn.sigmoid(h)
        h = jnp.dot(h.astype(bf16), w3_ref[...],
                    preferred_element_type=f32) + b3_ref[...]                    # (TQ, H3)
        h = h * jax.nn.sigmoid(h)

        # Final 256 -> 1 projection on VPU/XLU (MXU stays on the big layers).
        e_nn = jnp.sum(h * w4, axis=-1, keepdims=True) + b4                      # (TQ, 1)

        # Base energy (ProtoNet l2), exact f32 math.
        diff = f - cm[c:c + 1, :]
        base = jnp.sqrt(jnp.sum(diff * diff, axis=-1, keepdims=True))            # (TQ, 1)

        if combination == 'all':
            e_c = e_nn + base_weight * base
        elif combination == 'base_only':
            e_c = base_weight * base
        elif combination == 'ebm_only':
            e_c = e_nn
        else:
            raise KeyError(combination)

        acc = acc + jnp.where(lane == c, e_c, jnp.zeros((), f32))

    out_ref[0] = acc                                                             # (TQ, C)


def init_params(key):
    """Deterministic xavier_normal weights, zero biases (matches init_weights)."""
    dims = [(DIN, H1), (H1, H2), (H2, H3), (H3, 1)]
    params = []
    for fin, fout in dims:
        key, sub = jax.random.split(key)
        std = np.sqrt(2.0 / (fin + fout))
        w = jax.random.normal(sub, (fin, fout), dtype=jnp.float32) * std
        b = jnp.zeros((1, fout), dtype=jnp.float32)
        params.append((w, b))
    return params


def generative_classifier_forward(features, class_mean, phi, params,
                                  out='e_xy_all', combination='all',
                                  base_energy_weight=BASE_ENERGY_WEIGHT,
                                  tq=256):
    S, T, D = features.shape
    C = class_mean.shape[1]
    L = phi.shape[-1]
    assert D == FEAT_DIM and L == LATENT_DIM
    assert tq % 8 == 0

    (w1, b1), (w2, b2), (w3, b3), (w4, b4) = params

    # De-duplicated layer-1 weights: static row-slices of W1, stored in bf16.
    bf16 = jnp.bfloat16
    w1f = w1[:FEAT_DIM].astype(bf16)               # (512, 512)  features part
    w1c = w1[FEAT_DIM:2 * FEAT_DIM].astype(bf16)   # (512, 512)  class-mean part
    w1p = w1[2 * FEAT_DIM:].astype(bf16)           # (128, 512)  phi part
    w2b = w2.astype(bf16)
    w3b = w3.astype(bf16)
    w4row = w4.T.astype(jnp.float32)               # (1, 256) — VPU reduce, stays f32

    features = features.astype(jnp.float32)
    class_mean = class_mean.astype(jnp.float32)
    phi3 = phi.astype(jnp.float32).reshape(S, 1, L)

    # Tile the target axis; pad to a multiple of the tile (sliced off after).
    t8 = _round_up(T, 8)
    tq_eff = t8 if t8 <= tq else tq
    t_pad = _round_up(t8, tq_eff)
    if t_pad != T:
        features = jnp.pad(features, ((0, 0), (0, t_pad - T), (0, 0)))
    n_t = t_pad // tq_eff

    kernel = functools.partial(_energy_kernel,
                               base_weight=float(base_energy_weight),
                               combination=combination)

    whole = lambda s, t: (0, 0)   # grid-invariant weights / biases
    e_pad = pl.pallas_call(
        kernel,
        out_shape=jax.ShapeDtypeStruct((S, t_pad, C), jnp.float32),
        grid_spec=pltpu.PrefetchScalarGridSpec(
            num_scalar_prefetch=0,
            grid=(S, n_t),
            in_specs=[
                pl.BlockSpec((1, tq_eff, D), lambda s, t: (s, t, 0)),   # features tile
                pl.BlockSpec((1, C, D), lambda s, t: (s, 0, 0)),        # class means
                pl.BlockSpec((1, 1, L), lambda s, t: (s, 0, 0)),        # phi
                pl.BlockSpec((FEAT_DIM, H1), whole),                    # W1_f (bf16)
                pl.BlockSpec((FEAT_DIM, H1), whole),                    # W1_c (bf16)
                pl.BlockSpec((LATENT_DIM, H1), whole),                  # W1_phi (bf16)
                pl.BlockSpec((1, H1), whole),                           # b1
                pl.BlockSpec((H1, H2), whole),                          # W2 (bf16)
                pl.BlockSpec((1, H2), whole),                           # b2
                pl.BlockSpec((H2, H3), whole),                          # W3 (bf16)
                pl.BlockSpec((1, H3), whole),                           # b3
                pl.BlockSpec((1, H3), whole),                           # w4 row
                pl.BlockSpec((1, 1), whole),                            # b4
            ],
            out_specs=pl.BlockSpec((1, tq_eff, C), lambda s, t: (s, t, 0)),
        ),
        compiler_params=pltpu.CompilerParams(
            dimension_semantics=("parallel", "parallel")),
    )(features, class_mean, phi3,
      w1f, w1c, w1p, b1, w2b, b2, w3b, b3, w4row, b4)

    e_xy = e_pad[:, :T, :]
    if out == 'e_x':
        # final class-axis logsumexp done as glue (tiny (S,T,C) reduction)
        return -1.0 * jax.nn.logsumexp(-e_xy, axis=-1)
    return e_xy


def _reference_forward(features, class_mean, phi, params,
                       combination='all', base_energy_weight=BASE_ENERGY_WEIGHT):
    """Pure-JAX reference mirroring the PyTorch module (concat form).

    Matmuls use the same bf16-input / f32-accumulation precision as the kernel
    so the comparison isolates structural correctness, not dtype choice.
    """
    (w1, b1), (w2, b2), (w3, b3), (w4, b4) = params
    S, T, D = features.shape
    C = class_mean.shape[1]
    L = phi.shape[-1]
    f32, bf = jnp.float32, jnp.bfloat16

    f_e = jnp.broadcast_to(features[:, :, None, :], (S, T, C, D))
    c_e = jnp.broadcast_to(class_mean[:, None, :, :], (S, T, C, D))
    p_e = jnp.broadcast_to(phi[:, None, None, :], (S, T, C, L))
    x = jnp.concatenate([f_e, c_e, p_e], axis=-1).reshape(-1, 2 * D + L)

    h = jnp.dot(x.astype(bf), w1.astype(bf), preferred_element_type=f32) + b1[0]
    h = h * jax.nn.sigmoid(h)
    h = jnp.dot(h.astype(bf), w2.astype(bf), preferred_element_type=f32) + b2[0]
    h = h * jax.nn.sigmoid(h)
    h = jnp.dot(h.astype(bf), w3.astype(bf), preferred_element_type=f32) + b3[0]
    h = h * jax.nn.sigmoid(h)
    e_nn = (jnp.sum(h * w4[:, 0][None, :], axis=-1) + b4[0, 0]).reshape(S, T, C)

    base = jnp.sqrt(jnp.sum((f_e - c_e) ** 2, axis=-1))
    if combination == 'all':
        return e_nn + base_energy_weight * base
    elif combination == 'base_only':
        return base_energy_weight * base
    return e_nn


if __name__ == "__main__":
    key = jax.random.PRNGKey(0)
    k_feat, k_mean, k_phi, k_w = jax.random.split(key, 4)

    S, T, C = 2, 20, 4          # num_phi_samples, num_targets, num_classes
    features = jax.random.normal(k_feat, (S, T, FEAT_DIM), dtype=jnp.float32)
    class_mean = jax.random.normal(k_mean, (S, C, FEAT_DIM), dtype=jnp.float32)
    phi = jax.random.normal(k_phi, (S, LATENT_DIM), dtype=jnp.float32)

    params = init_params(k_w)

    # tq=8 at these tiny shapes exercises multi-step tiling + tail padding
    # (T=20 -> padded to 24, grid=(2, 3)); production defaults to tq=256.
    e_xy = generative_classifier_forward(features, class_mean, phi, params,
                                         out='e_xy_all', combination='all', tq=8)
    e_xy = jax.block_until_ready(e_xy)
    assert e_xy.shape == (S, T, C)

    ref = _reference_forward(features, class_mean, phi, params, combination='all')
    np.testing.assert_allclose(np.asarray(e_xy), np.asarray(ref),
                               rtol=1e-2, atol=1e-2)

    # also exercise the 'e_x' output mode once
    e_x = jax.block_until_ready(
        generative_classifier_forward(features, class_mean, phi, params,
                                      out='e_x', combination='all', tq=8))
    assert e_x.shape == (S, T)

    print("KERNEL_OK")
</pallas_src>

<mosaic_0001>
module attributes {stable_mosaic.version = 11 : i64} {
  func.func @_energy_kernel(%arg0: i32, %arg1: i32, %arg2: memref<1x8x512xf32, #tpu.memory_space<vmem>>, %arg3: memref<1x4x512xf32, #tpu.memory_space<vmem>>, %arg4: memref<1x1x128xf32, #tpu.memory_space<vmem>>, %arg5: memref<512x512xbf16, #tpu.memory_space<vmem>>, %arg6: memref<512x512xbf16, #tpu.memory_space<vmem>>, %arg7: memref<128x512xbf16, #tpu.memory_space<vmem>>, %arg8: memref<1x512xf32, #tpu.memory_space<vmem>>, %arg9: memref<512x512xbf16, #tpu.memory_space<vmem>>, %arg10: memref<1x512xf32, #tpu.memory_space<vmem>>, %arg11: memref<512x256xbf16, #tpu.memory_space<vmem>>, %arg12: memref<1x256xf32, #tpu.memory_space<vmem>>, %arg13: memref<1x256xf32, #tpu.memory_space<vmem>>, %arg14: memref<1x1xf32, #tpu.memory_space<vmem>>, %arg15: memref<1x8x4xf32, #tpu.memory_space<vmem>>) attributes {dimension_semantics = [#tpu.dimension_semantics<parallel>, #tpu.dimension_semantics<parallel>], iteration_bounds = array<i64: 2, 3>, scalar_prefetch = 0 : i64, scratch_operands = 0 : i64, tpu.core_type = #tpu.core_type<tc>, window_params = [{transform_indices = @transform_0, window_bounds = array<i64: 1, 8, 512>}, {transform_indices = @transform_1, window_bounds = array<i64: 1, 4, 512>}, {transform_indices = @transform_2, window_bounds = array<i64: 1, 1, 128>}, {pipeline_mode = #tpu.pipeline_mode<synchronous>, transform_indices = @transform_3, window_bounds = array<i64: 512, 512>}, {pipeline_mode = #tpu.pipeline_mode<synchronous>, transform_indices = @transform_4, window_bounds = array<i64: 512, 512>}, {pipeline_mode = #tpu.pipeline_mode<synchronous>, transform_indices = @transform_5, window_bounds = array<i64: 128, 512>}, {pipeline_mode = #tpu.pipeline_mode<synchronous>, transform_indices = @transform_6, window_bounds = array<i64: 1, 512>}, {pipeline_mode = #tpu.pipeline_mode<synchronous>, transform_indices = @transform_7, window_bounds = array<i64: 512, 512>}, {pipeline_mode = #tpu.pipeline_mode<synchronous>, transform_indices = @transform_8, window_bounds = array<i64: 1, 512>}, {pipeline_mode = #tpu.pipeline_mode<synchronous>, transform_indices = @transform_9, window_bounds = array<i64: 512, 256>}, {pipeline_mode = #tpu.pipeline_mode<synchronous>, transform_indices = @transform_10, window_bounds = array<i64: 1, 256>}, {pipeline_mode = #tpu.pipeline_mode<synchronous>, transform_indices = @transform_11, window_bounds = array<i64: 1, 256>}, {pipeline_mode = #tpu.pipeline_mode<synchronous>, transform_indices = @transform_12, window_bounds = array<i64: 1, 1>}, {transform_indices = @transform_13, window_bounds = array<i64: 1, 8, 4>}]} {
    %c0 = arith.constant 0 : index
    %c0_0 = arith.constant 0 : index
    %c0_1 = arith.constant 0 : index
    %0 = vector.load %arg2[%c0, %c0_0, %c0_1] : memref<1x8x512xf32, #tpu.memory_space<vmem>>, vector<1x8x512xf32>
    %1 = vector.shape_cast %0 : vector<1x8x512xf32> to vector<8x512xf32>
    %c0_2 = arith.constant 0 : index
    %c0_3 = arith.constant 0 : index
    %c0_4 = arith.constant 0 : index
    %2 = vector.load %arg3[%c0_2, %c0_3, %c0_4] : memref<1x4x512xf32, #tpu.memory_space<vmem>>, vector<1x4x512xf32>
    %3 = vector.shape_cast %2 : vector<1x4x512xf32> to vector<4x512xf32>
    %c0_5 = arith.constant 0 : index
    %c0_6 = arith.constant 0 : index
    %c0_7 = arith.constant 0 : index
    %4 = vector.load %arg4[%c0_5, %c0_6, %c0_7] : memref<1x1x128xf32, #tpu.memory_space<vmem>>, vector<1x1x128xf32>
    %5 = vector.shape_cast %4 : vector<1x1x128xf32> to vector<1x128xf32>
    %6 = arith.truncf %1 : vector<8x512xf32> to vector<8x512xbf16>
    %c0_8 = arith.constant 0 : index
    %c0_9 = arith.constant 0 : index
    %7 = vector.load %arg5[%c0_8, %c0_9] : memref<512x512xbf16, #tpu.memory_space<vmem>>, vector<512x512xbf16>
    %cst = arith.constant dense<0.000000e+00> : vector<8x512xf32>
    %8 = tpu.matmul %6, %7, %cst {dimension_numbers = #tpu.dot_dimension_numbers<[1], [0], [0], [1], [0, 0, 1, 1], [], []>} : vector<8x512xbf16>, vector<512x512xbf16>, vector<8x512xf32> -> vector<8x512xf32>
    %9 = arith.truncf %3 : vector<4x512xf32> to vector<4x512xbf16>
    %c0_10 = arith.constant 0 : index
    %c0_11 = arith.constant 0 : index
    %10 = vector.load %arg6[%c0_10, %c0_11] : memref<512x512xbf16, #tpu.memory_space<vmem>>, vector<512x512xbf16>
    %cst_12 = arith.constant dense<0.000000e+00> : vector<4x512xf32>
    %11 = tpu.matmul %9, %10, %cst_12 {dimension_numbers = #tpu.dot_dimension_numbers<[1], [0], [0], [1], [0, 0, 1, 1], [], []>} : vector<4x512xbf16>, vector<512x512xbf16>, vector<4x512xf32> -> vector<4x512xf32>
    %12 = arith.truncf %5 : vector<1x128xf32> to vector<1x128xbf16>
    %c0_13 = arith.constant 0 : index
    %c0_14 = arith.constant 0 : index
    %13 = vector.load %arg7[%c0_13, %c0_14] : memref<128x512xbf16, #tpu.memory_space<vmem>>, vector<128x512xbf16>
    %cst_15 = arith.constant dense<0.000000e+00> : vector<1x512xf32>
    %14 = tpu.matmul %12, %13, %cst_15 {dimension_numbers = #tpu.dot_dimension_numbers<[1], [0], [0], [1], [0, 0, 1, 1], [], []>} : vector<1x128xbf16>, vector<128x512xbf16>, vector<1x512xf32> -> vector<1x512xf32>
    %c0_16 = arith.constant 0 : index
    %c0_17 = arith.constant 0 : index
    %15 = vector.load %arg8[%c0_16, %c0_17] : memref<1x512xf32, #tpu.memory_space<vmem>>, vector<1x512xf32>
    %16 = arith.addf %14, %15 : vector<1x512xf32>
    %c0_18 = arith.constant 0 : index
    %c0_19 = arith.constant 0 : index
    %17 = vector.load %arg13[%c0_18, %c0_19] : memref<1x256xf32, #tpu.memory_space<vmem>>, vector<1x256xf32>
    %c0_20 = arith.constant 0 : index
    %c0_21 = arith.constant 0 : index
    %18 = vector.load %arg14[%c0_20, %c0_21] : memref<1x1xf32, #tpu.memory_space<vmem>>, vector<1x1xf32>
    %19 = tpu.iota {dimensions = array<i32: 1>} : vector<8x4xi32>
    %cst_22 = arith.constant 0.000000e+00 : f32
    %20 = vector.broadcast %cst_22 : f32 to vector<8x4xf32>
    %21 = vector.extract_strided_slice %11 {offsets = [0, 0], sizes = [1, 512], strides = [1, 1]} : vector<4x512xf32> to vector<1x512xf32>
    %22 = vector.broadcast %21 : vector<1x512xf32> to vector<8x512xf32>
    %23 = arith.addf %8, %22 : vector<8x512xf32>
    %24 = vector.broadcast %16 : vector<1x512xf32> to vector<8x512xf32>
    %25 = arith.addf %23, %24 : vector<8x512xf32>
    %26 = arith.negf %25 : vector<8x512xf32>
    %27 = math.exp %26 : vector<8x512xf32>
    %cst_23 = arith.constant 1.000000e+00 : f32
    %28 = vector.broadcast %cst_23 : f32 to vector<8x512xf32>
    %29 = arith.addf %28, %27 : vector<8x512xf32>
    %30 = arith.divf %28, %29 : vector<8x512xf32>
    %31 = arith.mulf %25, %30 : vector<8x512xf32>
    %32 = arith.truncf %31 : vector<8x512xf32> to vector<8x512xbf16>
    %c0_24 = arith.constant 0 : index
    %c0_25 = arith.constant 0 : index
    %33 = vector.load %arg9[%c0_24, %c0_25] : memref<512x512xbf16, #tpu.memory_space<vmem>>, vector<512x512xbf16>
    %cst_26 = arith.constant dense<0.000000e+00> : vector<8x512xf32>
    %34 = tpu.matmul %32, %33, %cst_26 {dimension_numbers = #tpu.dot_dimension_numbers<[1], [0], [0], [1], [0, 0, 1, 1], [], []>} : vector<8x512xbf16>, vector<512x512xbf16>, vector<8x512xf32> -> vector<8x512xf32>
    %c0_27 = arith.constant 0 : index
    %c0_28 = arith.constant 0 : index
    %35 = vector.load %arg10[%c0_27, %c0_28] : memref<1x512xf32, #tpu.memory_space<vmem>>, vector<1x512xf32>
    %36 = vector.broadcast %35 : vector<1x512xf32> to vector<8x512xf32>
    %37 = arith.addf %34, %36 : vector<8x512xf32>
    %38 = arith.negf %37 : vector<8x512xf32>
    %39 = math.exp %38 : vector<8x512xf32>
    %cst_29 = arith.constant 1.000000e+00 : f32
    %40 = vector.broadcast %cst_29 : f32 to vector<8x512xf32>
    %41 = arith.addf %40, %39 : vector<8x512xf32>
    %42 = arith.divf %40, %41 : vector<8x512xf32>
    %43 = arith.mulf %37, %42 : vector<8x512xf32>
    %44 = arith.truncf %43 : vector<8x512xf32> to vector<8x512xbf16>
    %c0_30 = arith.constant 0 : index
    %c0_31 = arith.constant 0 : index
    %45 = vector.load %arg11[%c0_30, %c0_31] : memref<512x256xbf16, #tpu.memory_space<vmem>>, vector<512x256xbf16>
    %cst_32 = arith.constant dense<0.000000e+00> : vector<8x256xf32>
    %46 = tpu.matmul %44, %45, %cst_32 {dimension_numbers = #tpu.dot_dimension_numbers<[1], [0], [0], [1], [0, 0, 1, 1], [], []>} : vector<8x512xbf16>, vector<512x256xbf16>, vector<8x256xf32> -> vector<8x256xf32>
    %c0_33 = arith.constant 0 : index
    %c0_34 = arith.constant 0 : index
    %47 = vector.load %arg12[%c0_33, %c0_34] : memref<1x256xf32, #tpu.memory_space<vmem>>, vector<1x256xf32>
    %48 = vector.broadcast %47 : vector<1x256xf32> to vector<8x256xf32>
    %49 = arith.addf %46, %48 : vector<8x256xf32>
    %50 = arith.negf %49 : vector<8x256xf32>
    %51 = math.exp %50 : vector<8x256xf32>
    %cst_35 = arith.constant 1.000000e+00 : f32
    %52 = vector.broadcast %cst_35 : f32 to vector<8x256xf32>
    %53 = arith.addf %52, %51 : vector<8x256xf32>
    %54 = arith.divf %52, %53 : vector<8x256xf32>
    %55 = arith.mulf %49, %54 : vector<8x256xf32>
    %56 = vector.broadcast %17 : vector<1x256xf32> to vector<8x256xf32>
    %57 = arith.mulf %55, %56 : vector<8x256xf32>
    %cst_36 = arith.constant dense<0.000000e+00> : vector<8xf32>
    %58 = vector.multi_reduction <add>, %57, %cst_36 [1] : vector<8x256xf32> to vector<8xf32>
    %59 = vector.shape_cast %58 : vector<8xf32> to vector<8x1xf32>
    %60 = vector.broadcast %18 : vector<1x1xf32> to vector<8x1xf32>
    %61 = arith.addf %59, %60 : vector<8x1xf32>
    %62 = vector.extract_strided_slice %3 {offsets = [0, 0], sizes = [1, 512], strides = [1, 1]} : vector<4x512xf32> to vector<1x512xf32>
    %63 = vector.broadcast %62 : vector<1x512xf32> to vector<8x512xf32>
    %64 = arith.subf %1, %63 : vector<8x512xf32>
    %65 = arith.mulf %64, %64 : vector<8x512xf32>
    %cst_37 = arith.constant dense<0.000000e+00> : vector<8xf32>
    %66 = vector.multi_reduction <add>, %65, %cst_37 [1] : vector<8x512xf32> to vector<8xf32>
    %67 = vector.shape_cast %66 : vector<8xf32> to vector<8x1xf32>
    %68 = math.sqrt %67 : vector<8x1xf32>
    %cst_38 = arith.constant 1.000000e-01 : f32
    %69 = vector.broadcast %cst_38 : f32 to vector<8x1xf32>
    %70 = arith.mulf %69, %68 : vector<8x1xf32>
    %71 = arith.addf %61, %70 : vector<8x1xf32>
    %c0_i32 = arith.constant 0 : i32
    %72 = vector.broadcast %c0_i32 : i32 to vector<8x4xi32>
    %73 = arith.cmpi eq, %19, %72 : vector<8x4xi32>
    %cst_39 = arith.constant 0.000000e+00 : f32
    %74 = vector.shape_cast %71 : vector<8x1xf32> to vector<8x1xf32>
    %75 = vector.broadcast %74 : vector<8x1xf32> to vector<8x4xf32>
    %76 = vector.broadcast %cst_39 : f32 to vector<8x4xf32>
    %77 = arith.select %73, %75, %76 : vector<8x4xi1>, vector<8x4xf32>
    %78 = arith.addf %20, %77 : vector<8x4xf32>
    %79 = vector.extract_strided_slice %11 {offsets = [1, 0], sizes = [1, 512], strides = [1, 1]} : vector<4x512xf32> to vector<1x512xf32>
    %80 = vector.broadcast %79 : vector<1x512xf32> to vector<8x512xf32>
    %81 = arith.addf %8, %80 : vector<8x512xf32>
    %82 = vector.broadcast %16 : vector<1x512xf32> to vector<8x512xf32>
    %83 = arith.addf %81, %82 : vector<8x512xf32>
    %84 = arith.negf %83 : vector<8x512xf32>
    %85 = math.exp %84 : vector<8x512xf32>
    %cst_40 = arith.constant 1.000000e+00 : f32
    %86 = vector.broadcast %cst_40 : f32 to vector<8x512xf32>
    %87 = arith.addf %86, %85 : vector<8x512xf32>
    %88 = arith.divf %86, %87 : vector<8x512xf32>
    %89 = arith.mulf %83, %88 : vector<8x512xf32>
    %90 = arith.truncf %89 : vector<8x512xf32> to vector<8x512xbf16>
    %c0_41 = arith.constant 0 : index
    %c0_42 = arith.constant 0 : index
    %91 = vector.load %arg9[%c0_41, %c0_42] : memref<512x512xbf16, #tpu.memory_space<vmem>>, vector<512x512xbf16>
    %cst_43 = arith.constant dense<0.000000e+00> : vector<8x512xf32>
    %92 = tpu.matmul %90, %91, %cst_43 {dimension_numbers = #tpu.dot_dimension_numbers<[1], [0], [0], [1], [0, 0, 1, 1], [], []>} : vector<8x512xbf16>, vector<512x512xbf16>, vector<8x512xf32> -> vector<8x512xf32>
    %c0_44 = arith.constant 0 : index
    %c0_45 = arith.constant 0 : index
    %93 = vector.load %arg10[%c0_44, %c0_45] : memref<1x512xf32, #tpu.memory_space<vmem>>, vector<1x512xf32>
    %94 = vector.broadcast %93 : vector<1x512xf32> to vector<8x512xf32>
    %95 = arith.addf %92, %94 : vector<8x512xf32>
    %96 = arith.negf %95 : vector<8x512xf32>
    %97 = math.exp %96 : vector<8x512xf32>
    %cst_46 = arith.constant 1.000000e+00 : f32
    %98 = vector.broadcast %cst_46 : f32 to vector<8x512xf32>
    %99 = arith.addf %98, %97 : vector<8x512xf32>
    %100 = arith.divf %98, %99 : vector<8x512xf32>
    %101 = arith.mulf %95, %100 : vector<8x512xf32>
    %102 = arith.truncf %101 : vector<8x512xf32> to vector<8x512xbf16>
    %c0_47 = arith.constant 0 : index
    %c0_48 = arith.constant 0 : index
    %103 = vector.load %arg11[%c0_47, %c0_48] : memref<512x256xbf16, #tpu.memory_space<vmem>>, vector<512x256xbf16>
    %cst_49 = arith.constant dense<0.000000e+00> : vector<8x256xf32>
    %104 = tpu.matmul %102, %103, %cst_49 {dimension_numbers = #tpu.dot_dimension_numbers<[1], [0], [0], [1], [0, 0, 1, 1], [], []>} : vector<8x512xbf16>, vector<512x256xbf16>, vector<8x256xf32> -> vector<8x256xf32>
    %c0_50 = arith.constant 0 : index
    %c0_51 = arith.constant 0 : index
    %105 = vector.load %arg12[%c0_50, %c0_51] : memref<1x256xf32, #tpu.memory_space<vmem>>, vector<1x256xf32>
    %106 = vector.broadcast %105 : vector<1x256xf32> to vector<8x256xf32>
    %107 = arith.addf %104, %106 : vector<8x256xf32>
    %108 = arith.negf %107 : vector<8x256xf32>
    %109 = math.exp %108 : vector<8x256xf32>
    %cst_52 = arith.constant 1.000000e+00 : f32
    %110 = vector.broadcast %cst_52 : f32 to vector<8x256xf32>
    %111 = arith.addf %110, %109 : vector<8x256xf32>
    %112 = arith.divf %110, %111 : vector<8x256xf32>
    %113 = arith.mulf %107, %112 : vector<8x256xf32>
    %114 = vector.broadcast %17 : vector<1x256xf32> to vector<8x256xf32>
    %115 = arith.mulf %113, %114 : vector<8x256xf32>
    %cst_53 = arith.constant dense<0.000000e+00> : vector<8xf32>
    %116 = vector.multi_reduction <add>, %115, %cst_53 [1] : vector<8x256xf32> to vector<8xf32>
    %117 = vector.shape_cast %116 : vector<8xf32> to vector<8x1xf32>
    %118 = vector.broadcast %18 : vector<1x1xf32> to vector<8x1xf32>
    %119 = arith.addf %117, %118 : vector<8x1xf32>
    %120 = vector.extract_strided_slice %3 {offsets = [1, 0], sizes = [1, 512], strides = [1, 1]} : vector<4x512xf32> to vector<1x512xf32>
    %121 = vector.broadcast %120 : vector<1x512xf32> to vector<8x512xf32>
    %122 = arith.subf %1, %121 : vector<8x512xf32>
    %123 = arith.mulf %122, %122 : vector<8x512xf32>
    %cst_54 = arith.constant dense<0.000000e+00> : vector<8xf32>
    %124 = vector.multi_reduction <add>, %123, %cst_54 [1] : vector<8x512xf32> to vector<8xf32>
    %125 = vector.shape_cast %124 : vector<8xf32> to vector<8x1xf32>
    %126 = math.sqrt %125 : vector<8x1xf32>
    %cst_55 = arith.constant 1.000000e-01 : f32
    %127 = vector.broadcast %cst_55 : f32 to vector<8x1xf32>
    %128 = arith.mulf %127, %126 : vector<8x1xf32>
    %129 = arith.addf %119, %128 : vector<8x1xf32>
    %c1_i32 = arith.constant 1 : i32
    %130 = vector.broadcast %c1_i32 : i32 to vector<8x4xi32>
    %131 = arith.cmpi eq, %19, %130 : vector<8x4xi32>
    %cst_56 = arith.constant 0.000000e+00 : f32
    %132 = vector.shape_cast %129 : vector<8x1xf32> to vector<8x1xf32>
    %133 = vector.broadcast %132 : vector<8x1xf32> to vector<8x4xf32>
    %134 = vector.broadcast %cst_56 : f32 to vector<8x4xf32>
    %135 = arith.select %131, %133, %134 : vector<8x4xi1>, vector<8x4xf32>
    %136 = arith.addf %78, %135 : vector<8x4xf32>
    %137 = vector.extract_strided_slice %11 {offsets = [2, 0], sizes = [1, 512], strides = [1, 1]} : vector<4x512xf32> to vector<1x512xf32>
    %138 = vector.broadcast %137 : vector<1x512xf32> to vector<8x512xf32>
    %139 = arith.addf %8, %138 : vector<8x512xf32>
    %140 = vector.broadcast %16 : vector<1x512xf32> to vector<8x512xf32>
    %141 = arith.addf %139, %140 : vector<8x512xf32>
    %142 = arith.negf %141 : vector<8x512xf32>
    %143 = math.exp %142 : vector<8x512xf32>
    %cst_57 = arith.constant 1.000000e+00 : f32
    %144 = vector.broadcast %cst_57 : f32 to vector<8x512xf32>
    %145 = arith.addf %144, %143 : vector<8x512xf32>
    %146 = arith.divf %144, %145 : vector<8x512xf32>
    %147 = arith.mulf %141, %146 : vector<8x512xf32>
    %148 = arith.truncf %147 : vector<8x512xf32> to vector<8x512xbf16>
    %c0_58 = arith.constant 0 : index
    %c0_59 = arith.constant 0 : index
    %149 = vector.load %arg9[%c0_58, %c0_59] : memref<512x512xbf16, #tpu.memory_space<vmem>>, vector<512x512xbf16>
    %cst_60 = arith.constant dense<0.000000e+00> : vector<8x512xf32>
    %150 = tpu.matmul %148, %149, %cst_60 {dimension_numbers = #tpu.dot_dimension_numbers<[1], [0], [0], [1], [0, 0, 1, 1], [], []>} : vector<8x512xbf16>, vector<512x512xbf16>, vector<8x512xf32> -> vector<8x512xf32>
    %c0_61 = arith.constant 0 : index
    %c0_62 = arith.constant 0 : index
    %151 = vector.load %arg10[%c0_61, %c0_62] : memref<1x512xf32, #tpu.memory_space<vmem>>, vector<1x512xf32>
    %152 = vector.broadcast %151 : vector<1x512xf32> to vector<8x512xf32>
    %153 = arith.addf %150, %152 : vector<8x512xf32>
    %154 = arith.negf %153 : vector<8x512xf32>
    %155 = math.exp %154 : vector<8x512xf32>
    %cst_63 = arith.constant 1.000000e+00 : f32
    %156 = vector.broadcast %cst_63 : f32 to vector<8x512xf32>
    %157 = arith.addf %156, %155 : vector<8x512xf32>
    %158 = arith.divf %156, %157 : vector<8x512xf32>
    %159 = arith.mulf %153, %158 : vector<8x512xf32>
    %160 = arith.truncf %159 : vector<8x512xf32> to vector<8x512xbf16>
    %c0_64 = arith.constant 0 : index
    %c0_65 = arith.constant 0 : index
    %161 = vector.load %arg11[%c0_64, %c0_65] : memref<512x256xbf16, #tpu.memory_space<vmem>>, vector<512x256xbf16>
    %cst_66 = arith.constant dense<0.000000e+00> : vector<8x256xf32>
    %162 = tpu.matmul %160, %161, %cst_66 {dimension_numbers = #tpu.dot_dimension_numbers<[1], [0], [0], [1], [0, 0, 1, 1], [], []>} : vector<8x512xbf16>, vector<512x256xbf16>, vector<8x256xf32> -> vector<8x256xf32>
    %c0_67 = arith.constant 0 : index
    %c0_68 = arith.constant 0 : index
    %163 = vector.load %arg12[%c0_67, %c0_68] : memref<1x256xf32, #tpu.memory_space<vmem>>, vector<1x256xf32>
    %164 = vector.broadcast %163 : vector<1x256xf32> to vector<8x256xf32>
    %165 = arith.addf %162, %164 : vector<8x256xf32>
    %166 = arith.negf %165 : vector<8x256xf32>
    %167 = math.exp %166 : vector<8x256xf32>
    %cst_69 = arith.constant 1.000000e+00 : f32
    %168 = vector.broadcast %cst_69 : f32 to vector<8x256xf32>
    %169 = arith.addf %168, %167 : vector<8x256xf32>
    %170 = arith.divf %168, %169 : vector<8x256xf32>
    %171 = arith.mulf %165, %170 : vector<8x256xf32>
    %172 = vector.broadcast %17 : vector<1x256xf32> to vector<8x256xf32>
    %173 = arith.mulf %171, %172 : vector<8x256xf32>
    %cst_70 = arith.constant dense<0.000000e+00> : vector<8xf32>
    %174 = vector.multi_reduction <add>, %173, %cst_70 [1] : vector<8x256xf32> to vector<8xf32>
    %175 = vector.shape_cast %174 : vector<8xf32> to vector<8x1xf32>
    %176 = vector.broadcast %18 : vector<1x1xf32> to vector<8x1xf32>
    %177 = arith.addf %175, %176 : vector<8x1xf32>
    %178 = vector.extract_strided_slice %3 {offsets = [2, 0], sizes = [1, 512], strides = [1, 1]} : vector<4x512xf32> to vector<1x512xf32>
    %179 = vector.broadcast %178 : vector<1x512xf32> to vector<8x512xf32>
    %180 = arith.subf %1, %179 : vector<8x512xf32>
    %181 = arith.mulf %180, %180 : vector<8x512xf32>
    %cst_71 = arith.constant dense<0.000000e+00> : vector<8xf32>
    %182 = vector.multi_reduction <add>, %181, %cst_71 [1] : vector<8x512xf32> to vector<8xf32>
    %183 = vector.shape_cast %182 : vector<8xf32> to vector<8x1xf32>
    %184 = math.sqrt %183 : vector<8x1xf32>
    %cst_72 = arith.constant 1.000000e-01 : f32
    %185 = vector.broadcast %cst_72 : f32 to vector<8x1xf32>
    %186 = arith.mulf %185, %184 : vector<8x1xf32>
    %187 = arith.addf %177, %186 : vector<8x1xf32>
    %c2_i32 = arith.constant 2 : i32
    %188 = vector.broadcast %c2_i32 : i32 to vector<8x4xi32>
    %189 = arith.cmpi eq, %19, %188 : vector<8x4xi32>
    %cst_73 = arith.constant 0.000000e+00 : f32
    %190 = vector.shape_cast %187 : vector<8x1xf32> to vector<8x1xf32>
    %191 = vector.broadcast %190 : vector<8x1xf32> to vector<8x4xf32>
    %192 = vector.broadcast %cst_73 : f32 to vector<8x4xf32>
    %193 = arith.select %189, %191, %192 : vector<8x4xi1>, vector<8x4xf32>
    %194 = arith.addf %136, %193 : vector<8x4xf32>
    %195 = vector.extract_strided_slice %11 {offsets = [3, 0], sizes = [1, 512], strides = [1, 1]} : vector<4x512xf32> to vector<1x512xf32>
    %196 = vector.broadcast %195 : vector<1x512xf32> to vector<8x512xf32>
    %197 = arith.addf %8, %196 : vector<8x512xf32>
    %198 = vector.broadcast %16 : vector<1x512xf32> to vector<8x512xf32>
    %199 = arith.addf %197, %198 : vector<8x512xf32>
    %200 = arith.negf %199 : vector<8x512xf32>
    %201 = math.exp %200 : vector<8x512xf32>
    %cst_74 = arith.constant 1.000000e+00 : f32
    %202 = vector.broadcast %cst_74 : f32 to vector<8x512xf32>
    %203 = arith.addf %202, %201 : vector<8x512xf32>
    %204 = arith.divf %202, %203 : vector<8x512xf32>
    %205 = arith.mulf %199, %204 : vector<8x512xf32>
    %206 = arith.truncf %205 : vector<8x512xf32> to vector<8x512xbf16>
    %c0_75 = arith.constant 0 : index
    %c0_76 = arith.constant 0 : index
    %207 = vector.load %arg9[%c0_75, %c0_76] : memref<512x512xbf16, #tpu.memory_space<vmem>>, vector<512x512xbf16>
    %cst_77 = arith.constant dense<0.000000e+00> : vector<8x512xf32>
    %208 = tpu.matmul %206, %207, %cst_77 {dimension_numbers = #tpu.dot_dimension_numbers<[1], [0], [0], [1], [0, 0, 1, 1], [], []>} : vector<8x512xbf16>, vector<512x512xbf16>, vector<8x512xf32> -> vector<8x512xf32>
    %c0_78 = arith.constant 0 : index
    %c0_79 = arith.constant 0 : index
    %209 = vector.load %arg10[%c0_78, %c0_79] : memref<1x512xf32, #tpu.memory_space<vmem>>, vector<1x512xf32>
    %210 = vector.broadcast %209 : vector<1x512xf32> to vector<8x512xf32>
    %211 = arith.addf %208, %210 : vector<8x512xf32>
    %212 = arith.negf %211 : vector<8x512xf32>
    %213 = math.exp %212 : vector<8x512xf32>
    %cst_80 = arith.constant 1.000000e+00 : f32
    %214 = vector.broadcast %cst_80 : f32 to vector<8x512xf32>
    %215 = arith.addf %214, %213 : vector<8x512xf32>
    %216 = arith.divf %214, %215 : vector<8x512xf32>
    %217 = arith.mulf %211, %216 : vector<8x512xf32>
    %218 = arith.truncf %217 : vector<8x512xf32> to vector<8x512xbf16>
    %c0_81 = arith.constant 0 : index
    %c0_82 = arith.constant 0 : index
    %219 = vector.load %arg11[%c0_81, %c0_82] : memref<512x256xbf16, #tpu.memory_space<vmem>>, vector<512x256xbf16>
    %cst_83 = arith.constant dense<0.000000e+00> : vector<8x256xf32>
    %220 = tpu.matmul %218, %219, %cst_83 {dimension_numbers = #tpu.dot_dimension_numbers<[1], [0], [0], [1], [0, 0, 1, 1], [], []>} : vector<8x512xbf16>, vector<512x256xbf16>, vector<8x256xf32> -> vector<8x256xf32>
    %c0_84 = arith.constant 0 : index
    %c0_85 = arith.constant 0 : index
    %221 = vector.load %arg12[%c0_84, %c0_85] : memref<1x256xf32, #tpu.memory_space<vmem>>, vector<1x256xf32>
    %222 = vector.broadcast %221 : vector<1x256xf32> to vector<8x256xf32>
    %223 = arith.addf %220, %222 : vector<8x256xf32>
    %224 = arith.negf %223 : vector<8x256xf32>
    %225 = math.exp %224 : vector<8x256xf32>
    %cst_86 = arith.constant 1.000000e+00 : f32
    %226 = vector.broadcast %cst_86 : f32 to vector<8x256xf32>
    %227 = arith.addf %226, %225 : vector<8x256xf32>
    %228 = arith.divf %226, %227 : vector<8x256xf32>
    %229 = arith.mulf %223, %228 : vector<8x256xf32>
    %230 = vector.broadcast %17 : vector<1x256xf32> to vector<8x256xf32>
    %231 = arith.mulf %229, %230 : vector<8x256xf32>
    %cst_87 = arith.constant dense<0.000000e+00> : vector<8xf32>
    %232 = vector.multi_reduction <add>, %231, %cst_87 [1] : vector<8x256xf32> to vector<8xf32>
    %233 = vector.shape_cast %232 : vector<8xf32> to vector<8x1xf32>
    %234 = vector.broadcast %18 : vector<1x1xf32> to vector<8x1xf32>
    %235 = arith.addf %233, %234 : vector<8x1xf32>
    %236 = vector.extract_strided_slice %3 {offsets = [3, 0], sizes = [1, 512], strides = [1, 1]} : vector<4x512xf32> to vector<1x512xf32>
    %237 = vector.broadcast %236 : vector<1x512xf32> to vector<8x512xf32>
    %238 = arith.subf %1, %237 : vector<8x512xf32>
    %239 = arith.mulf %238, %238 : vector<8x512xf32>
    %cst_88 = arith.constant dense<0.000000e+00> : vector<8xf32>
    %240 = vector.multi_reduction <add>, %239, %cst_88 [1] : vector<8x512xf32> to vector<8xf32>
    %241 = vector.shape_cast %240 : vector<8xf32> to vector<8x1xf32>
    %242 = math.sqrt %241 : vector<8x1xf32>
    %cst_89 = arith.constant 1.000000e-01 : f32
    %243 = vector.broadcast %cst_89 : f32 to vector<8x1xf32>
    %244 = arith.mulf %243, %242 : vector<8x1xf32>
    %245 = arith.addf %235, %244 : vector<8x1xf32>
    %c3_i32 = arith.constant 3 : i32
    %246 = vector.broadcast %c3_i32 : i32 to vector<8x4xi32>
    %247 = arith.cmpi eq, %19, %246 : vector<8x4xi32>
    %cst_90 = arith.constant 0.000000e+00 : f32
    %248 = vector.shape_cast %245 : vector<8x1xf32> to vector<8x1xf32>
    %249 = vector.broadcast %248 : vector<8x1xf32> to vector<8x4xf32>
    %250 = vector.broadcast %cst_90 : f32 to vector<8x4xf32>
    %251 = arith.select %247, %249, %250 : vector<8x4xi1>, vector<8x4xf32>
    %252 = arith.addf %194, %251 : vector<8x4xf32>
    %c0_91 = arith.constant 0 : index
    %c0_92 = arith.constant 0 : index
    %c0_93 = arith.constant 0 : index
    %253 = vector.load %arg15[%c0_91, %c0_92, %c0_93] : memref<1x8x4xf32, #tpu.memory_space<vmem>>, vector<1x8x4xf32>
    %254 = vector.shape_cast %253 : vector<1x8x4xf32> to vector<8x4xf32>
    %255 = vector.shape_cast %252 : vector<8x4xf32> to vector<1x8x4xf32>
    tpu.vector_store %arg15[%c0_91, %c0_92, %c0_93], %255 {strides = array<i32>} : memref<1x8x4xf32, #tpu.memory_space<vmem>>, vector<1x8x4xf32>,
    return
  }
  func.func @transform_0(%arg0: i32, %arg1: i32) -> (i32, i32, i32) {
    %c0_i32 = arith.constant 0 : i32
    %c0_i32_0 = arith.constant 0 : i32
    return %arg0, %arg1, %c0_i32 : i32, i32, i32
  }
  func.func @transform_1(%arg0: i32, %arg1: i32) -> (i32, i32, i32) {
    %c0_i32 = arith.constant 0 : i32
    %c0_i32_0 = arith.constant 0 : i32
    %c0_i32_1 = arith.constant 0 : i32
    return %arg0, %c0_i32, %c0_i32_0 : i32, i32, i32
  }
  func.func @transform_2(%arg0: i32, %arg1: i32) -> (i32, i32, i32) {
    %c0_i32 = arith.constant 0 : i32
    %c0_i32_0 = arith.constant 0 : i32
    %c0_i32_1 = arith.constant 0 : i32
    return %arg0, %c0_i32, %c0_i32_0 : i32, i32, i32
  }
  func.func @transform_3(%arg0: i32, %arg1: i32) -> (i32, i32) {
    %c0_i32 = arith.constant 0 : i32
    %c0_i32_0 = arith.constant 0 : i32
    %c0_i32_1 = arith.constant 0 : i32
    return %c0_i32, %c0_i32_0 : i32, i32
  }
  func.func @transform_4(%arg0: i32, %arg1: i32) -> (i32, i32) {
    %c0_i32 = arith.constant 0 : i32
    %c0_i32_0 = arith.constant 0 : i32
    %c0_i32_1 = arith.constant 0 : i32
    return %c0_i32, %c0_i32_0 : i32, i32
  }
  func.func @transform_5(%arg0: i32, %arg1: i32) -> (i32, i32) {
    %c0_i32 = arith.constant 0 : i32
    %c0_i32_0 = arith.constant 0 : i32
    %c0_i32_1 = arith.constant 0 : i32
    return %c0_i32, %c0_i32_0 : i32, i32
  }
  func.func @transform_6(%arg0: i32, %arg1: i32) -> (i32, i32) {
    %c0_i32 = arith.constant 0 : i32
    %c0_i32_0 = arith.constant 0 : i32
    %c0_i32_1 = arith.constant 0 : i32
    return %c0_i32, %c0_i32_0 : i32, i32
  }
  func.func @transform_7(%arg0: i32, %arg1: i32) -> (i32, i32) {
    %c0_i32 = arith.constant 0 : i32
    %c0_i32_0 = arith.constant 0 : i32
    %c0_i32_1 = arith.constant 0 : i32
    return %c0_i32, %c0_i32_0 : i32, i32
  }
  func.func @transform_8(%arg0: i32, %arg1: i32) -> (i32, i32) {
    %c0_i32 = arith.constant 0 : i32
    %c0_i32_0 = arith.constant 0 : i32
    %c0_i32_1 = arith.constant 0 : i32
    return %c0_i32, %c0_i32_0 : i32, i32
  }
  func.func @transform_9(%arg0: i32, %arg1: i32) -> (i32, i32) {
    %c0_i32 = arith.constant 0 : i32
    %c0_i32_0 = arith.constant 0 : i32
    %c0_i32_1 = arith.constant 0 : i32
    return %c0_i32, %c0_i32_0 : i32, i32
  }
  func.func @transform_10(%arg0: i32, %arg1: i32) -> (i32, i32) {
    %c0_i32 = arith.constant 0 : i32
    %c0_i32_0 = arith.constant 0 : i32
    %c0_i32_1 = arith.constant 0 : i32
    return %c0_i32, %c0_i32_0 : i32, i32
  }
  func.func @transform_11(%arg0: i32, %arg1: i32) -> (i32, i32) {
    %c0_i32 = arith.constant 0 : i32
    %c0_i32_0 = arith.constant 0 : i32
    %c0_i32_1 = arith.constant 0 : i32
    return %c0_i32, %c0_i32_0 : i32, i32
  }
  func.func @transform_12(%arg0: i32, %arg1: i32) -> (i32, i32) {
    %c0_i32 = arith.constant 0 : i32
    %c0_i32_0 = arith.constant 0 : i32
    %c0_i32_1 = arith.constant 0 : i32
    return %c0_i32, %c0_i32_0 : i32, i32
  }
  func.func @transform_13(%arg0: i32, %arg1: i32) -> (i32, i32, i32) {
    %c0_i32 = arith.constant 0 : i32
    %c0_i32_0 = arith.constant 0 : i32
    return %arg0, %arg1, %c0_i32 : i32, i32, i32
  }
}

</mosaic_0001>

<llo_original>
// kernel: tpu_custom_call.1
$region0: #{tpu_custom_call.1}
  #allocation0 [shape = 'u32[]', space=smem, size = 0x4, offset = 0x4, fixed_abs, tag = 'smem constant byte address 0x4 - core index']
  #allocation1 [shape = 'u32[144,128]{1,0:T(1,128)}', space=vmem, size = 0x12000, scoped, tag = 'internal scratch']
  #allocation2 [shape = 'f32[1,1]{1,0:T(1,128)S(1)}', space=vmem, size = 0x200, scoped, tag = 'scoped memory for tpu_custom_call.1']
  %s0 = inlined_call_operand.hbm [shape: f32[2,24,512], index: 0, kind: input, shape index: {}]
  %s1 = inlined_call_operand.hbm [shape: f32[2,4,512], index: 1, kind: input, shape index: {}]
  %s2 = inlined_call_operand.vmem [shape: f32[2,1,128], index: 2, kind: input, shape index: {}]
  %s3 = inlined_call_operand.hbm [shape: bf16[512,512], index: 3, kind: input, shape index: {}]
  %s4 = inlined_call_operand.hbm [shape: bf16[512,512], index: 4, kind: input, shape index: {}]
  %s5 = inlined_call_operand.hbm [shape: bf16[128,512], index: 5, kind: input, shape index: {}]
  %s6 = inlined_call_operand.vmem [shape: f32[1,512], index: 6, kind: input, shape index: {}]
  %s7 = inlined_call_operand.hbm [shape: bf16[512,512], index: 7, kind: input, shape index: {}]
  %s8 = inlined_call_operand.vmem [shape: f32[1,512], index: 8, kind: input, shape index: {}]
  %s9 = inlined_call_operand.hbm [shape: bf16[512,256], index: 9, kind: input, shape index: {}]
  %s10 = inlined_call_operand.vmem [shape: f32[1,256], index: 10, kind: input, shape index: {}]
  %s11 = inlined_call_operand.vmem [shape: f32[1,256], index: 11, kind: input, shape index: {}]
  %s12 = inlined_call_operand.<no memory space> [shape: f32[1,1], index: 12, kind: input, shape index: {}]
  %s13 = inlined_call_operand.vmem [shape: f32[2,24,4], index: 13, kind: output, shape index: {}]
  %s14 = sld [smem:[#allocation0]]
  $region113: #{tpu_custom_call.1} parent=0
    _
  %s16 = ssub.s32 1, %s14
  %s17 = scalar_select 0, %s16, %s14
  %v18 = vstv %s12
  %19 = vst [vmem:[#allocation2] sm:$0x1] %v18
  $region1: #{tpu_custom_call.1} parent=0
    #allocation3 [shape = 'u8[32768]{0}', space=vmem, size = 0x8000, scoped, tag = 'input window, operand 0']
    #allocation4 [shape = 's32[2]{0}', space=sflag, size = 0x8, scoped, tag = 'scoped memory for tpu_custom_call.1']
    #allocation5 [shape = 'u8[16384]{0}', space=vmem, size = 0x4000, scoped, tag = 'input window, operand 1']
    #allocation6 [shape = 's32[2]{0}', space=sflag, size = 0x8, scoped, tag = 'scoped memory for tpu_custom_call.1']
    #allocation7 [shape = 'u8[524288]{0}', space=vmem, size = 0x80000, scoped, tag = 'input window, operand 3, single buffered']
    #allocation8 [shape = 'u8[524288]{0}', space=vmem, size = 0x80000, scoped, tag = 'input window, operand 4, single buffered']
    #allocation9 [shape = 's32[1]{0}', space=sflag, size = 0x4, scoped, tag = 'scoped memory for tpu_custom_call.1']
    #allocation10 [shape = 'u8[131072]{0}', space=vmem, size = 0x20000, scoped, tag = 'input window, operand 5, single buffered']
    #allocation11 [shape = 'u8[524288]{0}', space=vmem, size = 0x80000, scoped, tag = 'input window, operand 7, single buffered']
    #allocation12 [shape = 's32[1]{0}', space=sflag, size = 0x4, scoped, tag = 'scoped memory for tpu_custom_call.1']
    #allocation13 [shape = 'u8[262144]{0}', space=vmem, size = 0x40000, scoped, tag = 'input window, operand 9, single buffered']
    %20 = vsyncpa [#allocation4], 0
    %s21 = scalar_lea.sflag [#allocation4], 1
    %22 = vsyncpa %s21, 0
    %23 = vsyncpa [#allocation6], 0
    %s24 = scalar_lea.sflag [#allocation6], 1
    %25 = vsyncpa %s24, 0
    %26 = vsyncpa [#allocation9], 0
    %27 = vsyncpa [#allocation12], 0
    loop: start=0, step=1, limit=8
    $region2: #{tpu_custom_call.1} parent=1 // loop_pre_header
      _
    $region3: #{tpu_custom_call.1} parent=1 // loop_header
      %s29 = sphi 0, %s33
      %p30 = scmp.ge.s32.totalorder %s29, 8
      %s36 = sphi 0, %s48
      %s37 = sphi 0, %s44
      %s38 = sphi 0, %s36
      %s39 = sphi 0, %s37
      %s40 = sphi 0, %s38
      %s41 = sphi 0, %s39
      %s53 = sphi 0, %s55
      %s56 = sphi 0, %s53
      %s57 = sphi 0, %s56
      %s73 = sphi 0, %s57
      %s79 = sphi 0, %s81
      %s82 = sphi 0, %s79
      %s83 = sphi 0, %s82
      %s99 = sphi 0, %s83
      %s105 = sphi 0, %s107
      %s108 = sphi 0, %s105
      %s109 = sphi 0, %s108
      %s125 = sphi 0, %s109
      %s129 = sphi 0, %s129
      %s131 = sphi 0, %s129
      %s132 = sphi 0, %s131
      %s146 = sphi 0, %s132
      %s150 = sphi 0, %s150
      %s152 = sphi 0, %s150
      %s153 = sphi 0, %s152
      %s167 = sphi 0, %s153
      %s171 = sphi 0, %s171
      %s173 = sphi 0, %s171
      %s174 = sphi 0, %s173
      %s188 = sphi 0, %s174
      %s192 = sphi 0, %s192
      %s194 = sphi 0, %s192
      %s195 = sphi 0, %s194
      %s209 = sphi 0, %s195
      %s213 = sphi 0, %s213
      %s215 = sphi 0, %s213
      %s216 = sphi 0, %s215
      %s230 = sphi 0, %s216
      %s234 = sphi 0, %s234
      %s236 = sphi 0, %s234
      %s237 = sphi 0, %s236
      %s251 = sphi 0, %s237
      %s255 = sphi 0, %s255
      %s257 = sphi 0, %s255
      %s258 = sphi 0, %s257
      %s272 = sphi 0, %s258
      %s276 = sphi 0, %s276
      %s278 = sphi 0, %s276
      %s279 = sphi 0, %s278
      %s293 = sphi 0, %s279
      %s297 = sphi 0, %s297
      %s299 = sphi 0, %s297
      %s300 = sphi 0, %s299
      %s314 = sphi 0, %s300
      %s318 = sphi 0, %s318
      %s320 = sphi 0, %s318
      %s321 = sphi 0, %s320
      %s335 = sphi 0, %s321
      %s343 = sphi 0, %s345
      %s346 = sphi 0, %s343
      %s347 = sphi 0, %s346
      %s363 = sphi 0, %s347
    $region4: #{tpu_custom_call.1} parent=1 // loop_header_branch
      %32 = sbr.rel (%p30) target = $region8
    $region5: #{tpu_custom_call.1} parent=1 // loop_body
      %s34 = ssub.s32 %s29, 1
      %s35 = ssub.s32 %s29, 2
      %s42 = sadd.s32 1, %s37
      %p43 = scmp.ge.s32.totalorder %s42, 3
      %s44 = scalar_select %p43, 0, %s42
      %s45 = sadd.s32 1, %s36
      %s46 = scalar_select %p43, %s45, %s36
      %p47 = scmp.ge.s32.totalorder %s46, 2
      %s48 = scalar_select %p47, 0, %s46
      %s49 = ssub.s32 %s36, %s48
      %s50 = ssub.s32 %s37, %s44
      %s51 = sor.u32 %s49, %s50
      %p52 = scmp.eq.s32.totalorder %s51, 0
      %s54 = sadd.s32 %s53, 1
      %s55 = scalar_select %p52, %s53, %s54
      %p58 = pneg %p52
      %p59 = scmp.eq.s32.totalorder %s29, 5
      %p60 = por %p58, %p59
      %p61 = scmp.ne.s32.totalorder %s53, %s56
      %p62 = scmp.eq.s32.totalorder %s29, 0
      %p63 = por %p61, %p62
      %p64 = scmp.ne.s32.totalorder %s53, %s56
      %p65 = scmp.eq.s32.totalorder %s34, 5
      %p66 = por %p64, %p65
      %p67 = scmp.ne.s32.totalorder %s56, %s57
      %p68 = scmp.eq.s32.totalorder %s34, 0
      %p69 = por %p67, %p68
      %p70 = scmp.ne.s32.totalorder %s56, %s57
      %p71 = scmp.eq.s32.totalorder %s35, 5
      %p72 = por %p70, %p71
      %p74 = scmp.ne.s32.totalorder %s57, %s73
      %p75 = scmp.eq.s32.totalorder %s35, 0
      %p76 = por %p74, %p75
      %s77 = ssub.s32 %s36, %s48
      %p78 = scmp.eq.s32.totalorder %s77, 0
      %s80 = sadd.s32 %s79, 1
      %s81 = scalar_select %p78, %s79, %s80
      %p84 = pneg %p78
      %p85 = scmp.eq.s32.totalorder %s29, 5
      %p86 = por %p84, %p85
      %p87 = scmp.ne.s32.totalorder %s79, %s82
      %p88 = scmp.eq.s32.totalorder %s29, 0
      %p89 = por %p87, %p88
      %p90 = scmp.ne.s32.totalorder %s79, %s82
      %p91 = scmp.eq.s32.totalorder %s34, 5
      %p92 = por %p90, %p91
      %p93 = scmp.ne.s32.totalorder %s82, %s83
      %p94 = scmp.eq.s32.totalorder %s34, 0
      %p95 = por %p93, %p94
      %p96 = scmp.ne.s32.totalorder %s82, %s83
      %p97 = scmp.eq.s32.totalorder %s35, 5
      %p98 = por %p96, %p97
      %p100 = scmp.ne.s32.totalorder %s83, %s99
      %p101 = scmp.eq.s32.totalorder %s35, 0
      %p102 = por %p100, %p101
      %s103 = ssub.s32 %s36, %s48
      %p104 = scmp.eq.s32.totalorder %s103, 0
      %s106 = sadd.s32 %s105, 1
      %s107 = scalar_select %p104, %s105, %s106
      %p110 = pneg %p104
      %p111 = scmp.eq.s32.totalorder %s29, 5
      %p112 = por %p110, %p111
      %p113 = scmp.ne.s32.totalorder %s105, %s108
      %p114 = scmp.eq.s32.totalorder %s29, 0
      %p115 = por %p113, %p114
      %p116 = scmp.ne.s32.totalorder %s105, %s108
      %p117 = scmp.eq.s32.totalorder %s34, 5
      %p118 = por %p116, %p117
      %p119 = scmp.ne.s32.totalorder %s108, %s109
      %p120 = scmp.eq.s32.totalorder %s34, 0
      %p121 = por %p119, %p120
      %p122 = scmp.ne.s32.totalorder %s108, %s109
      %p123 = scmp.eq.s32.totalorder %s35, 5
      %p124 = por %p122, %p123
      %p126 = scmp.ne.s32.totalorder %s109, %s125
      %p127 = scmp.eq.s32.totalorder %s35, 0
      %p128 = por %p126, %p127
      %s130 = sadd.s32 %s129, 1
      %p133 = scmp.eq.s32.totalorder %s29, 5
      %p134 = scmp.ne.s32.totalorder %s129, %s131
      %p135 = scmp.eq.s32.totalorder %s29, 0
      %p136 = por %p134, %p135
      %p137 = scmp.ne.s32.totalorder %s129, %s131
      %p138 = scmp.eq.s32.totalorder %s34, 5
      %p139 = por %p137, %p138
      %p140 = scmp.ne.s32.totalorder %s131, %s132
      %p141 = scmp.eq.s32.totalorder %s34, 0
      %p142 = por %p140, %p141
      %p143 = scmp.ne.s32.totalorder %s131, %s132
      %p144 = scmp.eq.s32.totalorder %s35, 5
      %p145 = por %p143, %p144
      %p147 = scmp.ne.s32.totalorder %s132, %s146
      %p148 = scmp.eq.s32.totalorder %s35, 0
      %p149 = por %p147, %p148
      %s151 = sadd.s32 %s150, 1
      %p154 = scmp.eq.s32.totalorder %s29, 5
      %p155 = scmp.ne.s32.totalorder %s150, %s152
      %p156 = scmp.eq.s32.totalorder %s29, 0
      %p157 = por %p155, %p156
      %p158 = scmp.ne.s32.totalorder %s150, %s152
      %p159 = scmp.eq.s32.totalorder %s34, 5
      %p160 = por %p158, %p159
      %p161 = scmp.ne.s32.totalorder %s152, %s153
      %p162 = scmp.eq.s32.totalorder %s34, 0
      %p163 = por %p161, %p162
      %p164 = scmp.ne.s32.totalorder %s152, %s153
      %p165 = scmp.eq.s32.totalorder %s35, 5
      %p166 = por %p164, %p165
      %p168 = scmp.ne.s32.totalorder %s153, %s167
      %p169 = scmp.eq.s32.totalorder %s35, 0
      %p170 = por %p168, %p169
      %s172 = sadd.s32 %s171, 1
      %p175 = scmp.eq.s32.totalorder %s29, 5
      %p176 = scmp.ne.s32.totalorder %s171, %s173
      %p177 = scmp.eq.s32.totalorder %s29, 0
      %p178 = por %p176, %p177
      %p179 = scmp.ne.s32.totalorder %s171, %s173
      %p180 = scmp.eq.s32.totalorder %s34, 5
      %p181 = por %p179, %p180
      %p182 = scmp.ne.s32.totalorder %s173, %s174
      %p183 = scmp.eq.s32.totalorder %s34, 0
      %p184 = por %p182, %p183
      %p185 = scmp.ne.s32.totalorder %s173, %s174
      %p186 = scmp.eq.s32.totalorder %s35, 5
      %p187 = por %p185, %p186
      %p189 = scmp.ne.s32.totalorder %s174, %s188
      %p190 = scmp.eq.s32.totalorder %s35, 0
      %p191 = por %p189, %p190
      %s193 = sadd.s32 %s192, 1
      %p196 = scmp.eq.s32.totalorder %s29, 5
      %p197 = scmp.ne.s32.totalorder %s192, %s194
      %p198 = scmp.eq.s32.totalorder %s29, 0
      %p199 = por %p197, %p198
      %p200 = scmp.ne.s32.totalorder %s192, %s194
      %p201 = scmp.eq.s32.totalorder %s34, 5
      %p202 = por %p200, %p201
      %p203 = scmp.ne.s32.totalorder %s194, %s195
      %p204 = scmp.eq.s32.totalorder %s34, 0
      %p205 = por %p203, %p204
      %p206 = scmp.ne.s32.totalorder %s194, %s195
      %p207 = scmp.eq.s32.totalorder %s35, 5
      %p208 = por %p206, %p207
      %p210 = scmp.ne.s32.totalorder %s195, %s209
      %p211 = scmp.eq.s32.totalorder %s35, 0
      %p212 = por %p210, %p211
      %s214 = sadd.s32 %s213, 1
      %p217 = scmp.eq.s32.totalorder %s29, 5
      %p218 = scmp.ne.s32.totalorder %s213, %s215
      %p219 = scmp.eq.s32.totalorder %s29, 0
      %p220 = por %p218, %p219
      %p221 = scmp.ne.s32.totalorder %s213, %s215
      %p222 = scmp.eq.s32.totalorder %s34, 5
      %p223 = por %p221, %p222
      %p224 = scmp.ne.s32.totalorder %s215, %s216
      %p225 = scmp.eq.s32.totalorder %s34, 0
      %p226 = por %p224, %p225
      %p227 = scmp.ne.s32.totalorder %s215, %s216
      %p228 = scmp.eq.s32.totalorder %s35, 5
      %p229 = por %p227, %p228
      %p231 = scmp.ne.s32.totalorder %s216, %s230
      %p232 = scmp.eq.s32.totalorder %s35, 0
      %p233 = por %p231, %p232
      %s235 = sadd.s32 %s234, 1
      %p238 = scmp.eq.s32.totalorder %s29, 5
      %p239 = scmp.ne.s32.totalorder %s234, %s236
      %p240 = scmp.eq.s32.totalorder %s29, 0
      %p241 = por %p239, %p240
      %p242 = scmp.ne.s32.totalorder %s234, %s236
      %p243 = scmp.eq.s32.totalorder %s34, 5
      %p244 = por %p242, %p243
      %p245 = scmp.ne.s32.totalorder %s236, %s237
      %p246 = scmp.eq.s32.totalorder %s34, 0
      %p247 = por %p245, %p246
      %p248 = scmp.ne.s32.totalorder %s236, %s237
      %p249 = scmp.eq.s32.totalorder %s35, 5
      %p250 = por %p248, %p249
      %p252 = scmp.ne.s32.totalorder %s237, %s251
      %p253 = scmp.eq.s32.totalorder %s35, 0
      %p254 = por %p252, %p253
      %s256 = sadd.s32 %s255, 1
      %p259 = scmp.eq.s32.totalorder %s29, 5
      %p260 = scmp.ne.s32.totalorder %s255, %s257
      %p261 = scmp.eq.s32.totalorder %s29, 0
      %p262 = por %p260, %p261
      %p263 = scmp.ne.s32.totalorder %s255, %s257
      %p264 = scmp.eq.s32.totalorder %s34, 5
      %p265 = por %p263, %p264
      %p266 = scmp.ne.s32.totalorder %s257, %s258
      %p267 = scmp.eq.s32.totalorder %s34, 0
      %p268 = por %p266, %p267
      %p269 = scmp.ne.s32.totalorder %s257, %s258
      %p270 = scmp.eq.s32.totalorder %s35, 5
      %p271 = por %p269, %p270
      %p273 = scmp.ne.s32.totalorder %s258, %s272
      %p274 = scmp.eq.s32.totalorder %s35, 0
      %p275 = por %p273, %p274
      %s277 = sadd.s32 %s276, 1
      %p280 = scmp.eq.s32.totalorder %s29, 5
      %p281 = scmp.ne.s32.totalorder %s276, %s278
      %p282 = scmp.eq.s32.totalorder %s29, 0
      %p283 = por %p281, %p282
      %p284 = scmp.ne.s32.totalorder %s276, %s278
      %p285 = scmp.eq.s32.totalorder %s34, 5
      %p286 = por %p284, %p285
      %p287 = scmp.ne.s32.totalorder %s278, %s279
      %p288 = scmp.eq.s32.totalorder %s34, 0
      %p289 = por %p287, %p288
      %p290 = scmp.ne.s32.totalorder %s278, %s279
      %p291 = scmp.eq.s32.totalorder %s35, 5
      %p292 = por %p290, %p291
      %p294 = scmp.ne.s32.totalorder %s279, %s293
      %p295 = scmp.eq.s32.totalorder %s35, 0
      %p296 = por %p294, %p295
      %s298 = sadd.s32 %s297, 1
      %p301 = scmp.eq.s32.totalorder %s29, 5
      %p302 = scmp.ne.s32.totalorder %s297, %s299
      %p303 = scmp.eq.s32.totalorder %s29, 0
      %p304 = por %p302, %p303
      %p305 = scmp.ne.s32.totalorder %s297, %s299
      %p306 = scmp.eq.s32.totalorder %s34, 5
      %p307 = por %p305, %p306
      %p308 = scmp.ne.s32.totalorder %s299, %s300
      %p309 = scmp.eq.s32.totalorder %s34, 0
      %p310 = por %p308, %p309
      %p311 = scmp.ne.s32.totalorder %s299, %s300
      %p312 = scmp.eq.s32.totalorder %s35, 5
      %p313 = por %p311, %p312
      %p315 = scmp.ne.s32.totalorder %s300, %s314
      %p316 = scmp.eq.s32.totalorder %s35, 0
      %p317 = por %p315, %p316
      %s319 = sadd.s32 %s318, 1
      %p322 = scmp.eq.s32.totalorder %s29, 5
      %p323 = scmp.ne.s32.totalorder %s318, %s320
      %p324 = scmp.eq.s32.totalorder %s29, 0
      %p325 = por %p323, %p324
      %p326 = scmp.ne.s32.totalorder %s318, %s320
      %p327 = scmp.eq.s32.totalorder %s34, 5
      %p328 = por %p326, %p327
      %p329 = scmp.ne.s32.totalorder %s320, %s321
      %p330 = scmp.eq.s32.totalorder %s34, 0
      %p331 = por %p329, %p330
      %p332 = scmp.ne.s32.totalorder %s320, %s321
      %p333 = scmp.eq.s32.totalorder %s35, 5
      %p334 = por %p332, %p333
      %p336 = scmp.ne.s32.totalorder %s321, %s335
      %p337 = scmp.eq.s32.totalorder %s35, 0
      %p338 = por %p336, %p337
      %s339 = ssub.s32 %s36, %s48
      %s340 = ssub.s32 %s37, %s44
      %s341 = sor.u32 %s339, %s340
      %p342 = scmp.eq.s32.totalorder %s341, 0
      %s344 = sadd.s32 %s343, 1
      %s345 = scalar_select %p342, %s343, %s344
      %p348 = pneg %p342
      %p349 = scmp.eq.s32.totalorder %s29, 5
      %p350 = por %p348, %p349
      %p351 = scmp.ne.s32.totalorder %s343, %s346
      %p352 = scmp.eq.s32.totalorder %s29, 0
      %p353 = por %p351, %p352
      %p354 = scmp.ne.s32.totalorder %s343, %s346
      %p355 = scmp.eq.s32.totalorder %s34, 5
      %p356 = por %p354, %p355
      %p357 = scmp.ne.s32.totalorder %s346, %s347
      %p358 = scmp.eq.s32.totalorder %s34, 0
      %p359 = por %p357, %p358
      %p360 = scmp.ne.s32.totalorder %s346, %s347
      %p361 = scmp.eq.s32.totalorder %s35, 5
      %p362 = por %p360, %p361
      %p364 = scmp.ne.s32.totalorder %s347, %s363
      %p365 = scmp.eq.s32.totalorder %s35, 0
      %p366 = por %p364, %p365
      %p367 = scmp.le.s32.totalorder 1, %s29
      %p368 = scmp.lt.s32.totalorder %s29, 7
      %p369 = pnand %p367, %p368
      %p370 = pneg %p369
      // Predicated region
      $region9: #{tpu_custom_call.1} parent=5 // pred_check
        _
      $region10: #{tpu_custom_call.1} parent=5 // pred_check_branch
        %372 = sbr.rel (%p369) target = $region12
      $region11: #{tpu_custom_call.1} parent=5 // pred_region
        %s373 = ssub.s32 %s29, 1
        // Predicated region
        $region13: #{tpu_custom_call.1} parent=11 // pred_check
          %p374 = pneg %p142
        $region14: #{tpu_custom_call.1} parent=11 // pred_check_branch
          %376 = sbr.rel (%p374) target = $region16
        $region15: #{tpu_custom_call.1} parent=11 // pred_region
          %s378 = ssub.s32 16384, 16384
          %379 = vsyncadd [#allocation6], %s378
          %s380 = sshll.u32 [#allocation7], 4
          %s381 = int_to_ptr.vmem [resolvable:$true] %s380
          %386 = dma.hbm_to_vmem [thread:$0]  %s3, 16384, %s381, [#allocation6], 256, 256, 16
        $region16: #{tpu_custom_call.1} parent=11 // pred_fallthru
          _
        // Predicated region
        $region17: #{tpu_custom_call.1} parent=11 // pred_check
          %p387 = pneg %p163
        $region18: #{tpu_custom_call.1} parent=11 // pred_check_branch
          %389 = sbr.rel (%p387) target = $region20
        $region19: #{tpu_custom_call.1} parent=11 // pred_region
          %s391 = ssub.s32 16384, 16384
          %392 = vsyncadd [#allocation9], %s391
          %s393 = sshll.u32 [#allocation8], 4
          %s394 = int_to_ptr.vmem [resolvable:$true] %s393
          %399 = dma.hbm_to_vmem [thread:$0]  %s4, 16384, %s394, [#allocation9], 256, 256, 16
        $region20: #{tpu_custom_call.1} parent=11 // pred_fallthru
          _
        // Predicated region
        $region21: #{tpu_custom_call.1} parent=11 // pred_check
          %p400 = pneg %p184
        $region22: #{tpu_custom_call.1} parent=11 // pred_check_branch
          %402 = sbr.rel (%p400) target = $region24
        $region23: #{tpu_custom_call.1} parent=11 // pred_region
          %s404 = ssub.s32 4096, 4096
          %405 = vsyncadd [#allocation9], %s404
          %s406 = sshll.u32 [#allocation10], 4
          %s407 = int_to_ptr.vmem [resolvable:$true] %s406
          %412 = dma.hbm_to_vmem [thread:$0]  %s5, 4096, %s407, [#allocation9], 256, 256, 16
        $region24: #{tpu_custom_call.1} parent=11 // pred_fallthru
          _
        // Predicated region
        $region25: #{tpu_custom_call.1} parent=11 // pred_check
          %p413 = pneg %p205
        $region26: #{tpu_custom_call.1} parent=11 // pred_check_branch
          %415 = sbr.rel (%p413) target = $region28
        $region27: #{tpu_custom_call.1} parent=11 // pred_region
          _
        $region28: #{tpu_custom_call.1} parent=11 // pred_fallthru
          _
        // Predicated region
        $region29: #{tpu_custom_call.1} parent=11 // pred_check
          %p416 = pneg %p226
        $region30: #{tpu_custom_call.1} parent=11 // pred_check_branch
          %418 = sbr.rel (%p416) target = $region32
        $region31: #{tpu_custom_call.1} parent=11 // pred_region
          %s420 = ssub.s32 16384, 16384
          %421 = vsyncadd [#allocation12], %s420
          %s422 = sshll.u32 [#allocation11], 4
          %s423 = int_to_ptr.vmem [resolvable:$true] %s422
          %428 = dma.hbm_to_vmem [thread:$0]  %s7, 16384, %s423, [#allocation12], 256, 256, 16
        $region32: #{tpu_custom_call.1} parent=11 // pred_fallthru
          _
        // Predicated region
        $region33: #{tpu_custom_call.1} parent=11 // pred_check
          %p429 = pneg %p247
        $region34: #{tpu_custom_call.1} parent=11 // pred_check_branch
          %431 = sbr.rel (%p429) target = $region36
        $region35: #{tpu_custom_call.1} parent=11 // pred_region
          _
        $region36: #{tpu_custom_call.1} parent=11 // pred_fallthru
          _
        // Predicated region
        $region37: #{tpu_custom_call.1} parent=11 // pred_check
          %p432 = pneg %p268
        $region38: #{tpu_custom_call.1} parent=11 // pred_check_branch
          %434 = sbr.rel (%p432) target = $region40
        $region39: #{tpu_custom_call.1} parent=11 // pred_region
          %s436 = ssub.s32 8192, 8192
          %437 = vsyncadd [#allocation12], %s436
          %s438 = sshll.u32 [#allocation13], 4
          %s439 = int_to_ptr.vmem [resolvable:$true] %s438
          %444 = dma.hbm_to_vmem [thread:$0]  %s9, 8192, %s439, [#allocation12], 128, 128, 8
        $region40: #{tpu_custom_call.1} parent=11 // pred_fallthru
          _
        // Predicated region
        $region41: #{tpu_custom_call.1} parent=11 // pred_check
          %p445 = pneg %p289
        $region42: #{tpu_custom_call.1} parent=11 // pred_check_branch
          %447 = sbr.rel (%p445) target = $region44
        $region43: #{tpu_custom_call.1} parent=11 // pred_region
          _
        $region44: #{tpu_custom_call.1} parent=11 // pred_fallthru
          _
        // Predicated region
        $region45: #{tpu_custom_call.1} parent=11 // pred_check
          %p448 = pneg %p310
        $region46: #{tpu_custom_call.1} parent=11 // pred_check_branch
          %450 = sbr.rel (%p448) target = $region48
        $region47: #{tpu_custom_call.1} parent=11 // pred_region
          _
        $region48: #{tpu_custom_call.1} parent=11 // pred_fallthru
          _
        // Predicated region
        $region49: #{tpu_custom_call.1} parent=11 // pred_check
          %p451 = pneg %p331
        $region50: #{tpu_custom_call.1} parent=11 // pred_check_branch
          %453 = sbr.rel (%p451) target = $region52
        $region51: #{tpu_custom_call.1} parent=11 // pred_region
          _
        $region52: #{tpu_custom_call.1} parent=11 // pred_fallthru
          _
      $region12: #{tpu_custom_call.1} parent=5 // pred_fallthru
        _
      %p454 = scmp.lt.s32.totalorder %s29, 6
      // Predicated region
      $region53: #{tpu_custom_call.1} parent=5 // pred_check
        %p455 = pneg %p454
      $region54: #{tpu_custom_call.1} parent=5 // pred_check_branch
        %457 = sbr.rel (%p455) target = $region56
      $region55: #{tpu_custom_call.1} parent=5 // pred_region
        // Predicated region
        $region57: #{tpu_custom_call.1} parent=55 // pred_check
          %p458 = pneg %p63
        $region58: #{tpu_custom_call.1} parent=55 // pred_check_branch
          %460 = sbr.rel (%p458) target = $region60
        $region59: #{tpu_custom_call.1} parent=55 // pred_region
          %s461 = sand.u32 %s53, 1
          %s462 = scalar_lea.sflag [#allocation4], %s461
          %s463 = sand.u32 %s53, 1
          %s464 = smul.addr %s463, 32
          %s465 = scalar_lea.vmem [#allocation3], %s464
          %s467 = ssub.s32 512, 512
          %468 = vsyncadd %s462, %s467
          %s469 = smul.addr %s37, 4
          %s470 = smul.addr %s36, 12
          %s471 = sadd.s32 %s469, %s470
          %s472 = smul.addr %s471, 128
          %s473 = scalar_lea.hbm %s0, %s472
          %s475 = sshll.u32 %s465, 4
          %s476 = int_to_ptr.vmem [resolvable:$true] %s475
          %478 = dma.hbm_to_vmem [thread:$0]  %s473, 512, %s476, %s462
        $region60: #{tpu_custom_call.1} parent=55 // pred_fallthru
          _
        // Predicated region
        $region61: #{tpu_custom_call.1} parent=55 // pred_check
          %p479 = pneg %p89
        $region62: #{tpu_custom_call.1} parent=55 // pred_check_branch
          %481 = sbr.rel (%p479) target = $region64
        $region63: #{tpu_custom_call.1} parent=55 // pred_region
          %s482 = sand.u32 %s29, 1
          %s483 = scalar_lea.sflag [#allocation6], %s482
          %s484 = sand.u32 %s79, 1
          %s485 = smul.addr %s484, 16
          %s486 = scalar_lea.vmem [#allocation5], %s485
          %s488 = ssub.s32 256, 256
          %489 = vsyncadd %s483, %s488
          %s490 = smul.addr %s36, 4
          %s491 = smul.addr %s490, 64
          %s492 = scalar_lea.hbm %s1, %s491
          %s494 = sshll.u32 %s486, 4
          %s495 = int_to_ptr.vmem [resolvable:$true] %s494
          %497 = dma.hbm_to_vmem [thread:$0]  %s492, 256, %s495, %s483
        $region64: #{tpu_custom_call.1} parent=55 // pred_fallthru
          _
        // Predicated region
        $region65: #{tpu_custom_call.1} parent=55 // pred_check
          %p498 = pneg %p115
        $region66: #{tpu_custom_call.1} parent=55 // pred_check_branch
          %500 = sbr.rel (%p498) target = $region68
        $region67: #{tpu_custom_call.1} parent=55 // pred_region
          %p501 = scmp.lt.s32.totalorder %s36, 1
          %s502 = scalar_select %p501, %s36, 1
          %s503 = scalar_lea.vmem %s2, %s502
        $region68: #{tpu_custom_call.1} parent=55 // pred_fallthru
          _
      $region56: #{tpu_custom_call.1} parent=5 // pred_fallthru
        _
      %p504 = scmp.le.s32.totalorder 1, %s29
      %p505 = scmp.lt.s32.totalorder %s29, 7
      %p506 = pnand %p504, %p505
      %p507 = pneg %p506
      // Predicated region
      $region69: #{tpu_custom_call.1} parent=5 // pred_check
        _
      $region70: #{tpu_custom_call.1} parent=5 // pred_check_branch
        %509 = sbr.rel (%p506) target = $region72
      $region71: #{tpu_custom_call.1} parent=5 // pred_region
        %s510 = ssub.s32 %s29, 1
        %s511 = sand.u32 %s56, 1
        %s512 = scalar_lea.sflag [#allocation4], %s511
        %s513 = sand.u32 %s56, 1
        %s514 = smul.addr %s513, 32
        %s515 = scalar_lea.vmem [#allocation3], %s514
        // Predicated region
        $region73: #{tpu_custom_call.1} parent=71 // pred_check
          %p516 = pneg %p69
        $region74: #{tpu_custom_call.1} parent=71 // pred_check_branch
          %518 = sbr.rel (%p516) target = $region76
        $region75: #{tpu_custom_call.1} parent=71 // pred_region
          %519 = dma.done %s512, 512
        $region76: #{tpu_custom_call.1} parent=71 // pred_fallthru
          _
        %s520 = sand.u32 %s34, 1
        %s521 = scalar_lea.sflag [#allocation6], %s520
        %s522 = sand.u32 %s82, 1
        %s523 = smul.addr %s522, 16
        %s524 = scalar_lea.vmem [#allocation5], %s523
        // Predicated region
        $region77: #{tpu_custom_call.1} parent=71 // pred_check
          %p525 = pneg %p95
        $region78: #{tpu_custom_call.1} parent=71 // pred_check_branch
          %527 = sbr.rel (%p525) target = $region80
        $region79: #{tpu_custom_call.1} parent=71 // pred_region
          %528 = dma.done %s521, 256
        $region80: #{tpu_custom_call.1} parent=71 // pred_fallthru
          _
        // Predicated region
        $region81: #{tpu_custom_call.1} parent=71 // pred_check
          %p529 = pneg %p142
        $region82: #{tpu_custom_call.1} parent=71 // pred_check_branch
          %531 = sbr.rel (%p529) target = $region84
        $region83: #{tpu_custom_call.1} parent=71 // pred_region
          %532 = dma.done [#allocation6], 16384
        $region84: #{tpu_custom_call.1} parent=71 // pred_fallthru
          _
        // Predicated region
        $region85: #{tpu_custom_call.1} parent=71 // pred_check
          %p533 = pneg %p163
        $region86: #{tpu_custom_call.1} parent=71 // pred_check_branch
          %535 = sbr.rel (%p533) target = $region88
        $region87: #{tpu_custom_call.1} parent=71 // pred_region
          %536 = dma.done [#allocation9], 16384
        $region88: #{tpu_custom_call.1} parent=71 // pred_fallthru
          _
        // Predicated region
        $region89: #{tpu_custom_call.1} parent=71 // pred_check
          %p537 = pneg %p184
        $region90: #{tpu_custom_call.1} parent=71 // pred_check_branch
          %539 = sbr.rel (%p537) target = $region92
        $region91: #{tpu_custom_call.1} parent=71 // pred_region
          %540 = dma.done [#allocation9], 4096
        $region92: #{tpu_custom_call.1} parent=71 // pred_fallthru
          _
        // Predicated region
        $region93: #{tpu_custom_call.1} parent=71 // pred_check
          %p541 = pneg %p226
        $region94: #{tpu_custom_call.1} parent=71 // pred_check_branch
          %543 = sbr.rel (%p541) target = $region96
        $region95: #{tpu_custom_call.1} parent=71 // pred_region
          %544 = dma.done [#allocation12], 16384
        $region96: #{tpu_custom_call.1} parent=71 // pred_fallthru
          _
        // Predicated region
        $region97: #{tpu_custom_call.1} parent=71 // pred_check
          %p545 = pneg %p268
        $region98: #{tpu_custom_call.1} parent=71 // pred_check_branch
          %547 = sbr.rel (%p545) target = $region100
        $region99: #{tpu_custom_call.1} parent=71 // pred_region
          %548 = dma.done [#allocation12], 8192
        $region100: #{tpu_custom_call.1} parent=71 // pred_fallthru
          _
        %s549 = sand.u32 %s56, 1
        %s550 = scalar_lea.sflag [#allocation4], %s549
        %s551 = sand.u32 %s56, 1
        %s552 = smul.addr %s551, 32
        %s553 = scalar_lea.vmem [#allocation3], %s552
        %p554 = pneg %p69
        %p555 = pneg %p66
        %s556 = sand.u32 %s34, 1
        %s557 = scalar_lea.sflag [#allocation6], %s556
        %s558 = sand.u32 %s82, 1
        %s559 = smul.addr %s558, 16
        %s560 = scalar_lea.vmem [#allocation5], %s559
        %p561 = pneg %p95
        %p562 = pneg %p92
        %p563 = scmp.lt.s32.totalorder %s38, 1
        %s564 = scalar_select %p563, %s38, 1
        %s565 = scalar_lea.vmem %s2, %s564
        %p566 = pneg %p121
        %p567 = pneg %p118
        %p568 = pneg %p142
        %p569 = pneg %p139
        %p570 = pneg %p163
        %p571 = pneg %p160
        %p572 = pneg %p184
        %p573 = pneg %p181
        %p574 = pneg %p205
        %p575 = pneg %p202
        %p576 = pneg %p226
        %p577 = pneg %p223
        %p578 = pneg %p247
        %p579 = pneg %p244
        %p580 = pneg %p268
        %p581 = pneg %p265
        %p582 = pneg %p289
        %p583 = pneg %p286
        %p584 = pneg %p310
        %p585 = pneg %p307
        %p586 = pneg %p331
        %p587 = pneg %p328
        %p588 = pneg %p359
        %p589 = pneg %p356
        %p590 = scmp.lt.s32.totalorder %s38, 1
        %s591 = scalar_select %p590, %s38, 1
        %p592 = scmp.lt.s32.totalorder %s39, 2
        %s593 = scalar_select %p592, %s39, 2
        %s594 = smul.addr %s591, 3
        %s595 = sadd.s32 %s593, %s594
        %s596 = smul.addr %s595, 8
        %s597 = scalar_lea.vmem %s13, %s596
        %p598 = scmp.lt.s32.totalorder %s38, 1
        %s599 = scalar_select %p598, %s38, 1
        %s600 = scalar_lea.vmem %s2, %s599
        %p601 = scmp.lt.s32.totalorder %s38, 1
        %s602 = scalar_select %p601, %s38, 1
        %p603 = scmp.lt.s32.totalorder %s39, 2
        %s604 = scalar_select %p603, %s39, 2
        %s605 = smul.addr %s602, 3
        %s606 = sadd.s32 %s604, %s605
        %s607 = smul.addr %s606, 8
        %s608 = scalar_lea.vmem %s13, %s607
        %v610 = vld [vmem:[%s515] sm:$0xff]
        %v611 = vld [vmem:[%s515 + $0x8] sm:$0xff]
        %v612 = vld [vmem:[%s515 + $0x10] sm:$0xff]
        %v613 = vld [vmem:[%s515 + $0x18] sm:$0xff]
        %v614 = vld [vmem:[%s524] sm:$0xff]
        %v615 = vld [vmem:[%s524 + $0x8] sm:$0xff]
        %v616 = vld [vmem:[%s600] sm:$0x1]
        %v617 = vpack.c.bf16 %v610, %v610
        %v618 = vpack.c.bf16 %v611, %v611
        %v619 = vpack.c.bf16 %v612, %v612
        %v620 = vpack.c.bf16 %v613, %v613
        %v621 = vld [vmem:[#allocation7] sm:$0xff]
        %v622 = vld [vmem:[#allocation7 + $0x8] sm:$0xff]
        %v623 = vld [vmem:[#allocation7 + $0x10] sm:$0xff]
        %v624 = vld [vmem:[#allocation7 + $0x18] sm:$0xff]
        %v625 = vld [vmem:[#allocation7 + $0x20] sm:$0xff]
        %v626 = vld [vmem:[#allocation7 + $0x28] sm:$0xff]
        %v627 = vld [vmem:[#allocation7 + $0x30] sm:$0xff]
        %v628 = vld [vmem:[#allocation7 + $0x38] sm:$0xff]
        %v629 = vld [vmem:[#allocation7 + $0x40] sm:$0xff]
        %v630 = vld [vmem:[#allocation7 + $0x48] sm:$0xff]
        %v631 = vld [vmem:[#allocation7 + $0x50] sm:$0xff]
        %v632 = vld [vmem:[#allocation7 + $0x58] sm:$0xff]
        %v633 = vld [vmem:[#allocation7 + $0x60] sm:$0xff]
        %v634 = vld [vmem:[#allocation7 + $0x68] sm:$0xff]
        %v635 = vld [vmem:[#allocation7 + $0x70] sm:$0xff]
        %v636 = vld [vmem:[#allocation7 + $0x78] sm:$0xff]
        %v637 = vld [vmem:[#allocation7 + $0x80] sm:$0xff]
        %v638 = vld [vmem:[#allocation7 + $0x88] sm:$0xff]
        %v639 = vld [vmem:[#allocation7 + $0x90] sm:$0xff]
        %v640 = vld [vmem:[#allocation7 + $0x98] sm:$0xff]
        %v641 = vld [vmem:[#allocation7 + $0xa0] sm:$0xff]
        %v642 = vld [vmem:[#allocation7 + $0xa8] sm:$0xff]
        %v643 = vld [vmem:[#allocation7 + $0xb0] sm:$0xff]
        %v644 = vld [vmem:[#allocation7 + $0xb8] sm:$0xff]
        %v645 = vld [vmem:[#allocation7 + $0xc0] sm:$0xff]
        %v646 = vld [vmem:[#allocation7 + $0xc8] sm:$0xff]
        %v647 = vld [vmem:[#allocation7 + $0xd0] sm:$0xff]
        %v648 = vld [vmem:[#allocation7 + $0xd8] sm:$0xff]
        %v649 = vld [vmem:[#allocation7 + $0xe0] sm:$0xff]
        %v650 = vld [vmem:[#allocation7 + $0xe8] sm:$0xff]
        %v651 = vld [vmem:[#allocation7 + $0xf0] sm:$0xff]
        %v652 = vld [vmem:[#allocation7 + $0xf8] sm:$0xff]
        %v653 = vld [vmem:[#allocation7 + $0x100] sm:$0xff]
        %v654 = vld [vmem:[#allocation7 + $0x108] sm:$0xff]
        %v655 = vld [vmem:[#allocation7 + $0x110] sm:$0xff]
        %v656 = vld [vmem:[#allocation7 + $0x118] sm:$0xff]
        %v657 = vld [vmem:[#allocation7 + $0x120] sm:$0xff]
        %v658 = vld [vmem:[#allocation7 + $0x128] sm:$0xff]
        %v659 = vld [vmem:[#allocation7 + $0x130] sm:$0xff]
        %v660 = vld [vmem:[#allocation7 + $0x138] sm:$0xff]
        %v661 = vld [vmem:[#allocation7 + $0x140] sm:$0xff]
        %v662 = vld [vmem:[#allocation7 + $0x148] sm:$0xff]
        %v663 = vld [vmem:[#allocation7 + $0x150] sm:$0xff]
        %v664 = vld [vmem:[#allocation7 + $0x158] sm:$0xff]
        %v665 = vld [vmem:[#allocation7 + $0x160] sm:$0xff]
        %v666 = vld [vmem:[#allocation7 + $0x168] sm:$0xff]
        %v667 = vld [vmem:[#allocation7 + $0x170] sm:$0xff]
        %v668 = vld [vmem:[#allocation7 + $0x178] sm:$0xff]
        %v669 = vld [vmem:[#allocation7 + $0x180] sm:$0xff]
        %v670 = vld [vmem:[#allocation7 + $0x188] sm:$0xff]
        %v671 = vld [vmem:[#allocation7 + $0x190] sm:$0xff]
        %v672 = vld [vmem:[#allocation7 + $0x198] sm:$0xff]
        %v673 = vld [vmem:[#allocation7 + $0x1a0] sm:$0xff]
        %v674 = vld [vmem:[#allocation7 + $0x1a8] sm:$0xff]
        %v675 = vld [vmem:[#allocation7 + $0x1b0] sm:$0xff]
        %v676 = vld [vmem:[#allocation7 + $0x1b8] sm:$0xff]
        %v677 = vld [vmem:[#allocation7 + $0x1c0] sm:$0xff]
        %v678 = vld [vmem:[#allocation7 + $0x1c8] sm:$0xff]
        %v679 = vld [vmem:[#allocation7 + $0x1d0] sm:$0xff]
        %v680 = vld [vmem:[#allocation7 + $0x1d8] sm:$0xff]
        %v681 = vld [vmem:[#allocation7 + $0x1e0] sm:$0xff]
        %v682 = vld [vmem:[#allocation7 + $0x1e8] sm:$0xff]
        %v683 = vld [vmem:[#allocation7 + $0x1f0] sm:$0xff]
        %v684 = vld [vmem:[#allocation7 + $0x1f8] sm:$0xff]
        %v685 = vld [vmem:[#allocation7 + $0x200] sm:$0xff]
        %v686 = vld [vmem:[#allocation7 + $0x208] sm:$0xff]
        %v687 = vld [vmem:[#allocation7 + $0x210] sm:$0xff]
        %v688 = vld [vmem:[#allocation7 + $0x218] sm:$0xff]
        %v689 = vld [vmem:[#allocation7 + $0x220] sm:$0xff]
        %v690 = vld [vmem:[#allocation7 + $0x228] sm:$0xff]
        %v691 = vld [vmem:[#allocation7 + $0x230] sm:$0xff]
        %v692 = vld [vmem:[#allocation7 + $0x238] sm:$0xff]
        %v693 = vld [vmem:[#allocation7 + $0x240] sm:$0xff]
        %v694 = vld [vmem:[#allocation7 + $0x248] sm:$0xff]
        %v695 = vld [vmem:[#allocation7 + $0x250] sm:$0xff]
        %v696 = vld [vmem:[#allocation7 + $0x258] sm:$0xff]
        %v697 = vld [vmem:[#allocation7 + $0x260] sm:$0xff]
        %v698 = vld [vmem:[#allocation7 + $0x268] sm:$0xff]
        %v699 = vld [vmem:[#allocation7 + $0x270] sm:$0xff]
        %v700 = vld [vmem:[#allocation7 + $0x278] sm:$0xff]
        %v701 = vld [vmem:[#allocation7 + $0x280] sm:$0xff]
        %v702 = vld [vmem:[#allocation7 + $0x288] sm:$0xff]
        %v703 = vld [vmem:[#allocation7 + $0x290] sm:$0xff]
        %v704 = vld [vmem:[#allocation7 + $0x298] sm:$0xff]
        %v705 = vld [vmem:[#allocation7 + $0x2a0] sm:$0xff]
        %v706 = vld [vmem:[#allocation7 + $0x2a8] sm:$0xff]
        %v707 = vld [vmem:[#allocation7 + $0x2b0] sm:$0xff]
        %v708 = vld [vmem:[#allocation7 + $0x2b8] sm:$0xff]
        %v709 = vld [vmem:[#allocation7 + $0x2c0] sm:$0xff]
        %v710 = vld [vmem:[#allocation7 + $0x2c8] sm:$0xff]
        %v711 = vld [vmem:[#allocation7 + $0x2d0] sm:$0xff]
        %v712 = vld [vmem:[#allocation7 + $0x2d8] sm:$0xff]
        %v713 = vld [vmem:[#allocation7 + $0x2e0] sm:$0xff]
        %v714 = vld [vmem:[#allocation7 + $0x2e8] sm:$0xff]
        %v715 = vld [vmem:[#allocation7 + $0x2f0] sm:$0xff]
        %v716 = vld [vmem:[#allocation7 + $0x2f8] sm:$0xff]
        %v717 = vld [vmem:[#allocation7 + $0x300] sm:$0xff]
        %v718 = vld [vmem:[#allocation7 + $0x308] sm:$0xff]
        %v719 = vld [vmem:[#allocation7 + $0x310] sm:$0xff]
        %v720 = vld [vmem:[#allocation7 + $0x318] sm:$0xff]
        %v721 = vld [vmem:[#allocation7 + $0x320] sm:$0xff]
        %v722 = vld [vmem:[#allocation7 + $0x328] sm:$0xff]
        %v723 = vld [vmem:[#allocation7 + $0x330] sm:$0xff]
        %v724 = vld [vmem:[#allocation7 + $0x338] sm:$0xff]
        %v725 = vld [vmem:[#allocation7 + $0x340] sm:$0xff]
        %v726 = vld [vmem:[#allocation7 + $0x348] sm:$0xff]
        %v727 = vld [vmem:[#allocation7 + $0x350] sm:$0xff]
        %v728 = vld [vmem:[#allocation7 + $0x358] sm:$0xff]
        %v729 = vld [vmem:[#allocation7 + $0x360] sm:$0xff]
        %v730 = vld [vmem:[#allocation7 + $0x368] sm:$0xff]
        %v731 = vld [vmem:[#allocation7 + $0x370] sm:$0xff]
        %v732 = vld [vmem:[#allocation7 + $0x378] sm:$0xff]
        %v733 = vld [vmem:[#allocation7 + $0x380] sm:$0xff]
        %v734 = vld [vmem:[#allocation7 + $0x388] sm:$0xff]
        %v735 = vld [vmem:[#allocation7 + $0x390] sm:$0xff]
        %v736 = vld [vmem:[#allocation7 + $0x398] sm:$0xff]
        %v737 = vld [vmem:[#allocation7 + $0x3a0] sm:$0xff]
        %v738 = vld [vmem:[#allocation7 + $0x3a8] sm:$0xff]
        %v739 = vld [vmem:[#allocation7 + $0x3b0] sm:$0xff]
        %v740 = vld [vmem:[#allocation7 + $0x3b8] sm:$0xff]
        %v741 = vld [vmem:[#allocation7 + $0x3c0] sm:$0xff]
        %v742 = vld [vmem:[#allocation7 + $0x3c8] sm:$0xff]
        %v743 = vld [vmem:[#allocation7 + $0x3d0] sm:$0xff]
        %v744 = vld [vmem:[#allocation7 + $0x3d8] sm:$0xff]
        %v745 = vld [vmem:[#allocation7 + $0x3e0] sm:$0xff]
        %v746 = vld [vmem:[#allocation7 + $0x3e8] sm:$0xff]
        %v747 = vld [vmem:[#allocation7 + $0x3f0] sm:$0xff]
        %v748 = vld [vmem:[#allocation7 + $0x3f8] sm:$0xff]
        %v877 = vunpack.c.l.b16 %v621
        %v878 = vunpack.c.h.b16 %v621
        %v879 = vunpack.c.l.b16 %v622
        %v880 = vunpack.c.h.b16 %v622
        %v881 = vunpack.c.l.b16 %v623
        %v882 = vunpack.c.h.b16 %v623
        %v883 = vunpack.c.l.b16 %v624
        %v884 = vunpack.c.h.b16 %v624
        %v885 = vunpack.c.l.b16 %v625
        %v886 = vunpack.c.h.b16 %v625
        %v887 = vunpack.c.l.b16 %v626
        %v888 = vunpack.c.h.b16 %v626
        %v889 = vunpack.c.l.b16 %v627
        %v890 = vunpack.c.h.b16 %v627
        %v891 = vunpack.c.l.b16 %v628
        %v892 = vunpack.c.h.b16 %v628
        %v893 = vunpack.c.l.b16 %v629
        %v894 = vunpack.c.h.b16 %v629
        %v895 = vunpack.c.l.b16 %v630
        %v896 = vunpack.c.h.b16 %v630
        %v897 = vunpack.c.l.b16 %v631
        %v898 = vunpack.c.h.b16 %v631
        %v899 = vunpack.c.l.b16 %v632
        %v900 = vunpack.c.h.b16 %v632
        %v901 = vunpack.c.l.b16 %v633
        %v902 = vunpack.c.h.b16 %v633
        %v903 = vunpack.c.l.b16 %v634
        %v904 = vunpack.c.h.b16 %v634
        %v905 = vunpack.c.l.b16 %v635
        %v906 = vunpack.c.h.b16 %v635
        %v907 = vunpack.c.l.b16 %v636
        %v908 = vunpack.c.h.b16 %v636
        %v909 = vunpack.c.l.b16 %v637
        %v910 = vunpack.c.h.b16 %v637
        %v911 = vunpack.c.l.b16 %v638
        %v912 = vunpack.c.h.b16 %v638
        %v913 = vunpack.c.l.b16 %v639
        %v914 = vunpack.c.h.b16 %v639
        %v915 = vunpack.c.l.b16 %v640
        %v916 = vunpack.c.h.b16 %v640
        %v917 = vunpack.c.l.b16 %v641
        %v918 = vunpack.c.h.b16 %v641
        %v919 = vunpack.c.l.b16 %v642
        %v920 = vunpack.c.h.b16 %v642
        %v921 = vunpack.c.l.b16 %v643
        %v922 = vunpack.c.h.b16 %v643
        %v923 = vunpack.c.l.b16 %v644
        %v924 = vunpack.c.h.b16 %v644
        %v925 = vunpack.c.l.b16 %v645
        %v926 = vunpack.c.h.b16 %v645
        %v927 = vunpack.c.l.b16 %v646
        %v928 = vunpack.c.h.b16 %v646
        %v929 = vunpack.c.l.b16 %v647
        %v930 = vunpack.c.h.b16 %v647
        %v931 = vunpack.c.l.b16 %v648
        %v932 = vunpack.c.h.b16 %v648
        %v933 = vunpack.c.l.b16 %v649
        %v934 = vunpack.c.h.b16 %v649
        %v935 = vunpack.c.l.b16 %v650
        %v936 = vunpack.c.h.b16 %v650
        %v937 = vunpack.c.l.b16 %v651
        %v938 = vunpack.c.h.b16 %v651
        %v939 = vunpack.c.l.b16 %v652
        %v940 = vunpack.c.h.b16 %v652
        %v941 = vunpack.c.l.b16 %v653
        %v942 = vunpack.c.h.b16 %v653
        %v943 = vunpack.c.l.b16 %v654
        %v944 = vunpack.c.h.b16 %v654
        %v945 = vunpack.c.l.b16 %v655
        %v946 = vunpack.c.h.b16 %v655
        %v947 = vunpack.c.l.b16 %v656
        %v948 = vunpack.c.h.b16 %v656
        %v949 = vunpack.c.l.b16 %v657
        %v950 = vunpack.c.h.b16 %v657
        %v951 = vunpack.c.l.b16 %v658
        %v952 = vunpack.c.h.b16 %v658
        %v953 = vunpack.c.l.b16 %v659
        %v954 = vunpack.c.h.b16 %v659
        %v955 = vunpack.c.l.b16 %v660
        %v956 = vunpack.c.h.b16 %v660
        %v957 = vunpack.c.l.b16 %v661
        %v958 = vunpack.c.h.b16 %v661
        %v959 = vunpack.c.l.b16 %v662
        %v960 = vunpack.c.h.b16 %v662
        %v961 = vunpack.c.l.b16 %v663
        %v962 = vunpack.c.h.b16 %v663
        %v963 = vunpack.c.l.b16 %v664
        %v964 = vunpack.c.h.b16 %v664
        %v965 = vunpack.c.l.b16 %v665
        %v966 = vunpack.c.h.b16 %v665
        %v967 = vunpack.c.l.b16 %v666
        %v968 = vunpack.c.h.b16 %v666
        %v969 = vunpack.c.l.b16 %v667
        %v970 = vunpack.c.h.b16 %v667
        %v971 = vunpack.c.l.b16 %v668
        %v972 = vunpack.c.h.b16 %v668
        %v973 = vunpack.c.l.b16 %v669
        %v974 = vunpack.c.h.b16 %v669
        %v975 = vunpack.c.l.b16 %v670
        %v976 = vunpack.c.h.b16 %v670
        %v977 = vunpack.c.l.b16 %v671
        %v978 = vunpack.c.h.b16 %v671
        %v979 = vunpack.c.l.b16 %v672
        %v980 = vunpack.c.h.b16 %v672
        %v981 = vunpack.c.l.b16 %v673
        %v982 = vunpack.c.h.b16 %v673
        %v983 = vunpack.c.l.b16 %v674
        %v984 = vunpack.c.h.b16 %v674
        %v985 = vunpack.c.l.b16 %v675
        %v986 = vunpack.c.h.b16 %v675
        %v987 = vunpack.c.l.b16 %v676
        %v988 = vunpack.c.h.b16 %v676
        %v989 = vunpack.c.l.b16 %v677
        %v990 = vunpack.c.h.b16 %v677
        %v991 = vunpack.c.l.b16 %v678
        %v992 = vunpack.c.h.b16 %v678
        %v993 = vunpack.c.l.b16 %v679
        %v994 = vunpack.c.h.b16 %v679
        %v995 = vunpack.c.l.b16 %v680
        %v996 = vunpack.c.h.b16 %v680
        %v997 = vunpack.c.l.b16 %v681
        %v998 = vunpack.c.h.b16 %v681
        %v999 = vunpack.c.l.b16 %v682
        %v1000 = vunpack.c.h.b16 %v682
        %v1001 = vunpack.c.l.b16 %v683
        %v1002 = vunpack.c.h.b16 %v683
        %v1003 = vunpack.c.l.b16 %v684
        %v1004 = vunpack.c.h.b16 %v684
        %v1005 = vunpack.c.l.b16 %v685
        %v1006 = vunpack.c.h.b16 %v685
        %v1007 = vunpack.c.l.b16 %v686
        %v1008 = vunpack.c.h.b16 %v686
        %v1009 = vunpack.c.l.b16 %v687
        %v1010 = vunpack.c.h.b16 %v687
        %v1011 = vunpack.c.l.b16 %v688
        %v1012 = vunpack.c.h.b16 %v688
        %v1013 = vunpack.c.l.b16 %v689
        %v1014 = vunpack.c.h.b16 %v689
        %v1015 = vunpack.c.l.b16 %v690
        %v1016 = vunpack.c.h.b16 %v690
        %v1017 = vunpack.c.l.b16 %v691
        %v1018 = vunpack.c.h.b16 %v691
        %v1019 = vunpack.c.l.b16 %v692
        %v1020 = vunpack.c.h.b16 %v692
        %v1021 = vunpack.c.l.b16 %v693
        %v1022 = vunpack.c.h.b16 %v693
        %v1023 = vunpack.c.l.b16 %v694
        %v1024 = vunpack.c.h.b16 %v694
        %v1025 = vunpack.c.l.b16 %v695
        %v1026 = vunpack.c.h.b16 %v695
        %v1027 = vunpack.c.l.b16 %v696
        %v1028 = vunpack.c.h.b16 %v696
        %v1029 = vunpack.c.l.b16 %v697
        %v1030 = vunpack.c.h.b16 %v697
        %v1031 = vunpack.c.l.b16 %v698
        %v1032 = vunpack.c.h.b16 %v698
        %v1033 = vunpack.c.l.b16 %v699
        %v1034 = vunpack.c.h.b16 %v699
        %v1035 = vunpack.c.l.b16 %v700
        %v1036 = vunpack.c.h.b16 %v700
        %v1037 = vunpack.c.l.b16 %v701
        %v1038 = vunpack.c.h.b16 %v701
        %v1039 = vunpack.c.l.b16 %v702
        %v1040 = vunpack.c.h.b16 %v702
        %v1041 = vunpack.c.l.b16 %v703
        %v1042 = vunpack.c.h.b16 %v703
        %v1043 = vunpack.c.l.b16 %v704
        %v1044 = vunpack.c.h.b16 %v704
        %v1045 = vunpack.c.l.b16 %v705
        %v1046 = vunpack.c.h.b16 %v705
        %v1047 = vunpack.c.l.b16 %v706
        %v1048 = vunpack.c.h.b16 %v706
        %v1049 = vunpack.c.l.b16 %v707
        %v1050 = vunpack.c.h.b16 %v707
        %v1051 = vunpack.c.l.b16 %v708
        %v1052 = vunpack.c.h.b16 %v708
        %v1053 = vunpack.c.l.b16 %v709
        %v1054 = vunpack.c.h.b16 %v709
        %v1055 = vunpack.c.l.b16 %v710
        %v1056 = vunpack.c.h.b16 %v710
        %v1057 = vunpack.c.l.b16 %v711
        %v1058 = vunpack.c.h.b16 %v711
        %v1059 = vunpack.c.l.b16 %v712
        %v1060 = vunpack.c.h.b16 %v712
        %v1061 = vunpack.c.l.b16 %v713
        %v1062 = vunpack.c.h.b16 %v713
        %v1063 = vunpack.c.l.b16 %v714
        %v1064 = vunpack.c.h.b16 %v714
        %v1065 = vunpack.c.l.b16 %v715
        %v1066 = vunpack.c.h.b16 %v715
        %v1067 = vunpack.c.l.b16 %v716
        %v1068 = vunpack.c.h.b16 %v716
        %v1069 = vunpack.c.l.b16 %v717
        %v1070 = vunpack.c.h.b16 %v717
        %v1071 = vunpack.c.l.b16 %v718
        %v1072 = vunpack.c.h.b16 %v718
        %v1073 = vunpack.c.l.b16 %v719
        %v1074 = vunpack.c.h.b16 %v719
        %v1075 = vunpack.c.l.b16 %v720
        %v1076 = vunpack.c.h.b16 %v720
        %v1077 = vunpack.c.l.b16 %v721
        %v1078 = vunpack.c.h.b16 %v721
        %v1079 = vunpack.c.l.b16 %v722
        %v1080 = vunpack.c.h.b16 %v722
        %v1081 = vunpack.c.l.b16 %v723
        %v1082 = vunpack.c.h.b16 %v723
        %v1083 = vunpack.c.l.b16 %v724
        %v1084 = vunpack.c.h.b16 %v724
        %v1085 = vunpack.c.l.b16 %v725
        %v1086 = vunpack.c.h.b16 %v725
        %v1087 = vunpack.c.l.b16 %v726
        %v1088 = vunpack.c.h.b16 %v726
        %v1089 = vunpack.c.l.b16 %v727
        %v1090 = vunpack.c.h.b16 %v727
        %v1091 = vunpack.c.l.b16 %v728
        %v1092 = vunpack.c.h.b16 %v728
        %v1093 = vunpack.c.l.b16 %v729
        %v1094 = vunpack.c.h.b16 %v729
        %v1095 = vunpack.c.l.b16 %v730
        %v1096 = vunpack.c.h.b16 %v730
        %v1097 = vunpack.c.l.b16 %v731
        %v1098 = vunpack.c.h.b16 %v731
        %v1099 = vunpack.c.l.b16 %v732
        %v1100 = vunpack.c.h.b16 %v732
        %v1101 = vunpack.c.l.b16 %v733
        %v1102 = vunpack.c.h.b16 %v733
        %v1103 = vunpack.c.l.b16 %v734
        %v1104 = vunpack.c.h.b16 %v734
        %v1105 = vunpack.c.l.b16 %v735
        %v1106 = vunpack.c.h.b16 %v735
        %v1107 = vunpack.c.l.b16 %v736
        %v1108 = vunpack.c.h.b16 %v736
        %v1109 = vunpack.c.l.b16 %v737
        %v1110 = vunpack.c.h.b16 %v737
        %v1111 = vunpack.c.l.b16 %v738
        %v1112 = vunpack.c.h.b16 %v738
        %v1113 = vunpack.c.l.b16 %v739
        %v1114 = vunpack.c.h.b16 %v739
        %v1115 = vunpack.c.l.b16 %v740
        %v1116 = vunpack.c.h.b16 %v740
        %v1117 = vunpack.c.l.b16 %v741
        %v1118 = vunpack.c.h.b16 %v741
        %v1119 = vunpack.c.l.b16 %v742
        %v1120 = vunpack.c.h.b16 %v742
        %v1121 = vunpack.c.l.b16 %v743
        %v1122 = vunpack.c.h.b16 %v743
        %v1123 = vunpack.c.l.b16 %v744
        %v1124 = vunpack.c.h.b16 %v744
        %v1125 = vunpack.c.l.b16 %v745
        %v1126 = vunpack.c.h.b16 %v745
        %v1127 = vunpack.c.l.b16 %v746
        %v1128 = vunpack.c.h.b16 %v746
        %v1129 = vunpack.c.l.b16 %v747
        %v1130 = vunpack.c.h.b16 %v747
        %v1131 = vunpack.c.l.b16 %v748
        %v1132 = vunpack.c.h.b16 %v748
        %v1133 = vpack.c.b16 %v881, %v877
        %v1134 = vpack.c.b16 %v882, %v878
        %v1135 = vpack.c.b16 %v883, %v879
        %v1136 = vpack.c.b16 %v884, %v880
        %v1137 = vpack.c.b16 %v889, %v885
        %v1138 = vpack.c.b16 %v890, %v886
        %v1139 = vpack.c.b16 %v891, %v887
        %v1140 = vpack.c.b16 %v892, %v888
        %v1141 = vpack.c.b16 %v897, %v893
        %v1142 = vpack.c.b16 %v898, %v894
        %v1143 = vpack.c.b16 %v899, %v895
        %v1144 = vpack.c.b16 %v900, %v896
        %v1145 = vpack.c.b16 %v905, %v901
        %v1146 = vpack.c.b16 %v906, %v902
        %v1147 = vpack.c.b16 %v907, %v903
        %v1148 = vpack.c.b16 %v908, %v904
        %v1149 = vpack.c.b16 %v913, %v909
        %v1150 = vpack.c.b16 %v914, %v910
        %v1151 = vpack.c.b16 %v915, %v911
        %v1152 = vpack.c.b16 %v916, %v912
        %v1153 = vpack.c.b16 %v921, %v917
        %v1154 = vpack.c.b16 %v922, %v918
        %v1155 = vpack.c.b16 %v923, %v919
        %v1156 = vpack.c.b16 %v924, %v920
        %v1157 = vpack.c.b16 %v929, %v925
        %v1158 = vpack.c.b16 %v930, %v926
        %v1159 = vpack.c.b16 %v931, %v927
        %v1160 = vpack.c.b16 %v932, %v928
        %v1161 = vpack.c.b16 %v937, %v933
        %v1162 = vpack.c.b16 %v938, %v934
        %v1163 = vpack.c.b16 %v939, %v935
        %v1164 = vpack.c.b16 %v940, %v936
        %v1165 = vpack.c.b16 %v945, %v941
        %v1166 = vpack.c.b16 %v946, %v942
        %v1167 = vpack.c.b16 %v947, %v943
        %v1168 = vpack.c.b16 %v948, %v944
        %v1169 = vpack.c.b16 %v953, %v949
        %v1170 = vpack.c.b16 %v954, %v950
        %v1171 = vpack.c.b16 %v955, %v951
        %v1172 = vpack.c.b16 %v956, %v952
        %v1173 = vpack.c.b16 %v961, %v957
        %v1174 = vpack.c.b16 %v962, %v958
        %v1175 = vpack.c.b16 %v963, %v959
        %v1176 = vpack.c.b16 %v964, %v960
        %v1177 = vpack.c.b16 %v969, %v965
        %v1178 = vpack.c.b16 %v970, %v966
        %v1179 = vpack.c.b16 %v971, %v967
        %v1180 = vpack.c.b16 %v972, %v968
        %v1181 = vpack.c.b16 %v977, %v973
        %v1182 = vpack.c.b16 %v978, %v974
        %v1183 = vpack.c.b16 %v979, %v975
        %v1184 = vpack.c.b16 %v980, %v976
        %v1185 = vpack.c.b16 %v985, %v981
        %v1186 = vpack.c.b16 %v986, %v982
        %v1187 = vpack.c.b16 %v987, %v983
        %v1188 = vpack.c.b16 %v988, %v984
        %v1189 = vpack.c.b16 %v993, %v989
        %v1190 = vpack.c.b16 %v994, %v990
        %v1191 = vpack.c.b16 %v995, %v991
        %v1192 = vpack.c.b16 %v996, %v992
        %v1193 = vpack.c.b16 %v1001, %v997
        %v1194 = vpack.c.b16 %v1002, %v998
        %v1195 = vpack.c.b16 %v1003, %v999
        %v1196 = vpack.c.b16 %v1004, %v1000
        %v1197 = vpack.c.b16 %v1009, %v1005
        %v1198 = vpack.c.b16 %v1010, %v1006
        %v1199 = vpack.c.b16 %v1011, %v1007
        %v1200 = vpack.c.b16 %v1012, %v1008
        %v1201 = vpack.c.b16 %v1017, %v1013
        %v1202 = vpack.c.b16 %v1018, %v1014
        %v1203 = vpack.c.b16 %v1019, %v1015
        %v1204 = vpack.c.b16 %v1020, %v1016
        %v1205 = vpack.c.b16 %v1025, %v1021
        %v1206 = vpack.c.b16 %v1026, %v1022
        %v1207 = vpack.c.b16 %v1027, %v1023
        %v1208 = vpack.c.b16 %v1028, %v1024
        %v1209 = vpack.c.b16 %v1033, %v1029
        %v1210 = vpack.c.b16 %v1034, %v1030
        %v1211 = vpack.c.b16 %v1035, %v1031
        %v1212 = vpack.c.b16 %v1036, %v1032
        %v1213 = vpack.c.b16 %v1041, %v1037
        %v1214 = vpack.c.b16 %v1042, %v1038
        %v1215 = vpack.c.b16 %v1043, %v1039
        %v1216 = vpack.c.b16 %v1044, %v1040
        %v1217 = vpack.c.b16 %v1049, %v1045
        %v1218 = vpack.c.b16 %v1050, %v1046
        %v1219 = vpack.c.b16 %v1051, %v1047
        %v1220 = vpack.c.b16 %v1052, %v1048
        %v1221 = vpack.c.b16 %v1057, %v1053
        %v1222 = vpack.c.b16 %v1058, %v1054
        %v1223 = vpack.c.b16 %v1059, %v1055
        %v1224 = vpack.c.b16 %v1060, %v1056
        %v1225 = vpack.c.b16 %v1065, %v1061
        %v1226 = vpack.c.b16 %v1066, %v1062
        %v1227 = vpack.c.b16 %v1067, %v1063
        %v1228 = vpack.c.b16 %v1068, %v1064
        %v1229 = vpack.c.b16 %v1073, %v1069
        %v1230 = vpack.c.b16 %v1074, %v1070
        %v1231 = vpack.c.b16 %v1075, %v1071
        %v1232 = vpack.c.b16 %v1076, %v1072
        %v1233 = vpack.c.b16 %v1081, %v1077
        %v1234 = vpack.c.b16 %v1082, %v1078
        %v1235 = vpack.c.b16 %v1083, %v1079
        %v1236 = vpack.c.b16 %v1084, %v1080
        %v1237 = vpack.c.b16 %v1089, %v1085
        %v1238 = vpack.c.b16 %v1090, %v1086
        %v1239 = vpack.c.b16 %v1091, %v1087
        %v1240 = vpack.c.b16 %v1092, %v1088
        %v1241 = vpack.c.b16 %v1097, %v1093
        %v1242 = vpack.c.b16 %v1098, %v1094
        %v1243 = vpack.c.b16 %v1099, %v1095
        %v1244 = vpack.c.b16 %v1100, %v1096
        %v1245 = vpack.c.b16 %v1105, %v1101
        %v1246 = vpack.c.b16 %v1106, %v1102
        %v1247 = vpack.c.b16 %v1107, %v1103
        %v1248 = vpack.c.b16 %v1108, %v1104
        %v1249 = vpack.c.b16 %v1113, %v1109
        %v1250 = vpack.c.b16 %v1114, %v1110
        %v1251 = vpack.c.b16 %v1115, %v1111
        %v1252 = vpack.c.b16 %v1116, %v1112
        %v1253 = vpack.c.b16 %v1121, %v1117
        %v1254 = vpack.c.b16 %v1122, %v1118
        %v1255 = vpack.c.b16 %v1123, %v1119
        %v1256 = vpack.c.b16 %v1124, %v1120
        %v1257 = vpack.c.b16 %v1129, %v1125
        %v1258 = vpack.c.b16 %v1130, %v1126
        %v1259 = vpack.c.b16 %v1131, %v1127
        %v1260 = vpack.c.b16 %v1132, %v1128
        %1389 = vmatprep.subr.bf16.mxu0 %v1134
        %1390 = vmatpush1.bf16.msra.mxu0 %v1133
        %1391 = vmatprep.subr.bf16.mxu0 %v1138
        %1392 = vmatpush1.bf16.msra.mxu0 %v1137
        %1393 = vmatprep.subr.bf16.mxu0 %v1142
        %1394 = vmatpush1.bf16.msra.mxu0 %v1141
        %1395 = vmatprep.subr.bf16.mxu0 %v1146
        %1396 = vmatpush1.bf16.msra.mxu0 %v1145
        %1397 = vmatprep.subr.bf16.mxu0 %v1150
        %1398 = vmatpush1.bf16.msra.mxu0 %v1149
        %1399 = vmatprep.subr.bf16.mxu0 %v1154
        %1400 = vmatpush1.bf16.msra.mxu0 %v1153
        %1401 = vmatprep.subr.bf16.mxu0 %v1158
        %1402 = vmatpush1.bf16.msra.mxu0 %v1157
        %1403 = vmatprep.subr.bf16.mxu0 %v1162
        %1404 = vmatpush1.bf16.msra.mxu0 %v1161
        %1405 = vmatprep.subr.bf16.mxu0 %v1166
        %1406 = vmatpush1.bf16.msra.mxu0 %v1165
        %1407 = vmatprep.subr.bf16.mxu0 %v1170
        %1408 = vmatpush1.bf16.msra.mxu0 %v1169
        %1409 = vmatprep.subr.bf16.mxu0 %v1174
        %1410 = vmatpush1.bf16.msra.mxu0 %v1173
        %1411 = vmatprep.subr.bf16.mxu0 %v1178
        %1412 = vmatpush1.bf16.msra.mxu0 %v1177
        %1413 = vmatprep.subr.bf16.mxu0 %v1182
        %1414 = vmatpush1.bf16.msra.mxu0 %v1181
        %1415 = vmatprep.subr.bf16.mxu0 %v1186
        %1416 = vmatpush1.bf16.msra.mxu0 %v1185
        %1417 = vmatprep.subr.bf16.mxu0 %v1190
        %1418 = vmatpush1.bf16.msra.mxu0 %v1189
        %1419 = vmatprep.subr.bf16.mxu0 %v1194
        %1420 = vmatpush1.bf16.msra.mxu0 %v1193
        %1421 = vmatprep.mubr.bf16.mxu0 %v618
        %1422 = vmatmul.mubr.bf16.gmra.mrb[0].mxu0 %v617
        %v1423 = vpop.f32.mrb[0].mxu0
        %v1424 = vadd.f32 0.0, %v1423
        %v1425 = vpop.f32.mrb[0].mxu0
        %v1426 = vadd.f32 0.0, %v1425
        %v1427 = vpop.f32.mrb[0].mxu0
        %v1428 = vpop.f32.mrb[0].mxu0
        %1429 = vdwg.mxu0
        %1430 = vmatprep.subr.bf16.mxu0 %v1198
        %1431 = vmatpush1.bf16.msra.mxu0 %v1197
        %1432 = vmatprep.subr.bf16.mxu0 %v1202
        %1433 = vmatpush1.bf16.msra.mxu0 %v1201
        %1434 = vmatprep.subr.bf16.mxu0 %v1206
        %1435 = vmatpush1.bf16.msra.mxu0 %v1205
        %1436 = vmatprep.subr.bf16.mxu0 %v1210
        %1437 = vmatpush1.bf16.msra.mxu0 %v1209
        %1438 = vmatprep.subr.bf16.mxu0 %v1214
        %1439 = vmatpush1.bf16.msra.mxu0 %v1213
        %1440 = vmatprep.subr.bf16.mxu0 %v1218
        %1441 = vmatpush1.bf16.msra.mxu0 %v1217
        %1442 = vmatprep.subr.bf16.mxu0 %v1222
        %1443 = vmatpush1.bf16.msra.mxu0 %v1221
        %1444 = vmatprep.subr.bf16.mxu0 %v1226
        %1445 = vmatpush1.bf16.msra.mxu0 %v1225
        %1446 = vmatprep.subr.bf16.mxu0 %v1230
        %1447 = vmatpush1.bf16.msra.mxu0 %v1229
        %1448 = vmatprep.subr.bf16.mxu0 %v1234
        %1449 = vmatpush1.bf16.msra.mxu0 %v1233
        %1450 = vmatprep.subr.bf16.mxu0 %v1238
        %1451 = vmatpush1.bf16.msra.mxu0 %v1237
        %1452 = vmatprep.subr.bf16.mxu0 %v1242
        %1453 = vmatpush1.bf16.msra.mxu0 %v1241
        %1454 = vmatprep.subr.bf16.mxu0 %v1246
        %1455 = vmatpush1.bf16.msra.mxu0 %v1245
        %1456 = vmatprep.subr.bf16.mxu0 %v1250
        %1457 = vmatpush1.bf16.msra.mxu0 %v1249
        %1458 = vmatprep.subr.bf16.mxu0 %v1254
        %1459 = vmatpush1.bf16.msra.mxu0 %v1253
        %1460 = vmatprep.subr.bf16.mxu0 %v1258
        %1461 = vmatpush1.bf16.msra.mxu0 %v1257
        %1462 = vmatprep.mubr.bf16.mxu0 %v620
        %1463 = vmatmul.mubr.bf16.gmra.mrb[0].mxu0 %v619
        %v1464 = vpop.f32.mrb[0].mxu0
        %v1465 = vadd.f32 %v1424, %v1464
        %v1466 = vpop.f32.mrb[0].mxu0
        %v1467 = vadd.f32 %v1426, %v1466
        %v1468 = vpop.f32.mrb[0].mxu0
        %v1469 = vpop.f32.mrb[0].mxu0
        %1470 = vdwg.mxu0
        %1471 = vmatprep.subr.bf16.mxu0 %v1136
        %1472 = vmatpush1.bf16.msra.mxu0 %v1135
        %1473 = vmatprep.subr.bf16.mxu0 %v1140
        %1474 = vmatpush1.bf16.msra.mxu0 %v1139
        %1475 = vmatprep.subr.bf16.mxu0 %v1144
        %1476 = vmatpush1.bf16.msra.mxu0 %v1143
        %1477 = vmatprep.subr.bf16.mxu0 %v1148
        %1478 = vmatpush1.bf16.msra.mxu0 %v1147
        %1479 = vmatprep.subr.bf16.mxu0 %v1152
        %1480 = vmatpush1.bf16.msra.mxu0 %v1151
        %1481 = vmatprep.subr.bf16.mxu0 %v1156
        %1482 = vmatpush1.bf16.msra.mxu0 %v1155
        %1483 = vmatprep.subr.bf16.mxu0 %v1160
        %1484 = vmatpush1.bf16.msra.mxu0 %v1159
        %1485 = vmatprep.subr.bf16.mxu0 %v1164
        %1486 = vmatpush1.bf16.msra.mxu0 %v1163
        %1487 = vmatprep.subr.bf16.mxu0 %v1168
        %1488 = vmatpush1.bf16.msra.mxu0 %v1167
        %1489 = vmatprep.subr.bf16.mxu0 %v1172
        %1490 = vmatpush1.bf16.msra.mxu0 %v1171
        %1491 = vmatprep.subr.bf16.mxu0 %v1176
        %1492 = vmatpush1.bf16.msra.mxu0 %v1175
        %1493 = vmatprep.subr.bf16.mxu0 %v1180
        %1494 = vmatpush1.bf16.msra.mxu0 %v1179
        %1495 = vmatprep.subr.bf16.mxu0 %v1184
        %1496 = vmatpush1.bf16.msra.mxu0 %v1183
        %1497 = vmatprep.subr.bf16.mxu0 %v1188
        %1498 = vmatpush1.bf16.msra.mxu0 %v1187
        %1499 = vmatprep.subr.bf16.mxu0 %v1192
        %1500 = vmatpush1.bf16.msra.mxu0 %v1191
        %1501 = vmatprep.subr.bf16.mxu0 %v1196
        %1502 = vmatpush1.bf16.msra.mxu0 %v1195
        %1503 = vmatprep.mubr.bf16.mxu0 %v618
        %1504 = vmatmul.mubr.bf16.gmra.mrb[0].mxu0 %v617
        %v1505 = vpop.f32.mrb[0].mxu0
        %v1506 = vadd.f32 0.0, %v1505
        %v1507 = vpop.f32.mrb[0].mxu0
        %v1508 = vadd.f32 0.0, %v1507
        %v1509 = vpop.f32.mrb[0].mxu0
        %v1510 = vpop.f32.mrb[0].mxu0
        %1511 = vdwg.mxu0
        %1512 = vmatprep.subr.bf16.mxu0 %v1200
        %1513 = vmatpush1.bf16.msra.mxu0 %v1199
        %1514 = vmatprep.subr.bf16.mxu0 %v1204
        %1515 = vmatpush1.bf16.msra.mxu0 %v1203
        %1516 = vmatprep.subr.bf16.mxu0 %v1208
        %1517 = vmatpush1.bf16.msra.mxu0 %v1207
        %1518 = vmatprep.subr.bf16.mxu0 %v1212
        %1519 = vmatpush1.bf16.msra.mxu0 %v1211
        %1520 = vmatprep.subr.bf16.mxu0 %v1216
        %1521 = vmatpush1.bf16.msra.mxu0 %v1215
        %1522 = vmatprep.subr.bf16.mxu0 %v1220
        %1523 = vmatpush1.bf16.msra.mxu0 %v1219
        %1524 = vmatprep.subr.bf16.mxu0 %v1224
        %1525 = vmatpush1.bf16.msra.mxu0 %v1223
        %1526 = vmatprep.subr.bf16.mxu0 %v1228
        %1527 = vmatpush1.bf16.msra.mxu0 %v1227
        %1528 = vmatprep.subr.bf16.mxu0 %v1232
        %1529 = vmatpush1.bf16.msra.mxu0 %v1231
        %1530 = vmatprep.subr.bf16.mxu0 %v1236
        %1531 = vmatpush1.bf16.msra.mxu0 %v1235
        %1532 = vmatprep.subr.bf16.mxu0 %v1240
        %1533 = vmatpush1.bf16.msra.mxu0 %v1239
        %1534 = vmatprep.subr.bf16.mxu0 %v1244
        %1535 = vmatpush1.bf16.msra.mxu0 %v1243
        %1536 = vmatprep.subr.bf16.mxu0 %v1248
        %1537 = vmatpush1.bf16.msra.mxu0 %v1247
        %1538 = vmatprep.subr.bf16.mxu0 %v1252
        %1539 = vmatpush1.bf16.msra.mxu0 %v1251
        %1540 = vmatprep.subr.bf16.mxu0 %v1256
        %1541 = vmatpush1.bf16.msra.mxu0 %v1255
        %1542 = vmatprep.subr.bf16.mxu0 %v1260
        %1543 = vmatpush1.bf16.msra.mxu0 %v1259
        %1544 = vmatprep.mubr.bf16.mxu0 %v620
        %1545 = vmatmul.mubr.bf16.gmra.mrb[0].mxu0 %v619
        %v1546 = vpop.f32.mrb[0].mxu0
        %v1547 = vadd.f32 %v1506, %v1546
        %v1548 = vpop.f32.mrb[0].mxu0
        %v1549 = vadd.f32 %v1508, %v1548
        %v1550 = vpop.f32.mrb[0].mxu0
        %v1551 = vpop.f32.mrb[0].mxu0
        %1552 = vdwg.mxu0
        %v1555 = vcombine.high %v614, %v614
        %v1556 = vcombine.high %v615, %v615
        %v1559 = vpack.c.bf16 %v614, %v614
        %v1560 = vpack.c.bf16 %v1555, %v1555
        %v1561 = vpack.c.bf16 %v615, %v615
        %v1562 = vpack.c.bf16 %v1556, %v1556
        %v1563 = vld [vmem:[#allocation8] sm:$0xff]
        %v1564 = vld [vmem:[#allocation8 + $0x8] sm:$0xff]
        %v1565 = vld [vmem:[#allocation8 + $0x10] sm:$0xff]
        %v1566 = vld [vmem:[#allocation8 + $0x18] sm:$0xff]
        %v1567 = vld [vmem:[#allocation8 + $0x20] sm:$0xff]
        %v1568 = vld [vmem:[#allocation8 + $0x28] sm:$0xff]
        %v1569 = vld [vmem:[#allocation8 + $0x30] sm:$0xff]
        %v1570 = vld [vmem:[#allocation8 + $0x38] sm:$0xff]
        %v1571 = vld [vmem:[#allocation8 + $0x40] sm:$0xff]
        %v1572 = vld [vmem:[#allocation8 + $0x48] sm:$0xff]
        %v1573 = vld [vmem:[#allocation8 + $0x50] sm:$0xff]
        %v1574 = vld [vmem:[#allocation8 + $0x58] sm:$0xff]
        %v1575 = vld [vmem:[#allocation8 + $0x60] sm:$0xff]
        %v1576 = vld [vmem:[#allocation8 + $0x68] sm:$0xff]
        %v1577 = vld [vmem:[#allocation8 + $0x70] sm:$0xff]
        %v1578 = vld [vmem:[#allocation8 + $0x78] sm:$0xff]
        %v1579 = vld [vmem:[#allocation8 + $0x80] sm:$0xff]
        %v1580 = vld [vmem:[#allocation8 + $0x88] sm:$0xff]
        %v1581 = vld [vmem:[#allocation8 + $0x90] sm:$0xff]
        %v1582 = vld [vmem:[#allocation8 + $0x98] sm:$0xff]
        %v1583 = vld [vmem:[#allocation8 + $0xa0] sm:$0xff]
        %v1584 = vld [vmem:[#allocation8 + $0xa8] sm:$0xff]
        %v1585 = vld [vmem:[#allocation8 + $0xb0] sm:$0xff]
        %v1586 = vld [vmem:[#allocation8 + $0xb8] sm:$0xff]
        %v1587 = vld [vmem:[#allocation8 + $0xc0] sm:$0xff]
        %v1588 = vld [vmem:[#allocation8 + $0xc8] sm:$0xff]
        %v1589 = vld [vmem:[#allocation8 + $0xd0] sm:$0xff]
        %v1590 = vld [vmem:[#allocation8 + $0xd8] sm:$0xff]
        %v1591 = vld [vmem:[#allocation8 + $0xe0] sm:$0xff]
        %v1592 = vld [vmem:[#allocation8 + $0xe8] sm:$0xff]
        %v1593 = vld [vmem:[#allocation8 + $0xf0] sm:$0xff]
        %v1594 = vld [vmem:[#allocation8 + $0xf8] sm:$0xff]
        %v1595 = vld [vmem:[#allocation8 + $0x100] sm:$0xff]
        %v1596 = vld [vmem:[#allocation8 + $0x108] sm:$0xff]
        %v1597 = vld [vmem:[#allocation8 + $0x110] sm:$0xff]
        %v1598 = vld [vmem:[#allocation8 + $0x118] sm:$0xff]
        %v1599 = vld [vmem:[#allocation8 + $0x120] sm:$0xff]
        %v1600 = vld [vmem:[#allocation8 + $0x128] sm:$0xff]
        %v1601 = vld [vmem:[#allocation8 + $0x130] sm:$0xff]
        %v1602 = vld [vmem:[#allocation8 + $0x138] sm:$0xff]
        %v1603 = vld [vmem:[#allocation8 + $0x140] sm:$0xff]
        %v1604 = vld [vmem:[#allocation8 + $0x148] sm:$0xff]
        %v1605 = vld [vmem:[#allocation8 + $0x150] sm:$0xff]
        %v1606 = vld [vmem:[#allocation8 + $0x158] sm:$0xff]
        %v1607 = vld [vmem:[#allocation8 + $0x160] sm:$0xff]
        %v1608 = vld [vmem:[#allocation8 + $0x168] sm:$0xff]
        %v1609 = vld [vmem:[#allocation8 + $0x170] sm:$0xff]
        %v1610 = vld [vmem:[#allocation8 + $0x178] sm:$0xff]
        %v1611 = vld [vmem:[#allocation8 + $0x180] sm:$0xff]
        %v1612 = vld [vmem:[#allocation8 + $0x188] sm:$0xff]
        %v1613 = vld [vmem:[#allocation8 + $0x190] sm:$0xff]
        %v1614 = vld [vmem:[#allocation8 + $0x198] sm:$0xff]
        %v1615 = vld [vmem:[#allocation8 + $0x1a0] sm:$0xff]
        %v1616 = vld [vmem:[#allocation8 + $0x1a8] sm:$0xff]
        %v1617 = vld [vmem:[#allocation8 + $0x1b0] sm:$0xff]
        %v1618 = vld [vmem:[#allocation8 + $0x1b8] sm:$0xff]
        %v1619 = vld [vmem:[#allocation8 + $0x1c0] sm:$0xff]
        %v1620 = vld [vmem:[#allocation8 + $0x1c8] sm:$0xff]
        %v1621 = vld [vmem:[#allocation8 + $0x1d0] sm:$0xff]
        %v1622 = vld [vmem:[#allocation8 + $0x1d8] sm:$0xff]
        %v1623 = vld [vmem:[#allocation8 + $0x1e0] sm:$0xff]
        %v1624 = vld [vmem:[#allocation8 + $0x1e8] sm:$0xff]
        %v1625 = vld [vmem:[#allocation8 + $0x1f0] sm:$0xff]
        %v1626 = vld [vmem:[#allocation8 + $0x1f8] sm:$0xff]
        %v1627 = vld [vmem:[#allocation8 + $0x200] sm:$0xff]
        %v1628 = vld [vmem:[#allocation8 + $0x208] sm:$0xff]
        %v1629 = vld [vmem:[#allocation8 + $0x210] sm:$0xff]
        %v1630 = vld [vmem:[#allocation8 + $0x218] sm:$0xff]
        %v1631 = vld [vmem:[#allocation8 + $0x220] sm:$0xff]
        %v1632 = vld [vmem:[#allocation8 + $0x228] sm:$0xff]
        %v1633 = vld [vmem:[#allocation8 + $0x230] sm:$0xff]
        %v1634 = vld [vmem:[#allocation8 + $0x238] sm:$0xff]
        %v1635 = vld [vmem:[#allocation8 + $0x240] sm:$0xff]
        %v1636 = vld [vmem:[#allocation8 + $0x248] sm:$0xff]
        %v1637 = vld [vmem:[#allocation8 + $0x250] sm:$0xff]
        %v1638 = vld [vmem:[#allocation8 + $0x258] sm:$0xff]
        %v1639 = vld [vmem:[#allocation8 + $0x260] sm:$0xff]
        %v1640 = vld [vmem:[#allocation8 + $0x268] sm:$0xff]
        %v1641 = vld [vmem:[#allocation8 + $0x270] sm:$0xff]
        %v1642 = vld [vmem:[#allocation8 + $0x278] sm:$0xff]
        %v1643 = vld [vmem:[#allocation8 + $0x280] sm:$0xff]
        %v1644 = vld [vmem:[#allocation8 + $0x288] sm:$0xff]
        %v1645 = vld [vmem:[#allocation8 + $0x290] sm:$0xff]
        %v1646 = vld [vmem:[#allocation8 + $0x298] sm:$0xff]
        %v1647 = vld [vmem:[#allocation8 + $0x2a0] sm:$0xff]
        %v1648 = vld [vmem:[#allocation8 + $0x2a8] sm:$0xff]
        %v1649 = vld [vmem:[#allocation8 + $0x2b0] sm:$0xff]
        %v1650 = vld [vmem:[#allocation8 + $0x2b8] sm:$0xff]
        %v1651 = vld [vmem:[#allocation8 + $0x2c0] sm:$0xff]
        %v1652 = vld [vmem:[#allocation8 + $0x2c8] sm:$0xff]
        %v1653 = vld [vmem:[#allocation8 + $0x2d0] sm:$0xff]
        %v1654 = vld [vmem:[#allocation8 + $0x2d8] sm:$0xff]
        %v1655 = vld [vmem:[#allocation8 + $0x2e0] sm:$0xff]
        %v1656 = vld [vmem:[#allocation8 + $0x2e8] sm:$0xff]
        %v1657 = vld [vmem:[#allocation8 + $0x2f0] sm:$0xff]
        %v1658 = vld [vmem:[#allocation8 + $0x2f8] sm:$0xff]
        %v1659 = vld [vmem:[#allocation8 + $0x300] sm:$0xff]
        %v1660 = vld [vmem:[#allocation8 + $0x308] sm:$0xff]
        %v1661 = vld [vmem:[#allocation8 + $0x310] sm:$0xff]
        %v1662 = vld [vmem:[#allocation8 + $0x318] sm:$0xff]
        %v1663 = vld [vmem:[#allocation8 + $0x320] sm:$0xff]
        %v1664 = vld [vmem:[#allocation8 + $0x328] sm:$0xff]
        %v1665 = vld [vmem:[#allocation8 + $0x330] sm:$0xff]
        %v1666 = vld [vmem:[#allocation8 + $0x338] sm:$0xff]
        %v1667 = vld [vmem:[#allocation8 + $0x340] sm:$0xff]
        %v1668 = vld [vmem:[#allocation8 + $0x348] sm:$0xff]
        %v1669 = vld [vmem:[#allocation8 + $0x350] sm:$0xff]
        %v1670 = vld [vmem:[#allocation8 + $0x358] sm:$0xff]
        %v1671 = vld [vmem:[#allocation8 + $0x360] sm:$0xff]
        %v1672 = vld [vmem:[#allocation8 + $0x368] sm:$0xff]
        %v1673 = vld [vmem:[#allocation8 + $0x370] sm:$0xff]
        %v1674 = vld [vmem:[#allocation8 + $0x378] sm:$0xff]
        %v1675 = vld [vmem:[#allocation8 + $0x380] sm:$0xff]
        %v1676 = vld [vmem:[#allocation8 + $0x388] sm:$0xff]
        %v1677 = vld [vmem:[#allocation8 + $0x390] sm:$0xff]
        %v1678 = vld [vmem:[#allocation8 + $0x398] sm:$0xff]
        %v1679 = vld [vmem:[#allocation8 + $0x3a0] sm:$0xff]
        %v1680 = vld [vmem:[#allocation8 + $0x3a8] sm:$0xff]
        %v1681 = vld [vmem:[#allocation8 + $0x3b0] sm:$0xff]
        %v1682 = vld [vmem:[#allocation8 + $0x3b8] sm:$0xff]
        %v1683 = vld [vmem:[#allocation8 + $0x3c0] sm:$0xff]
        %v1684 = vld [vmem:[#allocation8 + $0x3c8] sm:$0xff]
        %v1685 = vld [vmem:[#allocation8 + $0x3d0] sm:$0xff]
        %v1686 = vld [vmem:[#allocation8 + $0x3d8] sm:$0xff]
        %v1687 = vld [vmem:[#allocation8 + $0x3e0] sm:$0xff]
        %v1688 = vld [vmem:[#allocation8 + $0x3e8] sm:$0xff]
        %v1689 = vld [vmem:[#allocation8 + $0x3f0] sm:$0xff]
        %v1690 = vld [vmem:[#allocation8 + $0x3f8] sm:$0xff]
        %v1819 = vunpack.c.l.b16 %v1563
        %v1820 = vunpack.c.h.b16 %v1563
        %v1821 = vunpack.c.l.b16 %v1564
        %v1822 = vunpack.c.h.b16 %v1564
        %v1823 = vunpack.c.l.b16 %v1565
        %v1824 = vunpack.c.h.b16 %v1565
        %v1825 = vunpack.c.l.b16 %v1566
        %v1826 = vunpack.c.h.b16 %v1566
        %v1827 = vunpack.c.l.b16 %v1567
        %v1828 = vunpack.c.h.b16 %v1567
        %v1829 = vunpack.c.l.b16 %v1568
        %v1830 = vunpack.c.h.b16 %v1568
        %v1831 = vunpack.c.l.b16 %v1569
        %v1832 = vunpack.c.h.b16 %v1569
        %v1833 = vunpack.c.l.b16 %v1570
        %v1834 = vunpack.c.h.b16 %v1570
        %v1835 = vunpack.c.l.b16 %v1571
        %v1836 = vunpack.c.h.b16 %v1571
        %v1837 = vunpack.c.l.b16 %v1572
        %v1838 = vunpack.c.h.b16 %v1572
        %v1839 = vunpack.c.l.b16 %v1573
        %v1840 = vunpack.c.h.b16 %v1573
        %v1841 = vunpack.c.l.b16 %v1574
        %v1842 = vunpack.c.h.b16 %v1574
        %v1843 = vunpack.c.l.b16 %v1575
        %v1844 = vunpack.c.h.b16 %v1575
        %v1845 = vunpack.c.l.b16 %v1576
        %v1846 = vunpack.c.h.b16 %v1576
        %v1847 = vunpack.c.l.b16 %v1577
        %v1848 = vunpack.c.h.b16 %v1577
        %v1849 = vunpack.c.l.b16 %v1578
        %v1850 = vunpack.c.h.b16 %v1578
        %v1851 = vunpack.c.l.b16 %v1579
        %v1852 = vunpack.c.h.b16 %v1579
        %v1853 = vunpack.c.l.b16 %v1580
        %v1854 = vunpack.c.h.b16 %v1580
        %v1855 = vunpack.c.l.b16 %v1581
        %v1856 = vunpack.c.h.b16 %v1581
        %v1857 = vunpack.c.l.b16 %v1582
        %v1858 = vunpack.c.h.b16 %v1582
        %v1859 = vunpack.c.l.b16 %v1583
        %v1860 = vunpack.c.h.b16 %v1583
        %v1861 = vunpack.c.l.b16 %v1584
        %v1862 = vunpack.c.h.b16 %v1584
        %v1863 = vunpack.c.l.b16 %v1585
        %v1864 = vunpack.c.h.b16 %v1585
        %v1865 = vunpack.c.l.b16 %v1586
        %v1866 = vunpack.c.h.b16 %v1586
        %v1867 = vunpack.c.l.b16 %v1587
        %v1868 = vunpack.c.h.b16 %v1587
        %v1869 = vunpack.c.l.b16 %v1588
        %v1870 = vunpack.c.h.b16 %v1588
        %v1871 = vunpack.c.l.b16 %v1589
        %v1872 = vunpack.c.h.b16 %v1589
        %v1873 = vunpack.c.l.b16 %v1590
        %v1874 = vunpack.c.h.b16 %v1590
        %v1875 = vunpack.c.l.b16 %v1591
        %v1876 = vunpack.c.h.b16 %v1591
        %v1877 = vunpack.c.l.b16 %v1592
        %v1878 = vunpack.c.h.b16 %v1592
        %v1879 = vunpack.c.l.b16 %v1593
        %v1880 = vunpack.c.h.b16 %v1593
        %v1881 = vunpack.c.l.b16 %v1594
        %v1882 = vunpack.c.h.b16 %v1594
        %v1883 = vunpack.c.l.b16 %v1595
        %v1884 = vunpack.c.h.b16 %v1595
        %v1885 = vunpack.c.l.b16 %v1596
        %v1886 = vunpack.c.h.b16 %v1596
        %v1887 = vunpack.c.l.b16 %v1597
        %v1888 = vunpack.c.h.b16 %v1597
        %v1889 = vunpack.c.l.b16 %v1598
        %v1890 = vunpack.c.h.b16 %v1598
        %v1891 = vunpack.c.l.b16 %v1599
        %v1892 = vunpack.c.h.b16 %v1599
        %v1893 = vunpack.c.l.b16 %v1600
        %v1894 = vunpack.c.h.b16 %v1600
        %v1895 = vunpack.c.l.b16 %v1601
        %v1896 = vunpack.c.h.b16 %v1601
        %v1897 = vunpack.c.l.b16 %v1602
        %v1898 = vunpack.c.h.b16 %v1602
        %v1899 = vunpack.c.l.b16 %v1603
        %v1900 = vunpack.c.h.b16 %v1603
        %v1901 = vunpack.c.l.b16 %v1604
        %v1902 = vunpack.c.h.b16 %v1604
        %v1903 = vunpack.c.l.b16 %v1605
        %v1904 = vunpack.c.h.b16 %v1605
        %v1905 = vunpack.c.l.b16 %v1606
        %v1906 = vunpack.c.h.b16 %v1606
        %v1907 = vunpack.c.l.b16 %v1607
        %v1908 = vunpack.c.h.b16 %v1607
        %v1909 = vunpack.c.l.b16 %v1608
        %v1910 = vunpack.c.h.b16 %v1608
        %v1911 = vunpack.c.l.b16 %v1609
        %v1912 = vunpack.c.h.b16 %v1609
        %v1913 = vunpack.c.l.b16 %v1610
        %v1914 = vunpack.c.h.b16 %v1610
        %v1915 = vunpack.c.l.b16 %v1611
        %v1916 = vunpack.c.h.b16 %v1611
        %v1917 = vunpack.c.l.b16 %v1612
        %v1918 = vunpack.c.h.b16 %v1612
        %v1919 = vunpack.c.l.b16 %v1613
        %v1920 = vunpack.c.h.b16 %v1613
        %v1921 = vunpack.c.l.b16 %v1614
        %v1922 = vunpack.c.h.b16 %v1614
        %v1923 = vunpack.c.l.b16 %v1615
        %v1924 = vunpack.c.h.b16 %v1615
        %v1925 = vunpack.c.l.b16 %v1616
        %v1926 = vunpack.c.h.b16 %v1616
        %v1927 = vunpack.c.l.b16 %v1617
        %v1928 = vunpack.c.h.b16 %v1617
        %v1929 = vunpack.c.l.b16 %v1618
        %v1930 = vunpack.c.h.b16 %v1618
        %v1931 = vunpack.c.l.b16 %v1619
        %v1932 = vunpack.c.h.b16 %v1619
        %v1933 = vunpack.c.l.b16 %v1620
        %v1934 = vunpack.c.h.b16 %v1620
        %v1935 = vunpack.c.l.b16 %v1621
        %v1936 = vunpack.c.h.b16 %v1621
        %v1937 = vunpack.c.l.b16 %v1622
        %v1938 = vunpack.c.h.b16 %v1622
        %v1939 = vunpack.c.l.b16 %v1623
        %v1940 = vunpack.c.h.b16 %v1623
        %v1941 = vunpack.c.l.b16 %v1624
        %v1942 = vunpack.c.h.b16 %v1624
        %v1943 = vunpack.c.l.b16 %v1625
        %v1944 = vunpack.c.h.b16 %v1625
        %v1945 = vunpack.c.l.b16 %v1626
        %v1946 = vunpack.c.h.b16 %v1626
        %v1947 = vunpack.c.l.b16 %v1627
        %v1948 = vunpack.c.h.b16 %v1627
        %v1949 = vunpack.c.l.b16 %v1628
        %v1950 = vunpack.c.h.b16 %v1628
        %v1951 = vunpack.c.l.b16 %v1629
        %v1952 = vunpack.c.h.b16 %v1629
        %v1953 = vunpack.c.l.b16 %v1630
        %v1954 = vunpack.c.h.b16 %v1630
        %v1955 = vunpack.c.l.b16 %v1631
        %v1956 = vunpack.c.h.b16 %v1631
        %v1957 = vunpack.c.l.b16 %v1632
        %v1958 = vunpack.c.h.b16 %v1632
        %v1959 = vunpack.c.l.b16 %v1633
        %v1960 = vunpack.c.h.b16 %v1633
        %v1961 = vunpack.c.l.b16 %v1634
        %v1962 = vunpack.c.h.b16 %v1634
        %v1963 = vunpack.c.l.b16 %v1635
        %v1964 = vunpack.c.h.b16 %v1635
        %v1965 = vunpack.c.l.b16 %v1636
        %v1966 = vunpack.c.h.b16 %v1636
        %v1967 = vunpack.c.l.b16 %v1637
        %v1968 = vunpack.c.h.b16 %v1637
        %v1969 = vunpack.c.l.b16 %v1638
        %v1970 = vunpack.c.h.b16 %v1638
        %v1971 = vunpack.c.l.b16 %v1639
        %v1972 = vunpack.c.h.b16 %v1639
        %v1973 = vunpack.c.l.b16 %v1640
        %v1974 = vunpack.c.h.b16 %v1640
        %v1975 = vunpack.c.l.b16 %v1641
        %v1976 = vunpack.c.h.b16 %v1641
        %v1977 = vunpack.c.l.b16 %v1642
        %v1978 = vunpack.c.h.b16 %v1642
        %v1979 = vunpack.c.l.b16 %v1643
        %v1980 = vunpack.c.h.b16 %v1643
        %v1981 = vunpack.c.l.b16 %v1644
        %v1982 = vunpack.c.h.b16 %v1644
        %v1983 = vunpack.c.l.b16 %v1645
        %v1984 = vunpack.c.h.b16 %v1645
        %v1985 = vunpack.c.l.b16 %v1646
        %v1986 = vunpack.c.h.b16 %v1646
        %v1987 = vunpack.c.l.b16 %v1647
        %v1988 = vunpack.c.h.b16 %v1647
        %v1989 = vunpack.c.l.b16 %v1648
        %v1990 = vunpack.c.h.b16 %v1648
        %v1991 = vunpack.c.l.b16 %v1649
        %v1992 = vunpack.c.h.b16 %v1649
        %v1993 = vunpack.c.l.b16 %v1650
        %v1994 = vunpack.c.h.b16 %v1650
        %v1995 = vunpack.c.l.b16 %v1651
        %v1996 = vunpack.c.h.b16 %v1651
        %v1997 = vunpack.c.l.b16 %v1652
        %v1998 = vunpack.c.h.b16 %v1652
        %v1999 = vunpack.c.l.b16 %v1653
        %v2000 = vunpack.c.h.b16 %v1653
        %v2001 = vunpack.c.l.b16 %v1654
        %v2002 = vunpack.c.h.b16 %v1654
        %v2003 = vunpack.c.l.b16 %v1655
        %v2004 = vunpack.c.h.b16 %v1655
        %v2005 = vunpack.c.l.b16 %v1656
        %v2006 = vunpack.c.h.b16 %v1656
        %v2007 = vunpack.c.l.b16 %v1657
        %v2008 = vunpack.c.h.b16 %v1657
        %v2009 = vunpack.c.l.b16 %v1658
        %v2010 = vunpack.c.h.b16 %v1658
        %v2011 = vunpack.c.l.b16 %v1659
        %v2012 = vunpack.c.h.b16 %v1659
        %v2013 = vunpack.c.l.b16 %v1660
        %v2014 = vunpack.c.h.b16 %v1660
        %v2015 = vunpack.c.l.b16 %v1661
        %v2016 = vunpack.c.h.b16 %v1661
        %v2017 = vunpack.c.l.b16 %v1662
        %v2018 = vunpack.c.h.b16 %v1662
        %v2019 = vunpack.c.l.b16 %v1663
        %v2020 = vunpack.c.h.b16 %v1663
        %v2021 = vunpack.c.l.b16 %v1664
        %v2022 = vunpack.c.h.b16 %v1664
        %v2023 = vunpack.c.l.b16 %v1665
        %v2024 = vunpack.c.h.b16 %v1665
        %v2025 = vunpack.c.l.b16 %v1666
        %v2026 = vunpack.c.h.b16 %v1666
        %v2027 = vunpack.c.l.b16 %v1667
        %v2028 = vunpack.c.h.b16 %v1667
        %v2029 = vunpack.c.l.b16 %v1668
        %v2030 = vunpack.c.h.b16 %v1668
        %v2031 = vunpack.c.l.b16 %v1669
        %v2032 = vunpack.c.h.b16 %v1669
        %v2033 = vunpack.c.l.b16 %v1670
        %v2034 = vunpack.c.h.b16 %v1670
        %v2035 = vunpack.c.l.b16 %v1671
        %v2036 = vunpack.c.h.b16 %v1671
        %v2037 = vunpack.c.l.b16 %v1672
        %v2038 = vunpack.c.h.b16 %v1672
        %v2039 = vunpack.c.l.b16 %v1673
        %v2040 = vunpack.c.h.b16 %v1673
        %v2041 = vunpack.c.l.b16 %v1674
        %v2042 = vunpack.c.h.b16 %v1674
        %v2043 = vunpack.c.l.b16 %v1675
        %v2044 = vunpack.c.h.b16 %v1675
        %v2045 = vunpack.c.l.b16 %v1676
        %v2046 = vunpack.c.h.b16 %v1676
        %v2047 = vunpack.c.l.b16 %v1677
        %v2048 = vunpack.c.h.b16 %v1677
        %v2049 = vunpack.c.l.b16 %v1678
        %v2050 = vunpack.c.h.b16 %v1678
        %v2051 = vunpack.c.l.b16 %v1679
        %v2052 = vunpack.c.h.b16 %v1679
        %v2053 = vunpack.c.l.b16 %v1680
        %v2054 = vunpack.c.h.b16 %v1680
        %v2055 = vunpack.c.l.b16 %v1681
        %v2056 = vunpack.c.h.b16 %v1681
        %v2057 = vunpack.c.l.b16 %v1682
        %v2058 = vunpack.c.h.b16 %v1682
        %v2059 = vunpack.c.l.b16 %v1683
        %v2060 = vunpack.c.h.b16 %v1683
        %v2061 = vunpack.c.l.b16 %v1684
        %v2062 = vunpack.c.h.b16 %v1684
        %v2063 = vunpack.c.l.b16 %v1685
        %v2064 = vunpack.c.h.b16 %v1685
        %v2065 = vunpack.c.l.b16 %v1686
        %v2066 = vunpack.c.h.b16 %v1686
        %v2067 = vunpack.c.l.b16 %v1687
        %v2068 = vunpack.c.h.b16 %v1687
        %v2069 = vunpack.c.l.b16 %v1688
        %v2070 = vunpack.c.h.b16 %v1688
        %v2071 = vunpack.c.l.b16 %v1689
        %v2072 = vunpack.c.h.b16 %v1689
        %v2073 = vunpack.c.l.b16 %v1690
        %v2074 = vunpack.c.h.b16 %v1690
        %v2075 = vpack.c.b16 %v1823, %v1819
        %v2076 = vpack.c.b16 %v1824, %v1820
        %v2077 = vpack.c.b16 %v1825, %v1821
        %v2078 = vpack.c.b16 %v1826, %v1822
        %v2079 = vpack.c.b16 %v1831, %v1827
        %v2080 = vpack.c.b16 %v1832, %v1828
        %v2081 = vpack.c.b16 %v1833, %v1829
        %v2082 = vpack.c.b16 %v1834, %v1830
        %v2083 = vpack.c.b16 %v1839, %v1835
        %v2084 = vpack.c.b16 %v1840, %v1836
        %v2085 = vpack.c.b16 %v1841, %v1837
        %v2086 = vpack.c.b16 %v1842, %v1838
        %v2087 = vpack.c.b16 %v1847, %v1843
        %v2088 = vpack.c.b16 %v1848, %v1844
        %v2089 = vpack.c.b16 %v1849, %v1845
        %v2090 = vpack.c.b16 %v1850, %v1846
        %v2091 = vpack.c.b16 %v1855, %v1851
        %v2092 = vpack.c.b16 %v1856, %v1852
        %v2093 = vpack.c.b16 %v1857, %v1853
        %v2094 = vpack.c.b16 %v1858, %v1854
        %v2095 = vpack.c.b16 %v1863, %v1859
        %v2096 = vpack.c.b16 %v1864, %v1860
        %v2097 = vpack.c.b16 %v1865, %v1861
        %v2098 = vpack.c.b16 %v1866, %v1862
        %v2099 = vpack.c.b16 %v1871, %v1867
        %v2100 = vpack.c.b16 %v1872, %v1868
        %v2101 = vpack.c.b16 %v1873, %v1869
        %v2102 = vpack.c.b16 %v1874, %v1870
        %v2103 = vpack.c.b16 %v1879, %v1875
        %v2104 = vpack.c.b16 %v1880, %v1876
        %v2105 = vpack.c.b16 %v1881, %v1877
        %v2106 = vpack.c.b16 %v1882, %v1878
        %v2107 = vpack.c.b16 %v1887, %v1883
        %v2108 = vpack.c.b16 %v1888, %v1884
        %v2109 = vpack.c.b16 %v1889, %v1885
        %v2110 = vpack.c.b16 %v1890, %v1886
        %v2111 = vpack.c.b16 %v1895, %v1891
        %v2112 = vpack.c.b16 %v1896, %v1892
        %v2113 = vpack.c.b16 %v1897, %v1893
        %v2114 = vpack.c.b16 %v1898, %v1894
        %v2115 = vpack.c.b16 %v1903, %v1899
        %v2116 = vpack.c.b16 %v1904, %v1900
        %v2117 = vpack.c.b16 %v1905, %v1901
        %v2118 = vpack.c.b16 %v1906, %v1902
        %v2119 = vpack.c.b16 %v1911, %v1907
        %v2120 = vpack.c.b16 %v1912, %v1908
        %v2121 = vpack.c.b16 %v1913, %v1909
        %v2122 = vpack.c.b16 %v1914, %v1910
        %v2123 = vpack.c.b16 %v1919, %v1915
        %v2124 = vpack.c.b16 %v1920, %v1916
        %v2125 = vpack.c.b16 %v1921, %v1917
        %v2126 = vpack.c.b16 %v1922, %v1918
        %v2127 = vpack.c.b16 %v1927, %v1923
        %v2128 = vpack.c.b16 %v1928, %v1924
        %v2129 = vpack.c.b16 %v1929, %v1925
        %v2130 = vpack.c.b16 %v1930, %v1926
        %v2131 = vpack.c.b16 %v1935, %v1931
        %v2132 = vpack.c.b16 %v1936, %v1932
        %v2133 = vpack.c.b16 %v1937, %v1933
        %v2134 = vpack.c.b16 %v1938, %v1934
        %v2135 = vpack.c.b16 %v1943, %v1939
        %v2136 = vpack.c.b16 %v1944, %v1940
        %v2137 = vpack.c.b16 %v1945, %v1941
        %v2138 = vpack.c.b16 %v1946, %v1942
        %v2139 = vpack.c.b16 %v1951, %v1947
        %v2140 = vpack.c.b16 %v1952, %v1948
        %v2141 = vpack.c.b16 %v1953, %v1949
        %v2142 = vpack.c.b16 %v1954, %v1950
        %v2143 = vpack.c.b16 %v1959, %v1955
        %v2144 = vpack.c.b16 %v1960, %v1956
        %v2145 = vpack.c.b16 %v1961, %v1957
        %v2146 = vpack.c.b16 %v1962, %v1958
        %v2147 = vpack.c.b16 %v1967, %v1963
        %v2148 = vpack.c.b16 %v1968, %v1964
        %v2149 = vpack.c.b16 %v1969, %v1965
        %v2150 = vpack.c.b16 %v1970, %v1966
        %v2151 = vpack.c.b16 %v1975, %v1971
        %v2152 = vpack.c.b16 %v1976, %v1972
        %v2153 = vpack.c.b16 %v1977, %v1973
        %v2154 = vpack.c.b16 %v1978, %v1974
        %v2155 = vpack.c.b16 %v1983, %v1979
        %v2156 = vpack.c.b16 %v1984, %v1980
        %v2157 = vpack.c.b16 %v1985, %v1981
        %v2158 = vpack.c.b16 %v1986, %v1982
        %v2159 = vpack.c.b16 %v1991, %v1987
        %v2160 = vpack.c.b16 %v1992, %v1988
        %v2161 = vpack.c.b16 %v1993, %v1989
        %v2162 = vpack.c.b16 %v1994, %v1990
        %v2163 = vpack.c.b16 %v1999, %v1995
        %v2164 = vpack.c.b16 %v2000, %v1996
        %v2165 = vpack.c.b16 %v2001, %v1997
        %v2166 = vpack.c.b16 %v2002, %v1998
        %v2167 = vpack.c.b16 %v2007, %v2003
        %v2168 = vpack.c.b16 %v2008, %v2004
        %v2169 = vpack.c.b16 %v2009, %v2005
        %v2170 = vpack.c.b16 %v2010, %v2006
        %v2171 = vpack.c.b16 %v2015, %v2011
        %v2172 = vpack.c.b16 %v2016, %v2012
        %v2173 = vpack.c.b16 %v2017, %v2013
        %v2174 = vpack.c.b16 %v2018, %v2014
        %v2175 = vpack.c.b16 %v2023, %v2019
        %v2176 = vpack.c.b16 %v2024, %v2020
        %v2177 = vpack.c.b16 %v2025, %v2021
        %v2178 = vpack.c.b16 %v2026, %v2022
        %v2179 = vpack.c.b16 %v2031, %v2027
        %v2180 = vpack.c.b16 %v2032, %v2028
        %v2181 = vpack.c.b16 %v2033, %v2029
        %v2182 = vpack.c.b16 %v2034, %v2030
        %v2183 = vpack.c.b16 %v2039, %v2035
        %v2184 = vpack.c.b16 %v2040, %v2036
        %v2185 = vpack.c.b16 %v2041, %v2037
        %v2186 = vpack.c.b16 %v2042, %v2038
        %v2187 = vpack.c.b16 %v2047, %v2043
        %v2188 = vpack.c.b16 %v2048, %v2044
        %v2189 = vpack.c.b16 %v2049, %v2045
        %v2190 = vpack.c.b16 %v2050, %v2046
        %v2191 = vpack.c.b16 %v2055, %v2051
        %v2192 = vpack.c.b16 %v2056, %v2052
        %v2193 = vpack.c.b16 %v2057, %v2053
        %v2194 = vpack.c.b16 %v2058, %v2054
        %v2195 = vpack.c.b16 %v2063, %v2059
        %v2196 = vpack.c.b16 %v2064, %v2060
        %v2197 = vpack.c.b16 %v2065, %v2061
        %v2198 = vpack.c.b16 %v2066, %v2062
        %v2199 = vpack.c.b16 %v2071, %v2067
        %v2200 = vpack.c.b16 %v2072, %v2068
        %v2201 = vpack.c.b16 %v2073, %v2069
        %v2202 = vpack.c.b16 %v2074, %v2070
        %2331 = vmatprep.subr.bf16.mxu0 %v2076
        %2332 = vmatpush1.bf16.msra.mxu0 %v2075
        %2333 = vmatprep.subr.bf16.mxu0 %v2080
        %2334 = vmatpush1.bf16.msra.mxu0 %v2079
        %2335 = vmatprep.subr.bf16.mxu0 %v2084
        %2336 = vmatpush1.bf16.msra.mxu0 %v2083
        %2337 = vmatprep.subr.bf16.mxu0 %v2088
        %2338 = vmatpush1.bf16.msra.mxu0 %v2087
        %2339 = vmatprep.subr.bf16.mxu0 %v2092
        %2340 = vmatpush1.bf16.msra.mxu0 %v2091
        %2341 = vmatprep.subr.bf16.mxu0 %v2096
        %2342 = vmatpush1.bf16.msra.mxu0 %v2095
        %2343 = vmatprep.subr.bf16.mxu0 %v2100
        %2344 = vmatpush1.bf16.msra.mxu0 %v2099
        %2345 = vmatprep.subr.bf16.mxu0 %v2104
        %2346 = vmatpush1.bf16.msra.mxu0 %v2103
        %2347 = vmatprep.subr.bf16.mxu0 %v2108
        %2348 = vmatpush1.bf16.msra.mxu0 %v2107
        %2349 = vmatprep.subr.bf16.mxu0 %v2112
        %2350 = vmatpush1.bf16.msra.mxu0 %v2111
        %2351 = vmatprep.subr.bf16.mxu0 %v2116
        %2352 = vmatpush1.bf16.msra.mxu0 %v2115
        %2353 = vmatprep.subr.bf16.mxu0 %v2120
        %2354 = vmatpush1.bf16.msra.mxu0 %v2119
        %2355 = vmatprep.subr.bf16.mxu0 %v2124
        %2356 = vmatpush1.bf16.msra.mxu0 %v2123
        %2357 = vmatprep.subr.bf16.mxu0 %v2128
        %2358 = vmatpush1.bf16.msra.mxu0 %v2127
        %2359 = vmatprep.subr.bf16.mxu0 %v2132
        %2360 = vmatpush1.bf16.msra.mxu0 %v2131
        %2361 = vmatprep.subr.bf16.mxu0 %v2136
        %2362 = vmatpush1.bf16.msra.mxu0 %v2135
        %2363 = vmatprep.mubr.bf16.mxu0 %v1560
        %2364 = vmatmul.mubr.bf16.gmra.mrb[0].mxu0 %v1559
        %v2365 = vpop.f32.mrb[0].mxu0
        %v2366 = vadd.f32 0.0, %v2365
        %v2367 = vpop.f32.mrb[0].mxu0
        %v2368 = vadd.f32 0.0, %v2367
        %v2369 = vpop.f32.mrb[0].mxu0
        %v2370 = vpop.f32.mrb[0].mxu0
        %2371 = vdwg.mxu0
        %2372 = vmatprep.subr.bf16.mxu0 %v2140
        %2373 = vmatpush1.bf16.msra.mxu0 %v2139
        %2374 = vmatprep.subr.bf16.mxu0 %v2144
        %2375 = vmatpush1.bf16.msra.mxu0 %v2143
        %2376 = vmatprep.subr.bf16.mxu0 %v2148
        %2377 = vmatpush1.bf16.msra.mxu0 %v2147
        %2378 = vmatprep.subr.bf16.mxu0 %v2152
        %2379 = vmatpush1.bf16.msra.mxu0 %v2151
        %2380 = vmatprep.subr.bf16.mxu0 %v2156
        %2381 = vmatpush1.bf16.msra.mxu0 %v2155
        %2382 = vmatprep.subr.bf16.mxu0 %v2160
        %2383 = vmatpush1.bf16.msra.mxu0 %v2159
        %2384 = vmatprep.subr.bf16.mxu0 %v2164
        %2385 = vmatpush1.bf16.msra.mxu0 %v2163
        %2386 = vmatprep.subr.bf16.mxu0 %v2168
        %2387 = vmatpush1.bf16.msra.mxu0 %v2167
        %2388 = vmatprep.subr.bf16.mxu0 %v2172
        %2389 = vmatpush1.bf16.msra.mxu0 %v2171
        %2390 = vmatprep.subr.bf16.mxu0 %v2176
        %2391 = vmatpush1.bf16.msra.mxu0 %v2175
        %2392 = vmatprep.subr.bf16.mxu0 %v2180
        %2393 = vmatpush1.bf16.msra.mxu0 %v2179
        %2394 = vmatprep.subr.bf16.mxu0 %v2184
        %2395 = vmatpush1.bf16.msra.mxu0 %v2183
        %2396 = vmatprep.subr.bf16.mxu0 %v2188
        %2397 = vmatpush1.bf16.msra.mxu0 %v2187
        %2398 = vmatprep.subr.bf16.mxu0 %v2192
        %2399 = vmatpush1.bf16.msra.mxu0 %v2191
        %2400 = vmatprep.subr.bf16.mxu0 %v2196
        %2401 = vmatpush1.bf16.msra.mxu0 %v2195
        %2402 = vmatprep.subr.bf16.mxu0 %v2200
        %2403 = vmatpush1.bf16.msra.mxu0 %v2199
        %2404 = vmatprep.mubr.bf16.mxu0 %v1562
        %2405 = vmatmul.mubr.bf16.gmra.mrb[0].mxu0 %v1561
        %v2406 = vpop.f32.mrb[0].mxu0
        %v2407 = vadd.f32 %v2366, %v2406
        %v2408 = vpop.f32.mrb[0].mxu0
        %v2409 = vadd.f32 %v2368, %v2408
        %v2410 = vpop.f32.mrb[0].mxu0
        %v2411 = vpop.f32.mrb[0].mxu0
        %2412 = vdwg.mxu0
        %2413 = vmatprep.subr.bf16.mxu0 %v2078
        %2414 = vmatpush1.bf16.msra.mxu0 %v2077
        %2415 = vmatprep.subr.bf16.mxu0 %v2082
        %2416 = vmatpush1.bf16.msra.mxu0 %v2081
        %2417 = vmatprep.subr.bf16.mxu0 %v2086
        %2418 = vmatpush1.bf16.msra.mxu0 %v2085
        %2419 = vmatprep.subr.bf16.mxu0 %v2090
        %2420 = vmatpush1.bf16.msra.mxu0 %v2089
        %2421 = vmatprep.subr.bf16.mxu0 %v2094
        %2422 = vmatpush1.bf16.msra.mxu0 %v2093
        %2423 = vmatprep.subr.bf16.mxu0 %v2098
        %2424 = vmatpush1.bf16.msra.mxu0 %v2097
        %2425 = vmatprep.subr.bf16.mxu0 %v2102
        %2426 = vmatpush1.bf16.msra.mxu0 %v2101
        %2427 = vmatprep.subr.bf16.mxu0 %v2106
        %2428 = vmatpush1.bf16.msra.mxu0 %v2105
        %2429 = vmatprep.subr.bf16.mxu0 %v2110
        %2430 = vmatpush1.bf16.msra.mxu0 %v2109
        %2431 = vmatprep.subr.bf16.mxu0 %v2114
        %2432 = vmatpush1.bf16.msra.mxu0 %v2113
        %2433 = vmatprep.subr.bf16.mxu0 %v2118
        %2434 = vmatpush1.bf16.msra.mxu0 %v2117
        %2435 = vmatprep.subr.bf16.mxu0 %v2122
        %2436 = vmatpush1.bf16.msra.mxu0 %v2121
        %2437 = vmatprep.subr.bf16.mxu0 %v2126
        %2438 = vmatpush1.bf16.msra.mxu0 %v2125
        %2439 = vmatprep.subr.bf16.mxu0 %v2130
        %2440 = vmatpush1.bf16.msra.mxu0 %v2129
        %2441 = vmatprep.subr.bf16.mxu0 %v2134
        %2442 = vmatpush1.bf16.msra.mxu0 %v2133
        %2443 = vmatprep.subr.bf16.mxu0 %v2138
        %2444 = vmatpush1.bf16.msra.mxu0 %v2137
        %2445 = vmatprep.mubr.bf16.mxu0 %v1560
        %2446 = vmatmul.mubr.bf16.gmra.mrb[0].mxu0 %v1559
        %v2447 = vpop.f32.mrb[0].mxu0
        %v2448 = vadd.f32 0.0, %v2447
        %v2449 = vpop.f32.mrb[0].mxu0
        %v2450 = vadd.f32 0.0, %v2449
        %v2451 = vpop.f32.mrb[0].mxu0
        %v2452 = vpop.f32.mrb[0].mxu0
        %2453 = vdwg.mxu0
        %2454 = vmatprep.subr.bf16.mxu0 %v2142
        %2455 = vmatpush1.bf16.msra.mxu0 %v2141
        %2456 = vmatprep.subr.bf16.mxu0 %v2146
        %2457 = vmatpush1.bf16.msra.mxu0 %v2145
        %2458 = vmatprep.subr.bf16.mxu0 %v2150
        %2459 = vmatpush1.bf16.msra.mxu0 %v2149
        %2460 = vmatprep.subr.bf16.mxu0 %v2154
        %2461 = vmatpush1.bf16.msra.mxu0 %v2153
        %2462 = vmatprep.subr.bf16.mxu0 %v2158
        %2463 = vmatpush1.bf16.msra.mxu0 %v2157
        %2464 = vmatprep.subr.bf16.mxu0 %v2162
        %2465 = vmatpush1.bf16.msra.mxu0 %v2161
        %2466 = vmatprep.subr.bf16.mxu0 %v2166
        %2467 = vmatpush1.bf16.msra.mxu0 %v2165
        %2468 = vmatprep.subr.bf16.mxu0 %v2170
        %2469 = vmatpush1.bf16.msra.mxu0 %v2169
        %2470 = vmatprep.subr.bf16.mxu0 %v2174
        %2471 = vmatpush1.bf16.msra.mxu0 %v2173
        %2472 = vmatprep.subr.bf16.mxu0 %v2178
        %2473 = vmatpush1.bf16.msra.mxu0 %v2177
        %2474 = vmatprep.subr.bf16.mxu0 %v2182
        %2475 = vmatpush1.bf16.msra.mxu0 %v2181
        %2476 = vmatprep.subr.bf16.mxu0 %v2186
        %2477 = vmatpush1.bf16.msra.mxu0 %v2185
        %2478 = vmatprep.subr.bf16.mxu0 %v2190
        %2479 = vmatpush1.bf16.msra.mxu0 %v2189
        %2480 = vmatprep.subr.bf16.mxu0 %v2194
        %2481 = vmatpush1.bf16.msra.mxu0 %v2193
        %2482 = vmatprep.subr.bf16.mxu0 %v2198
        %2483 = vmatpush1.bf16.msra.mxu0 %v2197
        %2484 = vmatprep.subr.bf16.mxu0 %v2202
        %2485 = vmatpush1.bf16.msra.mxu0 %v2201
        %2486 = vmatprep.mubr.bf16.mxu0 %v1562
        %2487 = vmatmul.mubr.bf16.gmra.mrb[0].mxu0 %v1561
        %v2488 = vpop.f32.mrb[0].mxu0
        %v2489 = vadd.f32 %v2448, %v2488
        %v2490 = vpop.f32.mrb[0].mxu0
        %v2491 = vadd.f32 %v2450, %v2490
        %v2492 = vpop.f32.mrb[0].mxu0
        %v2493 = vpop.f32.mrb[0].mxu0
        %2494 = vdwg.mxu0
        %v2495 = vpack.c.bf16 %v616, %v616
        %v2496 = vld [vmem:[#allocation10] sm:$0xff]
        %v2497 = vld [vmem:[#allocation10 + $0x8] sm:$0xff]
        %v2498 = vld [vmem:[#allocation10 + $0x10] sm:$0xff]
        %v2499 = vld [vmem:[#allocation10 + $0x18] sm:$0xff]
        %v2500 = vld [vmem:[#allocation10 + $0x20] sm:$0xff]
        %v2501 = vld [vmem:[#allocation10 + $0x28] sm:$0xff]
        %v2502 = vld [vmem:[#allocation10 + $0x30] sm:$0xff]
        %v2503 = vld [vmem:[#allocation10 + $0x38] sm:$0xff]
        %v2504 = vld [vmem:[#allocation10 + $0x40] sm:$0xff]
        %v2505 = vld [vmem:[#allocation10 + $0x48] sm:$0xff]
        %v2506 = vld [vmem:[#allocation10 + $0x50] sm:$0xff]
        %v2507 = vld [vmem:[#allocation10 + $0x58] sm:$0xff]
        %v2508 = vld [vmem:[#allocation10 + $0x60] sm:$0xff]
        %v2509 = vld [vmem:[#allocation10 + $0x68] sm:$0xff]
        %v2510 = vld [vmem:[#allocation10 + $0x70] sm:$0xff]
        %v2511 = vld [vmem:[#allocation10 + $0x78] sm:$0xff]
        %v2512 = vld [vmem:[#allocation10 + $0x80] sm:$0xff]
        %v2513 = vld [vmem:[#allocation10 + $0x88] sm:$0xff]
        %v2514 = vld [vmem:[#allocation10 + $0x90] sm:$0xff]
        %v2515 = vld [vmem:[#allocation10 + $0x98] sm:$0xff]
        %v2516 = vld [vmem:[#allocation10 + $0xa0] sm:$0xff]
        %v2517 = vld [vmem:[#allocation10 + $0xa8] sm:$0xff]
        %v2518 = vld [vmem:[#allocation10 + $0xb0] sm:$0xff]
        %v2519 = vld [vmem:[#allocation10 + $0xb8] sm:$0xff]
        %v2520 = vld [vmem:[#allocation10 + $0xc0] sm:$0xff]
        %v2521 = vld [vmem:[#allocation10 + $0xc8] sm:$0xff]
        %v2522 = vld [vmem:[#allocation10 + $0xd0] sm:$0xff]
        %v2523 = vld [vmem:[#allocation10 + $0xd8] sm:$0xff]
        %v2524 = vld [vmem:[#allocation10 + $0xe0] sm:$0xff]
        %v2525 = vld [vmem:[#allocation10 + $0xe8] sm:$0xff]
        %v2526 = vld [vmem:[#allocation10 + $0xf0] sm:$0xff]
        %v2527 = vld [vmem:[#allocation10 + $0xf8] sm:$0xff]
        %v2528 = vld [vmem:[%s6] sm:$0xf]
        %v2561 = vunpack.c.l.b16 %v2496
        %v2562 = vunpack.c.h.b16 %v2496
        %v2563 = vunpack.c.l.b16 %v2497
        %v2564 = vunpack.c.h.b16 %v2497
        %v2565 = vunpack.c.l.b16 %v2498
        %v2566 = vunpack.c.h.b16 %v2498
        %v2567 = vunpack.c.l.b16 %v2499
        %v2568 = vunpack.c.h.b16 %v2499
        %v2569 = vunpack.c.l.b16 %v2500
        %v2570 = vunpack.c.h.b16 %v2500
        %v2571 = vunpack.c.l.b16 %v2501
        %v2572 = vunpack.c.h.b16 %v2501
        %v2573 = vunpack.c.l.b16 %v2502
        %v2574 = vunpack.c.h.b16 %v2502
        %v2575 = vunpack.c.l.b16 %v2503
        %v2576 = vunpack.c.h.b16 %v2503
        %v2577 = vunpack.c.l.b16 %v2504
        %v2578 = vunpack.c.h.b16 %v2504
        %v2579 = vunpack.c.l.b16 %v2505
        %v2580 = vunpack.c.h.b16 %v2505
        %v2581 = vunpack.c.l.b16 %v2506
        %v2582 = vunpack.c.h.b16 %v2506
        %v2583 = vunpack.c.l.b16 %v2507
        %v2584 = vunpack.c.h.b16 %v2507
        %v2585 = vunpack.c.l.b16 %v2508
        %v2586 = vunpack.c.h.b16 %v2508
        %v2587 = vunpack.c.l.b16 %v2509
        %v2588 = vunpack.c.h.b16 %v2509
        %v2589 = vunpack.c.l.b16 %v2510
        %v2590 = vunpack.c.h.b16 %v2510
        %v2591 = vunpack.c.l.b16 %v2511
        %v2592 = vunpack.c.h.b16 %v2511
        %v2593 = vunpack.c.l.b16 %v2512
        %v2594 = vunpack.c.h.b16 %v2512
        %v2595 = vunpack.c.l.b16 %v2513
        %v2596 = vunpack.c.h.b16 %v2513
        %v2597 = vunpack.c.l.b16 %v2514
        %v2598 = vunpack.c.h.b16 %v2514
        %v2599 = vunpack.c.l.b16 %v2515
        %v2600 = vunpack.c.h.b16 %v2515
        %v2601 = vunpack.c.l.b16 %v2516
        %v2602 = vunpack.c.h.b16 %v2516
        %v2603 = vunpack.c.l.b16 %v2517
        %v2604 = vunpack.c.h.b16 %v2517
        %v2605 = vunpack.c.l.b16 %v2518
        %v2606 = vunpack.c.h.b16 %v2518
        %v2607 = vunpack.c.l.b16 %v2519
        %v2608 = vunpack.c.h.b16 %v2519
        %v2609 = vunpack.c.l.b16 %v2520
        %v2610 = vunpack.c.h.b16 %v2520
        %v2611 = vunpack.c.l.b16 %v2521
        %v2612 = vunpack.c.h.b16 %v2521
        %v2613 = vunpack.c.l.b16 %v2522
        %v2614 = vunpack.c.h.b16 %v2522
        %v2615 = vunpack.c.l.b16 %v2523
        %v2616 = vunpack.c.h.b16 %v2523
        %v2617 = vunpack.c.l.b16 %v2524
        %v2618 = vunpack.c.h.b16 %v2524
        %v2619 = vunpack.c.l.b16 %v2525
        %v2620 = vunpack.c.h.b16 %v2525
        %v2621 = vunpack.c.l.b16 %v2526
        %v2622 = vunpack.c.h.b16 %v2526
        %v2623 = vunpack.c.l.b16 %v2527
        %v2624 = vunpack.c.h.b16 %v2527
        %v2625 = vpack.c.b16 %v2565, %v2561
        %v2626 = vpack.c.b16 %v2566, %v2562
        %v2627 = vpack.c.b16 %v2567, %v2563
        %v2628 = vpack.c.b16 %v2568, %v2564
        %v2629 = vpack.c.b16 %v2573, %v2569
        %v2630 = vpack.c.b16 %v2574, %v2570
        %v2631 = vpack.c.b16 %v2575, %v2571
        %v2632 = vpack.c.b16 %v2576, %v2572
        %v2633 = vpack.c.b16 %v2581, %v2577
        %v2634 = vpack.c.b16 %v2582, %v2578
        %v2635 = vpack.c.b16 %v2583, %v2579
        %v2636 = vpack.c.b16 %v2584, %v2580
        %v2637 = vpack.c.b16 %v2589, %v2585
        %v2638 = vpack.c.b16 %v2590, %v2586
        %v2639 = vpack.c.b16 %v2591, %v2587
        %v2640 = vpack.c.b16 %v2592, %v2588
        %v2641 = vpack.c.b16 %v2597, %v2593
        %v2642 = vpack.c.b16 %v2598, %v2594
        %v2643 = vpack.c.b16 %v2599, %v2595
        %v2644 = vpack.c.b16 %v2600, %v2596
        %v2645 = vpack.c.b16 %v2605, %v2601
        %v2646 = vpack.c.b16 %v2606, %v2602
        %v2647 = vpack.c.b16 %v2607, %v2603
        %v2648 = vpack.c.b16 %v2608, %v2604
        %v2649 = vpack.c.b16 %v2613, %v2609
        %v2650 = vpack.c.b16 %v2614, %v2610
        %v2651 = vpack.c.b16 %v2615, %v2611
        %v2652 = vpack.c.b16 %v2616, %v2612
        %v2653 = vpack.c.b16 %v2621, %v2617
        %v2654 = vpack.c.b16 %v2622, %v2618
        %v2655 = vpack.c.b16 %v2623, %v2619
        %v2656 = vpack.c.b16 %v2624, %v2620
        %v2690 = vlaneseq
        %v2691 = vshrl.u32 %v2690, 7
        %v2692 = vsub.s32 0, %v2691
        %v2693 = vrot.slane %v2528, %v2692
        %v2694 = vlaneseq
        %v2695 = vshrl.u32 %v2694, 7
        %v2696 = vsub.s32 1, %v2695
        %v2697 = vrot.slane %v2528, %v2696
        %v2698 = vlaneseq
        %v2699 = vshrl.u32 %v2698, 7
        %v2700 = vsub.s32 2, %v2699
        %v2701 = vrot.slane %v2528, %v2700
        %v2702 = vlaneseq
        %v2703 = vshrl.u32 %v2702, 7
        %v2704 = vsub.s32 3, %v2703
        %v2705 = vrot.slane %v2528, %v2704
        %2710 = vmatprep.subr.bf16.mxu0 %v2626
        %2711 = vmatpush1.bf16.msra.mxu0 %v2625
        %2712 = vmatprep.subr.bf16.mxu0 %v2630
        %2713 = vmatpush1.bf16.msra.mxu0 %v2629
        %2714 = vmatprep.subr.bf16.mxu0 %v2634
        %2715 = vmatpush1.bf16.msra.mxu0 %v2633
        %2716 = vmatprep.subr.bf16.mxu0 %v2638
        %2717 = vmatpush1.bf16.msra.mxu0 %v2637
        %2718 = vmatprep.subr.bf16.mxu0 %v2642
        %2719 = vmatpush1.bf16.msra.mxu0 %v2641
        %2720 = vmatprep.subr.bf16.mxu0 %v2646
        %2721 = vmatpush1.bf16.msra.mxu0 %v2645
        %2722 = vmatprep.subr.bf16.mxu0 %v2650
        %2723 = vmatpush1.bf16.msra.mxu0 %v2649
        %2724 = vmatprep.subr.bf16.mxu0 %v2654
        %2725 = vmatpush1.bf16.msra.mxu0 %v2653
        %2726 = vmatprep.subr.bf16.mxu0 0
        %2727 = vmatpush1.bf16.msra.mxu0 0
        %2728 = vmatprep.subr.bf16.mxu0 0
        %2729 = vmatpush1.bf16.msra.mxu0 0
        %2730 = vmatprep.subr.bf16.mxu0 0
        %2731 = vmatpush1.bf16.msra.mxu0 0
        %2732 = vmatprep.subr.bf16.mxu0 0
        %2733 = vmatpush1.bf16.msra.mxu0 0
        %2734 = vmatprep.subr.bf16.mxu0 0
        %2735 = vmatpush1.bf16.msra.mxu0 0
        %2736 = vmatprep.subr.bf16.mxu0 0
        %2737 = vmatpush1.bf16.msra.mxu0 0
        %2738 = vmatprep.subr.bf16.mxu0 0
        %2739 = vmatpush1.bf16.msra.mxu0 0
        %2740 = vmatprep.subr.bf16.mxu0 0
        %2741 = vmatpush1.bf16.msra.mxu0 0
        %2742 = vmatprep.mubr.bf16.mxu0 0
        %2743 = vmatmul.mubr.bf16.gmra.mrb[0].mxu0 %v2495
        %v2744 = vpop.f32.mrb[0].mxu0
        %v2745 = vadd.f32 %v2693, %v2744
        %v2746 = vpop.f32.mrb[0].mxu0
        %v2747 = vadd.f32 %v2697, %v2746
        %v2748 = vpop.f32.mrb[0].mxu0
        %v2749 = vpop.f32.mrb[0].mxu0
        %2750 = vdwg.mxu0
        %2751 = vmatprep.subr.bf16.mxu0 %v2628
        %2752 = vmatpush1.bf16.msra.mxu0 %v2627
        %2753 = vmatprep.subr.bf16.mxu0 %v2632
        %2754 = vmatpush1.bf16.msra.mxu0 %v2631
        %2755 = vmatprep.subr.bf16.mxu0 %v2636
        %2756 = vmatpush1.bf16.msra.mxu0 %v2635
        %2757 = vmatprep.subr.bf16.mxu0 %v2640
        %2758 = vmatpush1.bf16.msra.mxu0 %v2639
        %2759 = vmatprep.subr.bf16.mxu0 %v2644
        %2760 = vmatpush1.bf16.msra.mxu0 %v2643
        %2761 = vmatprep.subr.bf16.mxu0 %v2648
        %2762 = vmatpush1.bf16.msra.mxu0 %v2647
        %2763 = vmatprep.subr.bf16.mxu0 %v2652
        %2764 = vmatpush1.bf16.msra.mxu0 %v2651
        %2765 = vmatprep.subr.bf16.mxu0 %v2656
        %2766 = vmatpush1.bf16.msra.mxu0 %v2655
        %2767 = vmatprep.subr.bf16.mxu0 0
        %2768 = vmatpush1.bf16.msra.mxu0 0
        %2769 = vmatprep.subr.bf16.mxu0 0
        %2770 = vmatpush1.bf16.msra.mxu0 0
        %2771 = vmatprep.subr.bf16.mxu0 0
        %2772 = vmatpush1.bf16.msra.mxu0 0
        %2773 = vmatprep.subr.bf16.mxu0 0
        %2774 = vmatpush1.bf16.msra.mxu0 0
        %2775 = vmatprep.subr.bf16.mxu0 0
        %2776 = vmatpush1.bf16.msra.mxu0 0
        %2777 = vmatprep.subr.bf16.mxu0 0
        %2778 = vmatpush1.bf16.msra.mxu0 0
        %2779 = vmatprep.subr.bf16.mxu0 0
        %2780 = vmatpush1.bf16.msra.mxu0 0
        %2781 = vmatprep.subr.bf16.mxu0 0
        %2782 = vmatpush1.bf16.msra.mxu0 0
        %2783 = vmatprep.mubr.bf16.mxu0 0
        %2784 = vmatmul.mubr.bf16.gmra.mrb[0].mxu0 %v2495
        %v2785 = vpop.f32.mrb[0].mxu0
        %v2786 = vadd.f32 %v2701, %v2785
        %v2787 = vpop.f32.mrb[0].mxu0
        %v2788 = vadd.f32 %v2705, %v2787
        %v2789 = vpop.f32.mrb[0].mxu0
        %v2790 = vpop.f32.mrb[0].mxu0
        %2791 = vdwg.mxu0
        %v2792 = vld [vmem:[%s11] sm:$0x3]
        %v2793 = vld [vmem:[#allocation2] sm:$0x1]
        %v2794 = vlaneseq
        %v2795 = vand.u32 %v2794, 127
        %v2796 = vlaneseq
        %v2797 = vshrl.u32 %v2796, 7
        %v2798 = vsub.s32 0, %v2797
        %v2799 = vrot.slane %v2407, %v2798
        %v2800 = vlaneseq
        %v2801 = vshrl.u32 %v2800, 7
        %v2802 = vsub.s32 0, %v2801
        %v2803 = vrot.slane %v2409, %v2802
        %v2804 = vlaneseq
        %v2805 = vshrl.u32 %v2804, 7
        %v2806 = vsub.s32 0, %v2805
        %v2807 = vrot.slane %v2489, %v2806
        %v2808 = vlaneseq
        %v2809 = vshrl.u32 %v2808, 7
        %v2810 = vsub.s32 0, %v2809
        %v2811 = vrot.slane %v2491, %v2810
        %v2812 = vadd.f32 %v1465, %v2799
        %v2813 = vadd.f32 %v1467, %v2803
        %v2814 = vadd.f32 %v1547, %v2807
        %v2815 = vadd.f32 %v1549, %v2811
        %v2816 = vlaneseq
        %v2817 = vshrl.u32 %v2816, 7
        %v2818 = vsub.s32 0, %v2817
        %v2819 = vrot.slane %v2745, %v2818
        %v2820 = vlaneseq
        %v2821 = vshrl.u32 %v2820, 7
        %v2822 = vsub.s32 0, %v2821
        %v2823 = vrot.slane %v2747, %v2822
        %v2824 = vlaneseq
        %v2825 = vshrl.u32 %v2824, 7
        %v2826 = vsub.s32 0, %v2825
        %v2827 = vrot.slane %v2786, %v2826
        %v2828 = vlaneseq
        %v2829 = vshrl.u32 %v2828, 7
        %v2830 = vsub.s32 0, %v2829
        %v2831 = vrot.slane %v2788, %v2830
        %v2832 = vadd.f32 %v2812, %v2819
        %v2833 = vadd.f32 %v2813, %v2823
        %v2834 = vadd.f32 %v2814, %v2827
        %v2835 = vadd.f32 %v2815, %v2831
        %v2836 = vxor.u32 %v2832, 2147483648
        %v2837 = vxor.u32 %v2833, 2147483648
        %v2838 = vxor.u32 %v2834, 2147483648
        %v2839 = vxor.u32 %v2835, 2147483648
        %v2840 = vmul.f32 %v2836, 1.442695
        %v2841 = vpow.pop %v2840
        %v2842 = vmul.f32 %v2837, 1.442695
        %v2843 = vpow.pop %v2842
        %v2844 = vmul.f32 %v2838, 1.442695
        %v2845 = vpow.pop %v2844
        %v2846 = vmul.f32 %v2839, 1.442695
        %v2847 = vpow.pop %v2846
        %v2848 = vadd.f32 %v2841, 1.0
        %v2849 = vadd.f32 %v2843, 1.0
        %v2850 = vadd.f32 %v2845, 1.0
        %v2851 = vadd.f32 %v2847, 1.0
        %v2852 = vrcp.pop %v2848
        %v2853 = vmul.f32 1.0, %v2852
        %v2854 = vrcp.pop %v2849
        %v2855 = vmul.f32 1.0, %v2854
        %v2856 = vrcp.pop %v2850
        %v2857 = vmul.f32 1.0, %v2856
        %v2858 = vrcp.pop %v2851
        %v2859 = vmul.f32 1.0, %v2858
        %v2860 = vmul.f32 %v2832, %v2853
        %v2861 = vmul.f32 %v2833, %v2855
        %v2862 = vmul.f32 %v2834, %v2857
        %v2863 = vmul.f32 %v2835, %v2859
        %v2864 = vpack.c.bf16 %v2860, %v2860
        %v2865 = vpack.c.bf16 %v2861, %v2861
        %v2866 = vpack.c.bf16 %v2862, %v2862
        %v2867 = vpack.c.bf16 %v2863, %v2863
        %v2868 = vld [vmem:[#allocation11] sm:$0xff]
        %v2869 = vld [vmem:[#allocation11 + $0x8] sm:$0xff]
        %v2870 = vld [vmem:[#allocation11 + $0x10] sm:$0xff]
        %v2871 = vld [vmem:[#allocation11 + $0x18] sm:$0xff]
        %v2872 = vld [vmem:[#allocation11 + $0x20] sm:$0xff]
        %v2873 = vld [vmem:[#allocation11 + $0x28] sm:$0xff]
        %v2874 = vld [vmem:[#allocation11 + $0x30] sm:$0xff]
        %v2875 = vld [vmem:[#allocation11 + $0x38] sm:$0xff]
        %v2876 = vld [vmem:[#allocation11 + $0x40] sm:$0xff]
        %v2877 = vld [vmem:[#allocation11 + $0x48] sm:$0xff]
        %v2878 = vld [vmem:[#allocation11 + $0x50] sm:$0xff]
        %v2879 = vld [vmem:[#allocation11 + $0x58] sm:$0xff]
        %v2880 = vld [vmem:[#allocation11 + $0x60] sm:$0xff]
        %v2881 = vld [vmem:[#allocation11 + $0x68] sm:$0xff]
        %v2882 = vld [vmem:[#allocation11 + $0x70] sm:$0xff]
        %v2883 = vld [vmem:[#allocation11 + $0x78] sm:$0xff]
        %v2884 = vld [vmem:[#allocation11 + $0x80] sm:$0xff]
        %v2885 = vld [vmem:[#allocation11 + $0x88] sm:$0xff]
        %v2886 = vld [vmem:[#allocation11 + $0x90] sm:$0xff]
        %v2887 = vld [vmem:[#allocation11 + $0x98] sm:$0xff]
        %v2888 = vld [vmem:[#allocation11 + $0xa0] sm:$0xff]
        %v2889 = vld [vmem:[#allocation11 + $0xa8] sm:$0xff]
        %v2890 = vld [vmem:[#allocation11 + $0xb0] sm:$0xff]
        %v2891 = vld [vmem:[#allocation11 + $0xb8] sm:$0xff]
        %v2892 = vld [vmem:[#allocation11 + $0xc0] sm:$0xff]
        %v2893 = vld [vmem:[#allocation11 + $0xc8] sm:$0xff]
        %v2894 = vld [vmem:[#allocation11 + $0xd0] sm:$0xff]
        %v2895 = vld [vmem:[#allocation11 + $0xd8] sm:$0xff]
        %v2896 = vld [vmem:[#allocation11 + $0xe0] sm:$0xff]
        %v2897 = vld [vmem:[#allocation11 + $0xe8] sm:$0xff]
        %v2898 = vld [vmem:[#allocation11 + $0xf0] sm:$0xff]
        %v2899 = vld [vmem:[#allocation11 + $0xf8] sm:$0xff]
        %v2900 = vld [vmem:[#allocation11 + $0x100] sm:$0xff]
        %v2901 = vld [vmem:[#allocation11 + $0x108] sm:$0xff]
        %v2902 = vld [vmem:[#allocation11 + $0x110] sm:$0xff]
        %v2903 = vld [vmem:[#allocation11 + $0x118] sm:$0xff]
        %v2904 = vld [vmem:[#allocation11 + $0x120] sm:$0xff]
        %v2905 = vld [vmem:[#allocation11 + $0x128] sm:$0xff]
        %v2906 = vld [vmem:[#allocation11 + $0x130] sm:$0xff]
        %v2907 = vld [vmem:[#allocation11 + $0x138] sm:$0xff]
        %v2908 = vld [vmem:[#allocation11 + $0x140] sm:$0xff]
        %v2909 = vld [vmem:[#allocation11 + $0x148] sm:$0xff]
        %v2910 = vld [vmem:[#allocation11 + $0x150] sm:$0xff]
        %v2911 = vld [vmem:[#allocation11 + $0x158] sm:$0xff]
        %v2912 = vld [vmem:[#allocation11 + $0x160] sm:$0xff]
        %v2913 = vld [vmem:[#allocation11 + $0x168] sm:$0xff]
        %v2914 = vld [vmem:[#allocation11 + $0x170] sm:$0xff]
        %v2915 = vld [vmem:[#allocation11 + $0x178] sm:$0xff]
        %v2916 = vld [vmem:[#allocation11 + $0x180] sm:$0xff]
        %v2917 = vld [vmem:[#allocation11 + $0x188] sm:$0xff]
        %v2918 = vld [vmem:[#allocation11 + $0x190] sm:$0xff]
        %v2919 = vld [vmem:[#allocation11 + $0x198] sm:$0xff]
        %v2920 = vld [vmem:[#allocation11 + $0x1a0] sm:$0xff]
        %v2921 = vld [vmem:[#allocation11 + $0x1a8] sm:$0xff]
        %v2922 = vld [vmem:[#allocation11 + $0x1b0] sm:$0xff]
        %v2923 = vld [vmem:[#allocation11 + $0x1b8] sm:$0xff]
        %v2924 = vld [vmem:[#allocation11 + $0x1c0] sm:$0xff]
        %v2925 = vld [vmem:[#allocation11 + $0x1c8] sm:$0xff]
        %v2926 = vld [vmem:[#allocation11 + $0x1d0] sm:$0xff]
        %v2927 = vld [vmem:[#allocation11 + $0x1d8] sm:$0xff]
        %v2928 = vld [vmem:[#allocation11 + $0x1e0] sm:$0xff]
        %v2929 = vld [vmem:[#allocation11 + $0x1e8] sm:$0xff]
        %v2930 = vld [vmem:[#allocation11 + $0x1f0] sm:$0xff]
        %v2931 = vld [vmem:[#allocation11 + $0x1f8] sm:$0xff]
        %v2932 = vld [vmem:[#allocation11 + $0x200] sm:$0xff]
        %v2933 = vld [vmem:[#allocation11 + $0x208] sm:$0xff]
        %v2934 = vld [vmem:[#allocation11 + $0x210] sm:$0xff]
        %v2935 = vld [vmem:[#allocation11 + $0x218] sm:$0xff]
        %v2936 = vld [vmem:[#allocation11 + $0x220] sm:$0xff]
        %v2937 = vld [vmem:[#allocation11 + $0x228] sm:$0xff]
        %v2938 = vld [vmem:[#allocation11 + $0x230] sm:$0xff]
        %v2939 = vld [vmem:[#allocation11 + $0x238] sm:$0xff]
        %v2940 = vld [vmem:[#allocation11 + $0x240] sm:$0xff]
        %v2941 = vld [vmem:[#allocation11 + $0x248] sm:$0xff]
        %v2942 = vld [vmem:[#allocation11 + $0x250] sm:$0xff]
        %v2943 = vld [vmem:[#allocation11 + $0x258] sm:$0xff]
        %v2944 = vld [vmem:[#allocation11 + $0x260] sm:$0xff]
        %v2945 = vld [vmem:[#allocation11 + $0x268] sm:$0xff]
        %v2946 = vld [vmem:[#allocation11 + $0x270] sm:$0xff]
        %v2947 = vld [vmem:[#allocation11 + $0x278] sm:$0xff]
        %v2948 = vld [vmem:[#allocation11 + $0x280] sm:$0xff]
        %v2949 = vld [vmem:[#allocation11 + $0x288] sm:$0xff]
        %v2950 = vld [vmem:[#allocation11 + $0x290] sm:$0xff]
        %v2951 = vld [vmem:[#allocation11 + $0x298] sm:$0xff]
        %v2952 = vld [vmem:[#allocation11 + $0x2a0] sm:$0xff]
        %v2953 = vld [vmem:[#allocation11 + $0x2a8] sm:$0xff]
        %v2954 = vld [vmem:[#allocation11 + $0x2b0] sm:$0xff]
        %v2955 = vld [vmem:[#allocation11 + $0x2b8] sm:$0xff]
        %v2956 = vld [vmem:[#allocation11 + $0x2c0] sm:$0xff]
        %v2957 = vld [vmem:[#allocation11 + $0x2c8] sm:$0xff]
        %v2958 = vld [vmem:[#allocation11 + $0x2d0] sm:$0xff]
        %v2959 = vld [vmem:[#allocation11 + $0x2d8] sm:$0xff]
        %v2960 = vld [vmem:[#allocation11 + $0x2e0] sm:$0xff]
        %v2961 = vld [vmem:[#allocation11 + $0x2e8] sm:$0xff]
        %v2962 = vld [vmem:[#allocation11 + $0x2f0] sm:$0xff]
        %v2963 = vld [vmem:[#allocation11 + $0x2f8] sm:$0xff]
        %v2964 = vld [vmem:[#allocation11 + $0x300] sm:$0xff]
        %v2965 = vld [vmem:[#allocation11 + $0x308] sm:$0xff]
        %v2966 = vld [vmem:[#allocation11 + $0x310] sm:$0xff]
        %v2967 = vld [vmem:[#allocation11 + $0x318] sm:$0xff]
        %v2968 = vld [vmem:[#allocation11 + $0x320] sm:$0xff]
        %v2969 = vld [vmem:[#allocation11 + $0x328] sm:$0xff]
        %v2970 = vld [vmem:[#allocation11 + $0x330] sm:$0xff]
        %v2971 = vld [vmem:[#allocation11 + $0x338] sm:$0xff]
        %v2972 = vld [vmem:[#allocation11 + $0x340] sm:$0xff]
        %v2973 = vld [vmem:[#allocation11 + $0x348] sm:$0xff]
        %v2974 = vld [vmem:[#allocation11 + $0x350] sm:$0xff]
        %v2975 = vld [vmem:[#allocation11 + $0x358] sm:$0xff]
        %v2976 = vld [vmem:[#allocation11 + $0x360] sm:$0xff]
        %v2977 = vld [vmem:[#allocation11 + $0x368] sm:$0xff]
        %v2978 = vld [vmem:[#allocation11 + $0x370] sm:$0xff]
        %v2979 = vld [vmem:[#allocation11 + $0x378] sm:$0xff]
        %v2980 = vld [vmem:[#allocation11 + $0x380] sm:$0xff]
        %v2981 = vld [vmem:[#allocation11 + $0x388] sm:$0xff]
        %v2982 = vld [vmem:[#allocation11 + $0x390] sm:$0xff]
        %v2983 = vld [vmem:[#allocation11 + $0x398] sm:$0xff]
        %v2984 = vld [vmem:[#allocation11 + $0x3a0] sm:$0xff]
        %v2985 = vld [vmem:[#allocation11 + $0x3a8] sm:$0xff]
        %v2986 = vld [vmem:[#allocation11 + $0x3b0] sm:$0xff]
        %v2987 = vld [vmem:[#allocation11 + $0x3b8] sm:$0xff]
        %v2988 = vld [vmem:[#allocation11 + $0x3c0] sm:$0xff]
        %v2989 = vld [vmem:[#allocation11 + $0x3c8] sm:$0xff]
        %v2990 = vld [vmem:[#allocation11 + $0x3d0] sm:$0xff]
        %v2991 = vld [vmem:[#allocation11 + $0x3d8] sm:$0xff]
        %v2992 = vld [vmem:[#allocation11 + $0x3e0] sm:$0xff]
        %v2993 = vld [vmem:[#allocation11 + $0x3e8] sm:$0xff]
        %v2994 = vld [vmem:[#allocation11 + $0x3f0] sm:$0xff]
        %v2995 = vld [vmem:[#allocation11 + $0x3f8] sm:$0xff]
        %v2996 = vld [vmem:[%s8] sm:$0xf]
        %v2998 = vlaneseq
        %v2999 = vshrl.u32 %v2998, 7
        %v3000 = vsub.s32 0, %v2999
        %v3001 = vrot.slane %v2996, %v3000
        %v3002 = vlaneseq
        %v3003 = vshrl.u32 %v3002, 7
        %v3004 = vsub.s32 1, %v3003
        %v3005 = vrot.slane %v2996, %v3004
        %v3006 = vlaneseq
        %v3007 = vshrl.u32 %v3006, 7
        %v3008 = vsub.s32 2, %v3007
        %v3009 = vrot.slane %v2996, %v3008
        %v3010 = vlaneseq
        %v3011 = vshrl.u32 %v3010, 7
        %v3012 = vsub.s32 3, %v3011
        %v3013 = vrot.slane %v2996, %v3012
        %v3146 = vunpack.c.l.b16 %v2868
        %v3147 = vunpack.c.h.b16 %v2868
        %v3148 = vunpack.c.l.b16 %v2869
        %v3149 = vunpack.c.h.b16 %v2869
        %v3150 = vunpack.c.l.b16 %v2870
        %v3151 = vunpack.c.h.b16 %v2870
        %v3152 = vunpack.c.l.b16 %v2871
        %v3153 = vunpack.c.h.b16 %v2871
        %v3154 = vunpack.c.l.b16 %v2872
        %v3155 = vunpack.c.h.b16 %v2872
        %v3156 = vunpack.c.l.b16 %v2873
        %v3157 = vunpack.c.h.b16 %v2873
        %v3158 = vunpack.c.l.b16 %v2874
        %v3159 = vunpack.c.h.b16 %v2874
        %v3160 = vunpack.c.l.b16 %v2875
        %v3161 = vunpack.c.h.b16 %v2875
        %v3162 = vunpack.c.l.b16 %v2876
        %v3163 = vunpack.c.h.b16 %v2876
        %v3164 = vunpack.c.l.b16 %v2877
        %v3165 = vunpack.c.h.b16 %v2877
        %v3166 = vunpack.c.l.b16 %v2878
        %v3167 = vunpack.c.h.b16 %v2878
        %v3168 = vunpack.c.l.b16 %v2879
        %v3169 = vunpack.c.h.b16 %v2879
        %v3170 = vunpack.c.l.b16 %v2880
        %v3171 = vunpack.c.h.b16 %v2880
        %v3172 = vunpack.c.l.b16 %v2881
        %v3173 = vunpack.c.h.b16 %v2881
        %v3174 = vunpack.c.l.b16 %v2882
        %v3175 = vunpack.c.h.b16 %v2882
        %v3176 = vunpack.c.l.b16 %v2883
        %v3177 = vunpack.c.h.b16 %v2883
        %v3178 = vunpack.c.l.b16 %v2884
        %v3179 = vunpack.c.h.b16 %v2884
        %v3180 = vunpack.c.l.b16 %v2885
        %v3181 = vunpack.c.h.b16 %v2885
        %v3182 = vunpack.c.l.b16 %v2886
        %v3183 = vunpack.c.h.b16 %v2886
        %v3184 = vunpack.c.l.b16 %v2887
        %v3185 = vunpack.c.h.b16 %v2887
        %v3186 = vunpack.c.l.b16 %v2888
        %v3187 = vunpack.c.h.b16 %v2888
        %v3188 = vunpack.c.l.b16 %v2889
        %v3189 = vunpack.c.h.b16 %v2889
        %v3190 = vunpack.c.l.b16 %v2890
        %v3191 = vunpack.c.h.b16 %v2890
        %v3192 = vunpack.c.l.b16 %v2891
        %v3193 = vunpack.c.h.b16 %v2891
        %v3194 = vunpack.c.l.b16 %v2892
        %v3195 = vunpack.c.h.b16 %v2892
        %v3196 = vunpack.c.l.b16 %v2893
        %v3197 = vunpack.c.h.b16 %v2893
        %v3198 = vunpack.c.l.b16 %v2894
        %v3199 = vunpack.c.h.b16 %v2894
        %v3200 = vunpack.c.l.b16 %v2895
        %v3201 = vunpack.c.h.b16 %v2895
        %v3202 = vunpack.c.l.b16 %v2896
        %v3203 = vunpack.c.h.b16 %v2896
        %v3204 = vunpack.c.l.b16 %v2897
        %v3205 = vunpack.c.h.b16 %v2897
        %v3206 = vunpack.c.l.b16 %v2898
        %v3207 = vunpack.c.h.b16 %v2898
        %v3208 = vunpack.c.l.b16 %v2899
        %v3209 = vunpack.c.h.b16 %v2899
        %v3210 = vunpack.c.l.b16 %v2900
        %v3211 = vunpack.c.h.b16 %v2900
        %v3212 = vunpack.c.l.b16 %v2901
        %v3213 = vunpack.c.h.b16 %v2901
        %v3214 = vunpack.c.l.b16 %v2902
        %v3215 = vunpack.c.h.b16 %v2902
        %v3216 = vunpack.c.l.b16 %v2903
        %v3217 = vunpack.c.h.b16 %v2903
        %v3218 = vunpack.c.l.b16 %v2904
        %v3219 = vunpack.c.h.b16 %v2904
        %v3220 = vunpack.c.l.b16 %v2905
        %v3221 = vunpack.c.h.b16 %v2905
        %v3222 = vunpack.c.l.b16 %v2906
        %v3223 = vunpack.c.h.b16 %v2906
        %v3224 = vunpack.c.l.b16 %v2907
        %v3225 = vunpack.c.h.b16 %v2907
        %v3226 = vunpack.c.l.b16 %v2908
        %v3227 = vunpack.c.h.b16 %v2908
        %v3228 = vunpack.c.l.b16 %v2909
        %v3229 = vunpack.c.h.b16 %v2909
        %v3230 = vunpack.c.l.b16 %v2910
        %v3231 = vunpack.c.h.b16 %v2910
        %v3232 = vunpack.c.l.b16 %v2911
        %v3233 = vunpack.c.h.b16 %v2911
        %v3234 = vunpack.c.l.b16 %v2912
        %v3235 = vunpack.c.h.b16 %v2912
        %v3236 = vunpack.c.l.b16 %v2913
        %v3237 = vunpack.c.h.b16 %v2913
        %v3238 = vunpack.c.l.b16 %v2914
        %v3239 = vunpack.c.h.b16 %v2914
        %v3240 = vunpack.c.l.b16 %v2915
        %v3241 = vunpack.c.h.b16 %v2915
        %v3242 = vunpack.c.l.b16 %v2916
        %v3243 = vunpack.c.h.b16 %v2916
        %v3244 = vunpack.c.l.b16 %v2917
        %v3245 = vunpack.c.h.b16 %v2917
        %v3246 = vunpack.c.l.b16 %v2918
        %v3247 = vunpack.c.h.b16 %v2918
        %v3248 = vunpack.c.l.b16 %v2919
        %v3249 = vunpack.c.h.b16 %v2919
        %v3250 = vunpack.c.l.b16 %v2920
        %v3251 = vunpack.c.h.b16 %v2920
        %v3252 = vunpack.c.l.b16 %v2921
        %v3253 = vunpack.c.h.b16 %v2921
        %v3254 = vunpack.c.l.b16 %v2922
        %v3255 = vunpack.c.h.b16 %v2922
        %v3256 = vunpack.c.l.b16 %v2923
        %v3257 = vunpack.c.h.b16 %v2923
        %v3258 = vunpack.c.l.b16 %v2924
        %v3259 = vunpack.c.h.b16 %v2924
        %v3260 = vunpack.c.l.b16 %v2925
        %v3261 = vunpack.c.h.b16 %v2925
        %v3262 = vunpack.c.l.b16 %v2926
        %v3263 = vunpack.c.h.b16 %v2926
        %v3264 = vunpack.c.l.b16 %v2927
        %v3265 = vunpack.c.h.b16 %v2927
        %v3266 = vunpack.c.l.b16 %v2928
        %v3267 = vunpack.c.h.b16 %v2928
        %v3268 = vunpack.c.l.b16 %v2929
        %v3269 = vunpack.c.h.b16 %v2929
        %v3270 = vunpack.c.l.b16 %v2930
        %v3271 = vunpack.c.h.b16 %v2930
        %v3272 = vunpack.c.l.b16 %v2931
        %v3273 = vunpack.c.h.b16 %v2931
        %v3274 = vunpack.c.l.b16 %v2932
        %v3275 = vunpack.c.h.b16 %v2932
        %v3276 = vunpack.c.l.b16 %v2933
        %v3277 = vunpack.c.h.b16 %v2933
        %v3278 = vunpack.c.l.b16 %v2934
        %v3279 = vunpack.c.h.b16 %v2934
        %v3280 = vunpack.c.l.b16 %v2935
        %v3281 = vunpack.c.h.b16 %v2935
        %v3282 = vunpack.c.l.b16 %v2936
        %v3283 = vunpack.c.h.b16 %v2936
        %v3284 = vunpack.c.l.b16 %v2937
        %v3285 = vunpack.c.h.b16 %v2937
        %v3286 = vunpack.c.l.b16 %v2938
        %v3287 = vunpack.c.h.b16 %v2938
        %v3288 = vunpack.c.l.b16 %v2939
        %v3289 = vunpack.c.h.b16 %v2939
        %v3290 = vunpack.c.l.b16 %v2940
        %v3291 = vunpack.c.h.b16 %v2940
        %v3292 = vunpack.c.l.b16 %v2941
        %v3293 = vunpack.c.h.b16 %v2941
        %v3294 = vunpack.c.l.b16 %v2942
        %v3295 = vunpack.c.h.b16 %v2942
        %v3296 = vunpack.c.l.b16 %v2943
        %v3297 = vunpack.c.h.b16 %v2943
        %v3298 = vunpack.c.l.b16 %v2944
        %v3299 = vunpack.c.h.b16 %v2944
        %v3300 = vunpack.c.l.b16 %v2945
        %v3301 = vunpack.c.h.b16 %v2945
        %v3302 = vunpack.c.l.b16 %v2946
        %v3303 = vunpack.c.h.b16 %v2946
        %v3304 = vunpack.c.l.b16 %v2947
        %v3305 = vunpack.c.h.b16 %v2947
        %v3306 = vunpack.c.l.b16 %v2948
        %v3307 = vunpack.c.h.b16 %v2948
        %v3308 = vunpack.c.l.b16 %v2949
        %v3309 = vunpack.c.h.b16 %v2949
        %v3310 = vunpack.c.l.b16 %v2950
        %v3311 = vunpack.c.h.b16 %v2950
        %v3312 = vunpack.c.l.b16 %v2951
        %v3313 = vunpack.c.h.b16 %v2951
        %v3314 = vunpack.c.l.b16 %v2952
        %v3315 = vunpack.c.h.b16 %v2952
        %v3316 = vunpack.c.l.b16 %v2953
        %v3317 = vunpack.c.h.b16 %v2953
        %v3318 = vunpack.c.l.b16 %v2954
        %v3319 = vunpack.c.h.b16 %v2954
        %v3320 = vunpack.c.l.b16 %v2955
        %v3321 = vunpack.c.h.b16 %v2955
        %v3322 = vunpack.c.l.b16 %v2956
        %v3323 = vunpack.c.h.b16 %v2956
        %v3324 = vunpack.c.l.b16 %v2957
        %v3325 = vunpack.c.h.b16 %v2957
        %v3326 = vunpack.c.l.b16 %v2958
        %v3327 = vunpack.c.h.b16 %v2958
        %v3328 = vunpack.c.l.b16 %v2959
        %v3329 = vunpack.c.h.b16 %v2959
        %v3330 = vunpack.c.l.b16 %v2960
        %v3331 = vunpack.c.h.b16 %v2960
        %v3332 = vunpack.c.l.b16 %v2961
        %v3333 = vunpack.c.h.b16 %v2961
        %v3334 = vunpack.c.l.b16 %v2962
        %v3335 = vunpack.c.h.b16 %v2962
        %v3336 = vunpack.c.l.b16 %v2963
        %v3337 = vunpack.c.h.b16 %v2963
        %v3338 = vunpack.c.l.b16 %v2964
        %v3339 = vunpack.c.h.b16 %v2964
        %v3340 = vunpack.c.l.b16 %v2965
        %v3341 = vunpack.c.h.b16 %v2965
        %v3342 = vunpack.c.l.b16 %v2966
        %v3343 = vunpack.c.h.b16 %v2966
        %v3344 = vunpack.c.l.b16 %v2967
        %v3345 = vunpack.c.h.b16 %v2967
        %v3346 = vunpack.c.l.b16 %v2968
        %v3347 = vunpack.c.h.b16 %v2968
        %v3348 = vunpack.c.l.b16 %v2969
        %v3349 = vunpack.c.h.b16 %v2969
        %v3350 = vunpack.c.l.b16 %v2970
        %v3351 = vunpack.c.h.b16 %v2970
        %v3352 = vunpack.c.l.b16 %v2971
        %v3353 = vunpack.c.h.b16 %v2971
        %v3354 = vunpack.c.l.b16 %v2972
        %v3355 = vunpack.c.h.b16 %v2972
        %v3356 = vunpack.c.l.b16 %v2973
        %v3357 = vunpack.c.h.b16 %v2973
        %v3358 = vunpack.c.l.b16 %v2974
        %v3359 = vunpack.c.h.b16 %v2974
        %v3360 = vunpack.c.l.b16 %v2975
        %v3361 = vunpack.c.h.b16 %v2975
        %v3362 = vunpack.c.l.b16 %v2976
        %v3363 = vunpack.c.h.b16 %v2976
        %v3364 = vunpack.c.l.b16 %v2977
        %v3365 = vunpack.c.h.b16 %v2977
        %v3366 = vunpack.c.l.b16 %v2978
        %v3367 = vunpack.c.h.b16 %v2978
        %v3368 = vunpack.c.l.b16 %v2979
        %v3369 = vunpack.c.h.b16 %v2979
        %v3370 = vunpack.c.l.b16 %v2980
        %v3371 = vunpack.c.h.b16 %v2980
        %v3372 = vunpack.c.l.b16 %v2981
        %v3373 = vunpack.c.h.b16 %v2981
        %v3374 = vunpack.c.l.b16 %v2982
        %v3375 = vunpack.c.h.b16 %v2982
        %v3376 = vunpack.c.l.b16 %v2983
        %v3377 = vunpack.c.h.b16 %v2983
        %v3378 = vunpack.c.l.b16 %v2984
        %v3379 = vunpack.c.h.b16 %v2984
        %v3380 = vunpack.c.l.b16 %v2985
        %v3381 = vunpack.c.h.b16 %v2985
        %v3382 = vunpack.c.l.b16 %v2986
        %v3383 = vunpack.c.h.b16 %v2986
        %v3384 = vunpack.c.l.b16 %v2987
        %v3385 = vunpack.c.h.b16 %v2987
        %v3386 = vunpack.c.l.b16 %v2988
        %v3387 = vunpack.c.h.b16 %v2988
        %v3388 = vunpack.c.l.b16 %v2989
        %v3389 = vunpack.c.h.b16 %v2989
        %v3390 = vunpack.c.l.b16 %v2990
        %v3391 = vunpack.c.h.b16 %v2990
        %v3392 = vunpack.c.l.b16 %v2991
        %v3393 = vunpack.c.h.b16 %v2991
        %v3394 = vunpack.c.l.b16 %v2992
        %v3395 = vunpack.c.h.b16 %v2992
        %v3396 = vunpack.c.l.b16 %v2993
        %v3397 = vunpack.c.h.b16 %v2993
        %v3398 = vunpack.c.l.b16 %v2994
        %v3399 = vunpack.c.h.b16 %v2994
        %v3400 = vunpack.c.l.b16 %v2995
        %v3401 = vunpack.c.h.b16 %v2995
        %v3402 = vpack.c.b16 %v3150, %v3146
        %v3403 = vpack.c.b16 %v3151, %v3147
        %v3404 = vpack.c.b16 %v3152, %v3148
        %v3405 = vpack.c.b16 %v3153, %v3149
        %v3406 = vpack.c.b16 %v3158, %v3154
        %v3407 = vpack.c.b16 %v3159, %v3155
        %v3408 = vpack.c.b16 %v3160, %v3156
        %v3409 = vpack.c.b16 %v3161, %v3157
        %v3410 = vpack.c.b16 %v3166, %v3162
        %v3411 = vpack.c.b16 %v3167, %v3163
        %v3412 = vpack.c.b16 %v3168, %v3164
        %v3413 = vpack.c.b16 %v3169, %v3165
        %v3414 = vpack.c.b16 %v3174, %v3170
        %v3415 = vpack.c.b16 %v3175, %v3171
        %v3416 = vpack.c.b16 %v3176, %v3172
        %v3417 = vpack.c.b16 %v3177, %v3173
        %v3418 = vpack.c.b16 %v3182, %v3178
        %v3419 = vpack.c.b16 %v3183, %v3179
        %v3420 = vpack.c.b16 %v3184, %v3180
        %v3421 = vpack.c.b16 %v3185, %v3181
        %v3422 = vpack.c.b16 %v3190, %v3186
        %v3423 = vpack.c.b16 %v3191, %v3187
        %v3424 = vpack.c.b16 %v3192, %v3188
        %v3425 = vpack.c.b16 %v3193, %v3189
        %v3426 = vpack.c.b16 %v3198, %v3194
        %v3427 = vpack.c.b16 %v3199, %v3195
        %v3428 = vpack.c.b16 %v3200, %v3196
        %v3429 = vpack.c.b16 %v3201, %v3197
        %v3430 = vpack.c.b16 %v3206, %v3202
        %v3431 = vpack.c.b16 %v3207, %v3203
        %v3432 = vpack.c.b16 %v3208, %v3204
        %v3433 = vpack.c.b16 %v3209, %v3205
        %v3434 = vpack.c.b16 %v3214, %v3210
        %v3435 = vpack.c.b16 %v3215, %v3211
        %v3436 = vpack.c.b16 %v3216, %v3212
        %v3437 = vpack.c.b16 %v3217, %v3213
        %v3438 = vpack.c.b16 %v3222, %v3218
        %v3439 = vpack.c.b16 %v3223, %v3219
        %v3440 = vpack.c.b16 %v3224, %v3220
        %v3441 = vpack.c.b16 %v3225, %v3221
        %v3442 = vpack.c.b16 %v3230, %v3226
        %v3443 = vpack.c.b16 %v3231, %v3227
        %v3444 = vpack.c.b16 %v3232, %v3228
        %v3445 = vpack.c.b16 %v3233, %v3229
        %v3446 = vpack.c.b16 %v3238, %v3234
        %v3447 = vpack.c.b16 %v3239, %v3235
        %v3448 = vpack.c.b16 %v3240, %v3236
        %v3449 = vpack.c.b16 %v3241, %v3237
        %v3450 = vpack.c.b16 %v3246, %v3242
        %v3451 = vpack.c.b16 %v3247, %v3243
        %v3452 = vpack.c.b16 %v3248, %v3244
        %v3453 = vpack.c.b16 %v3249, %v3245
        %v3454 = vpack.c.b16 %v3254, %v3250
        %v3455 = vpack.c.b16 %v3255, %v3251
        %v3456 = vpack.c.b16 %v3256, %v3252
        %v3457 = vpack.c.b16 %v3257, %v3253
        %v3458 = vpack.c.b16 %v3262, %v3258
        %v3459 = vpack.c.b16 %v3263, %v3259
        %v3460 = vpack.c.b16 %v3264, %v3260
        %v3461 = vpack.c.b16 %v3265, %v3261
        %v3462 = vpack.c.b16 %v3270, %v3266
        %v3463 = vpack.c.b16 %v3271, %v3267
        %v3464 = vpack.c.b16 %v3272, %v3268
        %v3465 = vpack.c.b16 %v3273, %v3269
        %v3466 = vpack.c.b16 %v3278, %v3274
        %v3467 = vpack.c.b16 %v3279, %v3275
        %v3468 = vpack.c.b16 %v3280, %v3276
        %v3469 = vpack.c.b16 %v3281, %v3277
        %v3470 = vpack.c.b16 %v3286, %v3282
        %v3471 = vpack.c.b16 %v3287, %v3283
        %v3472 = vpack.c.b16 %v3288, %v3284
        %v3473 = vpack.c.b16 %v3289, %v3285
        %v3474 = vpack.c.b16 %v3294, %v3290
        %v3475 = vpack.c.b16 %v3295, %v3291
        %v3476 = vpack.c.b16 %v3296, %v3292
        %v3477 = vpack.c.b16 %v3297, %v3293
        %v3478 = vpack.c.b16 %v3302, %v3298
        %v3479 = vpack.c.b16 %v3303, %v3299
        %v3480 = vpack.c.b16 %v3304, %v3300
        %v3481 = vpack.c.b16 %v3305, %v3301
        %v3482 = vpack.c.b16 %v3310, %v3306
        %v3483 = vpack.c.b16 %v3311, %v3307
        %v3484 = vpack.c.b16 %v3312, %v3308
        %v3485 = vpack.c.b16 %v3313, %v3309
        %v3486 = vpack.c.b16 %v3318, %v3314
        %v3487 = vpack.c.b16 %v3319, %v3315
        %v3488 = vpack.c.b16 %v3320, %v3316
        %v3489 = vpack.c.b16 %v3321, %v3317
        %v3490 = vpack.c.b16 %v3326, %v3322
        %v3491 = vpack.c.b16 %v3327, %v3323
        %v3492 = vpack.c.b16 %v3328, %v3324
        %v3493 = vpack.c.b16 %v3329, %v3325
        %v3494 = vpack.c.b16 %v3334, %v3330
        %v3495 = vpack.c.b16 %v3335, %v3331
        %v3496 = vpack.c.b16 %v3336, %v3332
        %v3497 = vpack.c.b16 %v3337, %v3333
        %v3498 = vpack.c.b16 %v3342, %v3338
        %v3499 = vpack.c.b16 %v3343, %v3339
        %v3500 = vpack.c.b16 %v3344, %v3340
        %v3501 = vpack.c.b16 %v3345, %v3341
        %v3502 = vpack.c.b16 %v3350, %v3346
        %v3503 = vpack.c.b16 %v3351, %v3347
        %v3504 = vpack.c.b16 %v3352, %v3348
        %v3505 = vpack.c.b16 %v3353, %v3349
        %v3506 = vpack.c.b16 %v3358, %v3354
        %v3507 = vpack.c.b16 %v3359, %v3355
        %v3508 = vpack.c.b16 %v3360, %v3356
        %v3509 = vpack.c.b16 %v3361, %v3357
        %v3510 = vpack.c.b16 %v3366, %v3362
        %v3511 = vpack.c.b16 %v3367, %v3363
        %v3512 = vpack.c.b16 %v3368, %v3364
        %v3513 = vpack.c.b16 %v3369, %v3365
        %v3514 = vpack.c.b16 %v3374, %v3370
        %v3515 = vpack.c.b16 %v3375, %v3371
        %v3516 = vpack.c.b16 %v3376, %v3372
        %v3517 = vpack.c.b16 %v3377, %v3373
        %v3518 = vpack.c.b16 %v3382, %v3378
        %v3519 = vpack.c.b16 %v3383, %v3379
        %v3520 = vpack.c.b16 %v3384, %v3380
        %v3521 = vpack.c.b16 %v3385, %v3381
        %v3522 = vpack.c.b16 %v3390, %v3386
        %v3523 = vpack.c.b16 %v3391, %v3387
        %v3524 = vpack.c.b16 %v3392, %v3388
        %v3525 = vpack.c.b16 %v3393, %v3389
        %v3526 = vpack.c.b16 %v3398, %v3394
        %v3527 = vpack.c.b16 %v3399, %v3395
        %v3528 = vpack.c.b16 %v3400, %v3396
        %v3529 = vpack.c.b16 %v3401, %v3397
        %3658 = vmatprep.subr.bf16.mxu0 %v3403
        %3659 = vmatpush1.bf16.msra.mxu0 %v3402
        %3660 = vmatprep.subr.bf16.mxu0 %v3407
        %3661 = vmatpush1.bf16.msra.mxu0 %v3406
        %3662 = vmatprep.subr.bf16.mxu0 %v3411
        %3663 = vmatpush1.bf16.msra.mxu0 %v3410
        %3664 = vmatprep.subr.bf16.mxu0 %v3415
        %3665 = vmatpush1.bf16.msra.mxu0 %v3414
        %3666 = vmatprep.subr.bf16.mxu0 %v3419
        %3667 = vmatpush1.bf16.msra.mxu0 %v3418
        %3668 = vmatprep.subr.bf16.mxu0 %v3423
        %3669 = vmatpush1.bf16.msra.mxu0 %v3422
        %3670 = vmatprep.subr.bf16.mxu0 %v3427
        %3671 = vmatpush1.bf16.msra.mxu0 %v3426
        %3672 = vmatprep.subr.bf16.mxu0 %v3431
        %3673 = vmatpush1.bf16.msra.mxu0 %v3430
        %3674 = vmatprep.subr.bf16.mxu0 %v3435
        %3675 = vmatpush1.bf16.msra.mxu0 %v3434
        %3676 = vmatprep.subr.bf16.mxu0 %v3439
        %3677 = vmatpush1.bf16.msra.mxu0 %v3438
        %3678 = vmatprep.subr.bf16.mxu0 %v3443
        %3679 = vmatpush1.bf16.msra.mxu0 %v3442
        %3680 = vmatprep.subr.bf16.mxu0 %v3447
        %3681 = vmatpush1.bf16.msra.mxu0 %v3446
        %3682 = vmatprep.subr.bf16.mxu0 %v3451
        %3683 = vmatpush1.bf16.msra.mxu0 %v3450
        %3684 = vmatprep.subr.bf16.mxu0 %v3455
        %3685 = vmatpush1.bf16.msra.mxu0 %v3454
        %3686 = vmatprep.subr.bf16.mxu0 %v3459
        %3687 = vmatpush1.bf16.msra.mxu0 %v3458
        %3688 = vmatprep.subr.bf16.mxu0 %v3463
        %3689 = vmatpush1.bf16.msra.mxu0 %v3462
        %3690 = vmatprep.mubr.bf16.mxu0 %v2865
        %3691 = vmatmul.mubr.bf16.gmra.mrb[0].mxu0 %v2864
        %v3692 = vpop.f32.mrb[0].mxu0
        %v3693 = vadd.f32 %v3001, %v3692
        %v3694 = vpop.f32.mrb[0].mxu0
        %v3695 = vadd.f32 %v3005, %v3694
        %v3696 = vpop.f32.mrb[0].mxu0
        %v3697 = vpop.f32.mrb[0].mxu0
        %3698 = vdwg.mxu0
        %3699 = vmatprep.subr.bf16.mxu0 %v3467
        %3700 = vmatpush1.bf16.msra.mxu0 %v3466
        %3701 = vmatprep.subr.bf16.mxu0 %v3471
        %3702 = vmatpush1.bf16.msra.mxu0 %v3470
        %3703 = vmatprep.subr.bf16.mxu0 %v3475
        %3704 = vmatpush1.bf16.msra.mxu0 %v3474
        %3705 = vmatprep.subr.bf16.mxu0 %v3479
        %3706 = vmatpush1.bf16.msra.mxu0 %v3478
        %3707 = vmatprep.subr.bf16.mxu0 %v3483
        %3708 = vmatpush1.bf16.msra.mxu0 %v3482
        %3709 = vmatprep.subr.bf16.mxu0 %v3487
        %3710 = vmatpush1.bf16.msra.mxu0 %v3486
        %3711 = vmatprep.subr.bf16.mxu0 %v3491
        %3712 = vmatpush1.bf16.msra.mxu0 %v3490
        %3713 = vmatprep.subr.bf16.mxu0 %v3495
        %3714 = vmatpush1.bf16.msra.mxu0 %v3494
        %3715 = vmatprep.subr.bf16.mxu0 %v3499
        %3716 = vmatpush1.bf16.msra.mxu0 %v3498
        %3717 = vmatprep.subr.bf16.mxu0 %v3503
        %3718 = vmatpush1.bf16.msra.mxu0 %v3502
        %3719 = vmatprep.subr.bf16.mxu0 %v3507
        %3720 = vmatpush1.bf16.msra.mxu0 %v3506
        %3721 = vmatprep.subr.bf16.mxu0 %v3511
        %3722 = vmatpush1.bf16.msra.mxu0 %v3510
        %3723 = vmatprep.subr.bf16.mxu0 %v3515
        %3724 = vmatpush1.bf16.msra.mxu0 %v3514
        %3725 = vmatprep.subr.bf16.mxu0 %v3519
        %3726 = vmatpush1.bf16.msra.mxu0 %v3518
        %3727 = vmatprep.subr.bf16.mxu0 %v3523
        %3728 = vmatpush1.bf16.msra.mxu0 %v3522
        %3729 = vmatprep.subr.bf16.mxu0 %v3527
        %3730 = vmatpush1.bf16.msra.mxu0 %v3526
        %3731 = vmatprep.mubr.bf16.mxu0 %v2867
        %3732 = vmatmul.mubr.bf16.gmra.mrb[0].mxu0 %v2866
        %v3733 = vpop.f32.mrb[0].mxu0
        %v3734 = vadd.f32 %v3693, %v3733
        %v3735 = vpop.f32.mrb[0].mxu0
        %v3736 = vadd.f32 %v3695, %v3735
        %v3737 = vpop.f32.mrb[0].mxu0
        %v3738 = vpop.f32.mrb[0].mxu0
        %3739 = vdwg.mxu0
        %3740 = vmatprep.subr.bf16.mxu0 %v3405
        %3741 = vmatpush1.bf16.msra.mxu0 %v3404
        %3742 = vmatprep.subr.bf16.mxu0 %v3409
        %3743 = vmatpush1.bf16.msra.mxu0 %v3408
        %3744 = vmatprep.subr.bf16.mxu0 %v3413
        %3745 = vmatpush1.bf16.msra.mxu0 %v3412
        %3746 = vmatprep.subr.bf16.mxu0 %v3417
        %3747 = vmatpush1.bf16.msra.mxu0 %v3416
        %3748 = vmatprep.subr.bf16.mxu0 %v3421
        %3749 = vmatpush1.bf16.msra.mxu0 %v3420
        %3750 = vmatprep.subr.bf16.mxu0 %v3425
        %3751 = vmatpush1.bf16.msra.mxu0 %v3424
        %3752 = vmatprep.subr.bf16.mxu0 %v3429
        %3753 = vmatpush1.bf16.msra.mxu0 %v3428
        %3754 = vmatprep.subr.bf16.mxu0 %v3433
        %3755 = vmatpush1.bf16.msra.mxu0 %v3432
        %3756 = vmatprep.subr.bf16.mxu0 %v3437
        %3757 = vmatpush1.bf16.msra.mxu0 %v3436
        %3758 = vmatprep.subr.bf16.mxu0 %v3441
        %3759 = vmatpush1.bf16.msra.mxu0 %v3440
        %3760 = vmatprep.subr.bf16.mxu0 %v3445
        %3761 = vmatpush1.bf16.msra.mxu0 %v3444
        %3762 = vmatprep.subr.bf16.mxu0 %v3449
        %3763 = vmatpush1.bf16.msra.mxu0 %v3448
        %3764 = vmatprep.subr.bf16.mxu0 %v3453
        %3765 = vmatpush1.bf16.msra.mxu0 %v3452
        %3766 = vmatprep.subr.bf16.mxu0 %v3457
        %3767 = vmatpush1.bf16.msra.mxu0 %v3456
        %3768 = vmatprep.subr.bf16.mxu0 %v3461
        %3769 = vmatpush1.bf16.msra.mxu0 %v3460
        %3770 = vmatprep.subr.bf16.mxu0 %v3465
        %3771 = vmatpush1.bf16.msra.mxu0 %v3464
        %3772 = vmatprep.mubr.bf16.mxu0 %v2865
        %3773 = vmatmul.mubr.bf16.gmra.mrb[0].mxu0 %v2864
        %v3774 = vpop.f32.mrb[0].mxu0
        %v3775 = vadd.f32 %v3009, %v3774
        %v3776 = vpop.f32.mrb[0].mxu0
        %v3777 = vadd.f32 %v3013, %v3776
        %v3778 = vpop.f32.mrb[0].mxu0
        %v3779 = vpop.f32.mrb[0].mxu0
        %3780 = vdwg.mxu0
        %3781 = vmatprep.subr.bf16.mxu0 %v3469
        %3782 = vmatpush1.bf16.msra.mxu0 %v3468
        %3783 = vmatprep.subr.bf16.mxu0 %v3473
        %3784 = vmatpush1.bf16.msra.mxu0 %v3472
        %3785 = vmatprep.subr.bf16.mxu0 %v3477
        %3786 = vmatpush1.bf16.msra.mxu0 %v3476
        %3787 = vmatprep.subr.bf16.mxu0 %v3481
        %3788 = vmatpush1.bf16.msra.mxu0 %v3480
        %3789 = vmatprep.subr.bf16.mxu0 %v3485
        %3790 = vmatpush1.bf16.msra.mxu0 %v3484
        %3791 = vmatprep.subr.bf16.mxu0 %v3489
        %3792 = vmatpush1.bf16.msra.mxu0 %v3488
        %3793 = vmatprep.subr.bf16.mxu0 %v3493
        %3794 = vmatpush1.bf16.msra.mxu0 %v3492
        %3795 = vmatprep.subr.bf16.mxu0 %v3497
        %3796 = vmatpush1.bf16.msra.mxu0 %v3496
        %3797 = vmatprep.subr.bf16.mxu0 %v3501
        %3798 = vmatpush1.bf16.msra.mxu0 %v3500
        %3799 = vmatprep.subr.bf16.mxu0 %v3505
        %3800 = vmatpush1.bf16.msra.mxu0 %v3504
        %3801 = vmatprep.subr.bf16.mxu0 %v3509
        %3802 = vmatpush1.bf16.msra.mxu0 %v3508
        %3803 = vmatprep.subr.bf16.mxu0 %v3513
        %3804 = vmatpush1.bf16.msra.mxu0 %v3512
        %3805 = vmatprep.subr.bf16.mxu0 %v3517
        %3806 = vmatpush1.bf16.msra.mxu0 %v3516
        %3807 = vmatprep.subr.bf16.mxu0 %v3521
        %3808 = vmatpush1.bf16.msra.mxu0 %v3520
        %3809 = vmatprep.subr.bf16.mxu0 %v3525
        %3810 = vmatpush1.bf16.msra.mxu0 %v3524
        %3811 = vmatprep.subr.bf16.mxu0 %v3529
        %3812 = vmatpush1.bf16.msra.mxu0 %v3528
        %3813 = vmatprep.mubr.bf16.mxu0 %v2867
        %3814 = vmatmul.mubr.bf16.gmra.mrb[0].mxu0 %v2866
        %v3815 = vpop.f32.mrb[0].mxu0
        %v3816 = vadd.f32 %v3775, %v3815
        %v3817 = vpop.f32.mrb[0].mxu0
        %v3818 = vadd.f32 %v3777, %v3817
        %v3819 = vpop.f32.mrb[0].mxu0
        %v3820 = vpop.f32.mrb[0].mxu0
        %3821 = vdwg.mxu0
        %v3822 = vxor.u32 %v3734, 2147483648
        %v3823 = vxor.u32 %v3736, 2147483648
        %v3824 = vxor.u32 %v3816, 2147483648
        %v3825 = vxor.u32 %v3818, 2147483648
        %v3826 = vmul.f32 %v3822, 1.442695
        %v3827 = vpow.pop %v3826
        %v3828 = vmul.f32 %v3823, 1.442695
        %v3829 = vpow.pop %v3828
        %v3830 = vmul.f32 %v3824, 1.442695
        %v3831 = vpow.pop %v3830
        %v3832 = vmul.f32 %v3825, 1.442695
        %v3833 = vpow.pop %v3832
        %v3834 = vadd.f32 %v3827, 1.0
        %v3835 = vadd.f32 %v3829, 1.0
        %v3836 = vadd.f32 %v3831, 1.0
        %v3837 = vadd.f32 %v3833, 1.0
        %v3838 = vrcp.pop %v3834
        %v3839 = vmul.f32 1.0, %v3838
        %v3840 = vrcp.pop %v3835
        %v3841 = vmul.f32 1.0, %v3840
        %v3842 = vrcp.pop %v3836
        %v3843 = vmul.f32 1.0, %v3842
        %v3844 = vrcp.pop %v3837
        %v3845 = vmul.f32 1.0, %v3844
        %v3846 = vmul.f32 %v3734, %v3839
        %v3847 = vmul.f32 %v3736, %v3841
        %v3848 = vmul.f32 %v3816, %v3843
        %v3849 = vmul.f32 %v3818, %v3845
        %v3850 = vpack.c.bf16 %v3846, %v3846
        %v3851 = vpack.c.bf16 %v3847, %v3847
        %v3852 = vpack.c.bf16 %v3848, %v3848
        %v3853 = vpack.c.bf16 %v3849, %v3849
        %v3854 = vld [vmem:[#allocation13] sm:$0xff]
        %v3855 = vld [vmem:[#allocation13 + $0x8] sm:$0xff]
        %v3856 = vld [vmem:[#allocation13 + $0x10] sm:$0xff]
        %v3857 = vld [vmem:[#allocation13 + $0x18] sm:$0xff]
        %v3858 = vld [vmem:[#allocation13 + $0x20] sm:$0xff]
        %v3859 = vld [vmem:[#allocation13 + $0x28] sm:$0xff]
        %v3860 = vld [vmem:[#allocation13 + $0x30] sm:$0xff]
        %v3861 = vld [vmem:[#allocation13 + $0x38] sm:$0xff]
        %v3862 = vld [vmem:[#allocation13 + $0x40] sm:$0xff]
        %v3863 = vld [vmem:[#allocation13 + $0x48] sm:$0xff]
        %v3864 = vld [vmem:[#allocation13 + $0x50] sm:$0xff]
        %v3865 = vld [vmem:[#allocation13 + $0x58] sm:$0xff]
        %v3866 = vld [vmem:[#allocation13 + $0x60] sm:$0xff]
        %v3867 = vld [vmem:[#allocation13 + $0x68] sm:$0xff]
        %v3868 = vld [vmem:[#allocation13 + $0x70] sm:$0xff]
        %v3869 = vld [vmem:[#allocation13 + $0x78] sm:$0xff]
        %v3870 = vld [vmem:[#allocation13 + $0x80] sm:$0xff]
        %v3871 = vld [vmem:[#allocation13 + $0x88] sm:$0xff]
        %v3872 = vld [vmem:[#allocation13 + $0x90] sm:$0xff]
        %v3873 = vld [vmem:[#allocation13 + $0x98] sm:$0xff]
        %v3874 = vld [vmem:[#allocation13 + $0xa0] sm:$0xff]
        %v3875 = vld [vmem:[#allocation13 + $0xa8] sm:$0xff]
        %v3876 = vld [vmem:[#allocation13 + $0xb0] sm:$0xff]
        %v3877 = vld [vmem:[#allocation13 + $0xb8] sm:$0xff]
        %v3878 = vld [vmem:[#allocation13 + $0xc0] sm:$0xff]
        %v3879 = vld [vmem:[#allocation13 + $0xc8] sm:$0xff]
        %v3880 = vld [vmem:[#allocation13 + $0xd0] sm:$0xff]
        %v3881 = vld [vmem:[#allocation13 + $0xd8] sm:$0xff]
        %v3882 = vld [vmem:[#allocation13 + $0xe0] sm:$0xff]
        %v3883 = vld [vmem:[#allocation13 + $0xe8] sm:$0xff]
        %v3884 = vld [vmem:[#allocation13 + $0xf0] sm:$0xff]
        %v3885 = vld [vmem:[#allocation13 + $0xf8] sm:$0xff]
        %v3886 = vld [vmem:[#allocation13 + $0x100] sm:$0xff]
        %v3887 = vld [vmem:[#allocation13 + $0x108] sm:$0xff]
        %v3888 = vld [vmem:[#allocation13 + $0x110] sm:$0xff]
        %v3889 = vld [vmem:[#allocation13 + $0x118] sm:$0xff]
        %v3890 = vld [vmem:[#allocation13 + $0x120] sm:$0xff]
        %v3891 = vld [vmem:[#allocation13 + $0x128] sm:$0xff]
        %v3892 = vld [vmem:[#allocation13 + $0x130] sm:$0xff]
        %v3893 = vld [vmem:[#allocation13 + $0x138] sm:$0xff]
        %v3894 = vld [vmem:[#allocation13 + $0x140] sm:$0xff]
        %v3895 = vld [vmem:[#allocation13 + $0x148] sm:$0xff]
        %v3896 = vld [vmem:[#allocation13 + $0x150] sm:$0xff]
        %v3897 = vld [vmem:[#allocation13 + $0x158] sm:$0xff]
        %v3898 = vld [vmem:[#allocation13 + $0x160] sm:$0xff]
        %v3899 = vld [vmem:[#allocation13 + $0x168] sm:$0xff]
        %v3900 = vld [vmem:[#allocation13 + $0x170] sm:$0xff]
        %v3901 = vld [vmem:[#allocation13 + $0x178] sm:$0xff]
        %v3902 = vld [vmem:[#allocation13 + $0x180] sm:$0xff]
        %v3903 = vld [vmem:[#allocation13 + $0x188] sm:$0xff]
        %v3904 = vld [vmem:[#allocation13 + $0x190] sm:$0xff]
        %v3905 = vld [vmem:[#allocation13 + $0x198] sm:$0xff]
        %v3906 = vld [vmem:[#allocation13 + $0x1a0] sm:$0xff]
        %v3907 = vld [vmem:[#allocation13 + $0x1a8] sm:$0xff]
        %v3908 = vld [vmem:[#allocation13 + $0x1b0] sm:$0xff]
        %v3909 = vld [vmem:[#allocation13 + $0x1b8] sm:$0xff]
        %v3910 = vld [vmem:[#allocation13 + $0x1c0] sm:$0xff]
        %v3911 = vld [vmem:[#allocation13 + $0x1c8] sm:$0xff]
        %v3912 = vld [vmem:[#allocation13 + $0x1d0] sm:$0xff]
        %v3913 = vld [vmem:[#allocation13 + $0x1d8] sm:$0xff]
        %v3914 = vld [vmem:[#allocation13 + $0x1e0] sm:$0xff]
        %v3915 = vld [vmem:[#allocation13 + $0x1e8] sm:$0xff]
        %v3916 = vld [vmem:[#allocation13 + $0x1f0] sm:$0xff]
        %v3917 = vld [vmem:[#allocation13 + $0x1f8] sm:$0xff]
        %v3918 = vld [vmem:[%s10] sm:$0x3]
        %v3920 = vlaneseq
        %v3921 = vshrl.u32 %v3920, 7
        %v3922 = vsub.s32 0, %v3921
        %v3923 = vrot.slane %v3918, %v3922
        %v3924 = vlaneseq
        %v3925 = vshrl.u32 %v3924, 7
        %v3926 = vsub.s32 1, %v3925
        %v3927 = vrot.slane %v3918, %v3926
        %v3994 = vunpack.c.l.b16 %v3854
        %v3995 = vunpack.c.h.b16 %v3854
        %v3996 = vunpack.c.l.b16 %v3855
        %v3997 = vunpack.c.h.b16 %v3855
        %v3998 = vunpack.c.l.b16 %v3856
        %v3999 = vunpack.c.h.b16 %v3856
        %v4000 = vunpack.c.l.b16 %v3857
        %v4001 = vunpack.c.h.b16 %v3857
        %v4002 = vunpack.c.l.b16 %v3858
        %v4003 = vunpack.c.h.b16 %v3858
        %v4004 = vunpack.c.l.b16 %v3859
        %v4005 = vunpack.c.h.b16 %v3859
        %v4006 = vunpack.c.l.b16 %v3860
        %v4007 = vunpack.c.h.b16 %v3860
        %v4008 = vunpack.c.l.b16 %v3861
        %v4009 = vunpack.c.h.b16 %v3861
        %v4010 = vunpack.c.l.b16 %v3862
        %v4011 = vunpack.c.h.b16 %v3862
        %v4012 = vunpack.c.l.b16 %v3863
        %v4013 = vunpack.c.h.b16 %v3863
        %v4014 = vunpack.c.l.b16 %v3864
        %v4015 = vunpack.c.h.b16 %v3864
        %v4016 = vunpack.c.l.b16 %v3865
        %v4017 = vunpack.c.h.b16 %v3865
        %v4018 = vunpack.c.l.b16 %v3866
        %v4019 = vunpack.c.h.b16 %v3866
        %v4020 = vunpack.c.l.b16 %v3867
        %v4021 = vunpack.c.h.b16 %v3867
        %v4022 = vunpack.c.l.b16 %v3868
        %v4023 = vunpack.c.h.b16 %v3868
        %v4024 = vunpack.c.l.b16 %v3869
        %v4025 = vunpack.c.h.b16 %v3869
        %v4026 = vunpack.c.l.b16 %v3870
        %v4027 = vunpack.c.h.b16 %v3870
        %v4028 = vunpack.c.l.b16 %v3871
        %v4029 = vunpack.c.h.b16 %v3871
        %v4030 = vunpack.c.l.b16 %v3872
        %v4031 = vunpack.c.h.b16 %v3872
        %v4032 = vunpack.c.l.b16 %v3873
        %v4033 = vunpack.c.h.b16 %v3873
        %v4034 = vunpack.c.l.b16 %v3874
        %v4035 = vunpack.c.h.b16 %v3874
        %v4036 = vunpack.c.l.b16 %v3875
        %v4037 = vunpack.c.h.b16 %v3875
        %v4038 = vunpack.c.l.b16 %v3876
        %v4039 = vunpack.c.h.b16 %v3876
        %v4040 = vunpack.c.l.b16 %v3877
        %v4041 = vunpack.c.h.b16 %v3877
        %v4042 = vunpack.c.l.b16 %v3878
        %v4043 = vunpack.c.h.b16 %v3878
        %v4044 = vunpack.c.l.b16 %v3879
        %v4045 = vunpack.c.h.b16 %v3879
        %v4046 = vunpack.c.l.b16 %v3880
        %v4047 = vunpack.c.h.b16 %v3880
        %v4048 = vunpack.c.l.b16 %v3881
        %v4049 = vunpack.c.h.b16 %v3881
        %v4050 = vunpack.c.l.b16 %v3882
        %v4051 = vunpack.c.h.b16 %v3882
        %v4052 = vunpack.c.l.b16 %v3883
        %v4053 = vunpack.c.h.b16 %v3883
        %v4054 = vunpack.c.l.b16 %v3884
        %v4055 = vunpack.c.h.b16 %v3884
        %v4056 = vunpack.c.l.b16 %v3885
        %v4057 = vunpack.c.h.b16 %v3885
        %v4058 = vunpack.c.l.b16 %v3886
        %v4059 = vunpack.c.h.b16 %v3886
        %v4060 = vunpack.c.l.b16 %v3887
        %v4061 = vunpack.c.h.b16 %v3887
        %v4062 = vunpack.c.l.b16 %v3888
        %v4063 = vunpack.c.h.b16 %v3888
        %v4064 = vunpack.c.l.b16 %v3889
        %v4065 = vunpack.c.h.b16 %v3889
        %v4066 = vunpack.c.l.b16 %v3890
        %v4067 = vunpack.c.h.b16 %v3890
        %v4068 = vunpack.c.l.b16 %v3891
        %v4069 = vunpack.c.h.b16 %v3891
        %v4070 = vunpack.c.l.b16 %v3892
        %v4071 = vunpack.c.h.b16 %v3892
        %v4072 = vunpack.c.l.b16 %v3893
        %v4073 = vunpack.c.h.b16 %v3893
        %v4074 = vunpack.c.l.b16 %v3894
        %v4075 = vunpack.c.h.b16 %v3894
        %v4076 = vunpack.c.l.b16 %v3895
        %v4077 = vunpack.c.h.b16 %v3895
        %v4078 = vunpack.c.l.b16 %v3896
        %v4079 = vunpack.c.h.b16 %v3896
        %v4080 = vunpack.c.l.b16 %v3897
        %v4081 = vunpack.c.h.b16 %v3897
        %v4082 = vunpack.c.l.b16 %v3898
        %v4083 = vunpack.c.h.b16 %v3898
        %v4084 = vunpack.c.l.b16 %v3899
        %v4085 = vunpack.c.h.b16 %v3899
        %v4086 = vunpack.c.l.b16 %v3900
        %v4087 = vunpack.c.h.b16 %v3900
        %v4088 = vunpack.c.l.b16 %v3901
        %v4089 = vunpack.c.h.b16 %v3901
        %v4090 = vunpack.c.l.b16 %v3902
        %v4091 = vunpack.c.h.b16 %v3902
        %v4092 = vunpack.c.l.b16 %v3903
        %v4093 = vunpack.c.h.b16 %v3903
        %v4094 = vunpack.c.l.b16 %v3904
        %v4095 = vunpack.c.h.b16 %v3904
        %v4096 = vunpack.c.l.b16 %v3905
        %v4097 = vunpack.c.h.b16 %v3905
        %v4098 = vunpack.c.l.b16 %v3906
        %v4099 = vunpack.c.h.b16 %v3906
        %v4100 = vunpack.c.l.b16 %v3907
        %v4101 = vunpack.c.h.b16 %v3907
        %v4102 = vunpack.c.l.b16 %v3908
        %v4103 = vunpack.c.h.b16 %v3908
        %v4104 = vunpack.c.l.b16 %v3909
        %v4105 = vunpack.c.h.b16 %v3909
        %v4106 = vunpack.c.l.b16 %v3910
        %v4107 = vunpack.c.h.b16 %v3910
        %v4108 = vunpack.c.l.b16 %v3911
        %v4109 = vunpack.c.h.b16 %v3911
        %v4110 = vunpack.c.l.b16 %v3912
        %v4111 = vunpack.c.h.b16 %v3912
        %v4112 = vunpack.c.l.b16 %v3913
        %v4113 = vunpack.c.h.b16 %v3913
        %v4114 = vunpack.c.l.b16 %v3914
        %v4115 = vunpack.c.h.b16 %v3914
        %v4116 = vunpack.c.l.b16 %v3915
        %v4117 = vunpack.c.h.b16 %v3915
        %v4118 = vunpack.c.l.b16 %v3916
        %v4119 = vunpack.c.h.b16 %v3916
        %v4120 = vunpack.c.l.b16 %v3917
        %v4121 = vunpack.c.h.b16 %v3917
        %v4122 = vpack.c.b16 %v3996, %v3994
        %v4123 = vpack.c.b16 %v3997, %v3995
        %v4124 = vpack.c.b16 %v4000, %v3998
        %v4125 = vpack.c.b16 %v4001, %v3999
        %v4126 = vpack.c.b16 %v4004, %v4002
        %v4127 = vpack.c.b16 %v4005, %v4003
        %v4128 = vpack.c.b16 %v4008, %v4006
        %v4129 = vpack.c.b16 %v4009, %v4007
        %v4130 = vpack.c.b16 %v4012, %v4010
        %v4131 = vpack.c.b16 %v4013, %v4011
        %v4132 = vpack.c.b16 %v4016, %v4014
        %v4133 = vpack.c.b16 %v4017, %v4015
        %v4134 = vpack.c.b16 %v4020, %v4018
        %v4135 = vpack.c.b16 %v4021, %v4019
        %v4136 = vpack.c.b16 %v4024, %v4022
        %v4137 = vpack.c.b16 %v4025, %v4023
        %v4138 = vpack.c.b16 %v4028, %v4026
        %v4139 = vpack.c.b16 %v4029, %v4027
        %v4140 = vpack.c.b16 %v4032, %v4030
        %v4141 = vpack.c.b16 %v4033, %v4031
        %v4142 = vpack.c.b16 %v4036, %v4034
        %v4143 = vpack.c.b16 %v4037, %v4035
        %v4144 = vpack.c.b16 %v4040, %v4038
        %v4145 = vpack.c.b16 %v4041, %v4039
        %v4146 = vpack.c.b16 %v4044, %v4042
        %v4147 = vpack.c.b16 %v4045, %v4043
        %v4148 = vpack.c.b16 %v4048, %v4046
        %v4149 = vpack.c.b16 %v4049, %v4047
        %v4150 = vpack.c.b16 %v4052, %v4050
        %v4151 = vpack.c.b16 %v4053, %v4051
        %v4152 = vpack.c.b16 %v4056, %v4054
        %v4153 = vpack.c.b16 %v4057, %v4055
        %v4154 = vpack.c.b16 %v4060, %v4058
        %v4155 = vpack.c.b16 %v4061, %v4059
        %v4156 = vpack.c.b16 %v4064, %v4062
        %v4157 = vpack.c.b16 %v4065, %v4063
        %v4158 = vpack.c.b16 %v4068, %v4066
        %v4159 = vpack.c.b16 %v4069, %v4067
        %v4160 = vpack.c.b16 %v4072, %v4070
        %v4161 = vpack.c.b16 %v4073, %v4071
        %v4162 = vpack.c.b16 %v4076, %v4074
        %v4163 = vpack.c.b16 %v4077, %v4075
        %v4164 = vpack.c.b16 %v4080, %v4078
        %v4165 = vpack.c.b16 %v4081, %v4079
        %v4166 = vpack.c.b16 %v4084, %v4082
        %v4167 = vpack.c.b16 %v4085, %v4083
        %v4168 = vpack.c.b16 %v4088, %v4086
        %v4169 = vpack.c.b16 %v4089, %v4087
        %v4170 = vpack.c.b16 %v4092, %v4090
        %v4171 = vpack.c.b16 %v4093, %v4091
        %v4172 = vpack.c.b16 %v4096, %v4094
        %v4173 = vpack.c.b16 %v4097, %v4095
        %v4174 = vpack.c.b16 %v4100, %v4098
        %v4175 = vpack.c.b16 %v4101, %v4099
        %v4176 = vpack.c.b16 %v4104, %v4102
        %v4177 = vpack.c.b16 %v4105, %v4103
        %v4178 = vpack.c.b16 %v4108, %v4106
        %v4179 = vpack.c.b16 %v4109, %v4107
        %v4180 = vpack.c.b16 %v4112, %v4110
        %v4181 = vpack.c.b16 %v4113, %v4111
        %v4182 = vpack.c.b16 %v4116, %v4114
        %v4183 = vpack.c.b16 %v4117, %v4115
        %v4184 = vpack.c.b16 %v4120, %v4118
        %v4185 = vpack.c.b16 %v4121, %v4119
        %4250 = vmatprep.subr.bf16.mxu0 %v4123
        %4251 = vmatpush1.bf16.msra.mxu0 %v4122
        %4252 = vmatprep.subr.bf16.mxu0 %v4125
        %4253 = vmatpush1.bf16.msra.mxu0 %v4124
        %4254 = vmatprep.subr.bf16.mxu0 %v4127
        %4255 = vmatpush1.bf16.msra.mxu0 %v4126
        %4256 = vmatprep.subr.bf16.mxu0 %v4129
        %4257 = vmatpush1.bf16.msra.mxu0 %v4128
        %4258 = vmatprep.subr.bf16.mxu0 %v4131
        %4259 = vmatpush1.bf16.msra.mxu0 %v4130
        %4260 = vmatprep.subr.bf16.mxu0 %v4133
        %4261 = vmatpush1.bf16.msra.mxu0 %v4132
        %4262 = vmatprep.subr.bf16.mxu0 %v4135
        %4263 = vmatpush1.bf16.msra.mxu0 %v4134
        %4264 = vmatprep.subr.bf16.mxu0 %v4137
        %4265 = vmatpush1.bf16.msra.mxu0 %v4136
        %4266 = vmatprep.subr.bf16.mxu0 %v4139
        %4267 = vmatpush1.bf16.msra.mxu0 %v4138
        %4268 = vmatprep.subr.bf16.mxu0 %v4141
        %4269 = vmatpush1.bf16.msra.mxu0 %v4140
        %4270 = vmatprep.subr.bf16.mxu0 %v4143
        %4271 = vmatpush1.bf16.msra.mxu0 %v4142
        %4272 = vmatprep.subr.bf16.mxu0 %v4145
        %4273 = vmatpush1.bf16.msra.mxu0 %v4144
        %4274 = vmatprep.subr.bf16.mxu0 %v4147
        %4275 = vmatpush1.bf16.msra.mxu0 %v4146
        %4276 = vmatprep.subr.bf16.mxu0 %v4149
        %4277 = vmatpush1.bf16.msra.mxu0 %v4148
        %4278 = vmatprep.subr.bf16.mxu0 %v4151
        %4279 = vmatpush1.bf16.msra.mxu0 %v4150
        %4280 = vmatprep.subr.bf16.mxu0 %v4153
        %4281 = vmatpush1.bf16.msra.mxu0 %v4152
        %4282 = vmatprep.mubr.bf16.mxu0 %v3851
        %4283 = vmatmul.mubr.bf16.gmra.mrb[0].mxu0 %v3850
        %v4284 = vpop.f32.mrb[0].mxu0
        %v4285 = vadd.f32 %v3923, %v4284
        %v4286 = vpop.f32.mrb[0].mxu0
        %v4287 = vadd.f32 %v3927, %v4286
        %v4288 = vpop.f32.mrb[0].mxu0
        %v4289 = vpop.f32.mrb[0].mxu0
        %4290 = vdwg.mxu0
        %4291 = vmatprep.subr.bf16.mxu0 %v4155
        %4292 = vmatpush1.bf16.msra.mxu0 %v4154
        %4293 = vmatprep.subr.bf16.mxu0 %v4157
        %4294 = vmatpush1.bf16.msra.mxu0 %v4156
        %4295 = vmatprep.subr.bf16.mxu0 %v4159
        %4296 = vmatpush1.bf16.msra.mxu0 %v4158
        %4297 = vmatprep.subr.bf16.mxu0 %v4161
        %4298 = vmatpush1.bf16.msra.mxu0 %v4160
        %4299 = vmatprep.subr.bf16.mxu0 %v4163
        %4300 = vmatpush1.bf16.msra.mxu0 %v4162
        %4301 = vmatprep.subr.bf16.mxu0 %v4165
        %4302 = vmatpush1.bf16.msra.mxu0 %v4164
        %4303 = vmatprep.subr.bf16.mxu0 %v4167
        %4304 = vmatpush1.bf16.msra.mxu0 %v4166
        %4305 = vmatprep.subr.bf16.mxu0 %v4169
        %4306 = vmatpush1.bf16.msra.mxu0 %v4168
        %4307 = vmatprep.subr.bf16.mxu0 %v4171
        %4308 = vmatpush1.bf16.msra.mxu0 %v4170
        %4309 = vmatprep.subr.bf16.mxu0 %v4173
        %4310 = vmatpush1.bf16.msra.mxu0 %v4172
        %4311 = vmatprep.subr.bf16.mxu0 %v4175
        %4312 = vmatpush1.bf16.msra.mxu0 %v4174
        %4313 = vmatprep.subr.bf16.mxu0 %v4177
        %4314 = vmatpush1.bf16.msra.mxu0 %v4176
        %4315 = vmatprep.subr.bf16.mxu0 %v4179
        %4316 = vmatpush1.bf16.msra.mxu0 %v4178
        %4317 = vmatprep.subr.bf16.mxu0 %v4181
        %4318 = vmatpush1.bf16.msra.mxu0 %v4180
        %4319 = vmatprep.subr.bf16.mxu0 %v4183
        %4320 = vmatpush1.bf16.msra.mxu0 %v4182
        %4321 = vmatprep.subr.bf16.mxu0 %v4185
        %4322 = vmatpush1.bf16.msra.mxu0 %v4184
        %4323 = vmatprep.mubr.bf16.mxu0 %v3853
        %4324 = vmatmul.mubr.bf16.gmra.mrb[0].mxu0 %v3852
        %v4325 = vpop.f32.mrb[0].mxu0
        %v4326 = vadd.f32 %v4285, %v4325
        %v4327 = vpop.f32.mrb[0].mxu0
        %v4328 = vadd.f32 %v4287, %v4327
        %v4329 = vpop.f32.mrb[0].mxu0
        %v4330 = vpop.f32.mrb[0].mxu0
        %4331 = vdwg.mxu0
        %v4332 = vxor.u32 %v4326, 2147483648
        %v4333 = vxor.u32 %v4328, 2147483648
        %v4334 = vmul.f32 %v4332, 1.442695
        %v4335 = vpow.pop %v4334
        %v4336 = vmul.f32 %v4333, 1.442695
        %v4337 = vpow.pop %v4336
        %v4338 = vadd.f32 %v4335, 1.0
        %v4339 = vadd.f32 %v4337, 1.0
        %v4340 = vrcp.pop %v4338
        %v4341 = vmul.f32 1.0, %v4340
        %v4342 = vrcp.pop %v4339
        %v4343 = vmul.f32 1.0, %v4342
        %v4344 = vmul.f32 %v4326, %v4341
        %v4345 = vmul.f32 %v4328, %v4343
        %v4347 = vlaneseq
        %v4348 = vshrl.u32 %v4347, 7
        %v4349 = vsub.s32 0, %v4348
        %v4350 = vrot.slane %v2792, %v4349
        %v4351 = vlaneseq
        %v4352 = vshrl.u32 %v4351, 7
        %v4353 = vsub.s32 1, %v4352
        %v4354 = vrot.slane %v2792, %v4353
        %v4357 = vmul.f32 %v4344, %v4350
        %v4358 = vmul.f32 %v4345, %v4354
        %v4359 = vadd.f32 %v4357, %v4358
        %4360 = vadd.xlane.f32.xlu0 %v4359
        %v4361 = vpop.xlane.xlu0 %4360
        %v4363 = vlaneseq
        %v4364 = vshrl.u32 %v4363, 7
        %v4365 = vsub.s32 0, %v4364
        %v4366 = vrot.slane %v2793, %v4365
        %v4368 = vadd.f32 %v4361, %v4366
        %v4369 = vlaneseq
        %v4370 = vshrl.u32 %v4369, 7
        %v4371 = vsub.s32 0, %v4370
        %v4372 = vrot.slane %v614, %v4371
        %v4373 = vlaneseq
        %v4374 = vshrl.u32 %v4373, 7
        %v4375 = vsub.s32 4, %v4374
        %v4376 = vrot.slane %v614, %v4375
        %v4377 = vlaneseq
        %v4378 = vshrl.u32 %v4377, 7
        %v4379 = vsub.s32 0, %v4378
        %v4380 = vrot.slane %v615, %v4379
        %v4381 = vlaneseq
        %v4382 = vshrl.u32 %v4381, 7
        %v4383 = vsub.s32 4, %v4382
        %v4384 = vrot.slane %v615, %v4383
        %v4389 = vlaneseq
        %v4390 = vshrl.u32 %v4389, 7
        %v4391 = vsub.s32 0, %v4390
        %v4392 = vrot.slane %v4372, %v4391
        %v4393 = vlaneseq
        %v4394 = vshrl.u32 %v4393, 7
        %v4395 = vsub.s32 0, %v4394
        %v4396 = vrot.slane %v4376, %v4395
        %v4397 = vlaneseq
        %v4398 = vshrl.u32 %v4397, 7
        %v4399 = vsub.s32 0, %v4398
        %v4400 = vrot.slane %v4380, %v4399
        %v4401 = vlaneseq
        %v4402 = vshrl.u32 %v4401, 7
        %v4403 = vsub.s32 0, %v4402
        %v4404 = vrot.slane %v4384, %v4403
        %v4405 = vsub.f32 %v610, %v4392
        %v4406 = vsub.f32 %v611, %v4396
        %v4407 = vsub.f32 %v612, %v4400
        %v4408 = vsub.f32 %v613, %v4404
        %v4409 = vmul.f32 %v4405, %v4405
        %v4410 = vmul.f32 %v4406, %v4406
        %v4411 = vmul.f32 %v4407, %v4407
        %v4412 = vmul.f32 %v4408, %v4408
        %v4413 = vadd.f32 %v4409, %v4410
        %v4414 = vadd.f32 %v4413, %v4411
        %v4415 = vadd.f32 %v4414, %v4412
        %4416 = vadd.xlane.f32.xlu0 %v4415
        %v4417 = vpop.xlane.xlu0 %4416
        %v4418 = vrsqrt.pop %v4417
        %v4419 = vmul.f32 %v4417, %v4418
        %vm4420 = vcmp.eq.f32.partialorder %v4417, inf
        %v4421 = vsel %vm4420, %v4417, %v4419
        %vm4422 = vcmp.eq.f32.partialorder %v4417, 0.0
        %v4423 = vand.u32 %v4417, 2147483648
        %v4424 = vsel %vm4422, %v4423, %v4421
        %v4425 = vmul.f32 %v4424, 0.1
        %v4426 = vadd.f32 %v4368, %v4425
        %vm4427 = vcmp.eq.s32.totalorder %v2795, 0
        %4429 = vset.pattern.permute.xlu0 0
        %4430 = vperm.xlu0 %4429, %v4426
        %v4431 = vpop.permute.xlu0 %4430
        %v4433 = vsel %vm4427, %v4431, 0.0
        %v4434 = vadd.f32 %v4433, 0.0
        %v4435 = vlaneseq
        %v4436 = vshrl.u32 %v4435, 7
        %v4437 = vsub.s32 1, %v4436
        %v4438 = vrot.slane %v2407, %v4437
        %v4439 = vlaneseq
        %v4440 = vshrl.u32 %v4439, 7
        %v4441 = vsub.s32 1, %v4440
        %v4442 = vrot.slane %v2409, %v4441
        %v4443 = vlaneseq
        %v4444 = vshrl.u32 %v4443, 7
        %v4445 = vsub.s32 1, %v4444
        %v4446 = vrot.slane %v2489, %v4445
        %v4447 = vlaneseq
        %v4448 = vshrl.u32 %v4447, 7
        %v4449 = vsub.s32 1, %v4448
        %v4450 = vrot.slane %v2491, %v4449
        %v4451 = vadd.f32 %v1465, %v4438
        %v4452 = vadd.f32 %v1467, %v4442
        %v4453 = vadd.f32 %v1547, %v4446
        %v4454 = vadd.f32 %v1549, %v4450
        %v4455 = vadd.f32 %v4451, %v2819
        %v4456 = vadd.f32 %v4452, %v2823
        %v4457 = vadd.f32 %v4453, %v2827
        %v4458 = vadd.f32 %v4454, %v2831
        %v4459 = vxor.u32 %v4455, 2147483648
        %v4460 = vxor.u32 %v4456, 2147483648
        %v4461 = vxor.u32 %v4457, 2147483648
        %v4462 = vxor.u32 %v4458, 2147483648
        %v4463 = vmul.f32 %v4459, 1.442695
        %v4464 = vpow.pop %v4463
        %v4465 = vmul.f32 %v4460, 1.442695
        %v4466 = vpow.pop %v4465
        %v4467 = vmul.f32 %v4461, 1.442695
        %v4468 = vpow.pop %v4467
        %v4469 = vmul.f32 %v4462, 1.442695
        %v4470 = vpow.pop %v4469
        %v4471 = vadd.f32 %v4464, 1.0
        %v4472 = vadd.f32 %v4466, 1.0
        %v4473 = vadd.f32 %v4468, 1.0
        %v4474 = vadd.f32 %v4470, 1.0
        %v4475 = vrcp.pop %v4471
        %v4476 = vmul.f32 1.0, %v4475
        %v4477 = vrcp.pop %v4472
        %v4478 = vmul.f32 1.0, %v4477
        %v4479 = vrcp.pop %v4473
        %v4480 = vmul.f32 1.0, %v4479
        %v4481 = vrcp.pop %v4474
        %v4482 = vmul.f32 1.0, %v4481
        %v4483 = vmul.f32 %v4455, %v4476
        %v4484 = vmul.f32 %v4456, %v4478
        %v4485 = vmul.f32 %v4457, %v4480
        %v4486 = vmul.f32 %v4458, %v4482
        %v4487 = vpack.c.bf16 %v4483, %v4483
        %v4488 = vpack.c.bf16 %v4484, %v4484
        %v4489 = vpack.c.bf16 %v4485, %v4485
        %v4490 = vpack.c.bf16 %v4486, %v4486
        %4491 = vmatprep.subr.bf16.mxu0 %v3403
        %4492 = vmatpush1.bf16.msra.mxu0 %v3402
        %4493 = vmatprep.subr.bf16.mxu0 %v3407
        %4494 = vmatpush1.bf16.msra.mxu0 %v3406
        %4495 = vmatprep.subr.bf16.mxu0 %v3411
        %4496 = vmatpush1.bf16.msra.mxu0 %v3410
        %4497 = vmatprep.subr.bf16.mxu0 %v3415
        %4498 = vmatpush1.bf16.msra.mxu0 %v3414
        %4499 = vmatprep.subr.bf16.mxu0 %v3419
        %4500 = vmatpush1.bf16.msra.mxu0 %v3418
        %4501 = vmatprep.subr.bf16.mxu0 %v3423
        %4502 = vmatpush1.bf16.msra.mxu0 %v3422
        %4503 = vmatprep.subr.bf16.mxu0 %v3427
        %4504 = vmatpush1.bf16.msra.mxu0 %v3426
        %4505 = vmatprep.subr.bf16.mxu0 %v3431
        %4506 = vmatpush1.bf16.msra.mxu0 %v3430
        %4507 = vmatprep.subr.bf16.mxu0 %v3435
        %4508 = vmatpush1.bf16.msra.mxu0 %v3434
        %4509 = vmatprep.subr.bf16.mxu0 %v3439
        %4510 = vmatpush1.bf16.msra.mxu0 %v3438
        %4511 = vmatprep.subr.bf16.mxu0 %v3443
        %4512 = vmatpush1.bf16.msra.mxu0 %v3442
        %4513 = vmatprep.subr.bf16.mxu0 %v3447
        %4514 = vmatpush1.bf16.msra.mxu0 %v3446
        %4515 = vmatprep.subr.bf16.mxu0 %v3451
        %4516 = vmatpush1.bf16.msra.mxu0 %v3450
        %4517 = vmatprep.subr.bf16.mxu0 %v3455
        %4518 = vmatpush1.bf16.msra.mxu0 %v3454
        %4519 = vmatprep.subr.bf16.mxu0 %v3459
        %4520 = vmatpush1.bf16.msra.mxu0 %v3458
        %4521 = vmatprep.subr.bf16.mxu0 %v3463
        %4522 = vmatpush1.bf16.msra.mxu0 %v3462
        %4523 = vmatprep.mubr.bf16.mxu0 %v4488
        %4524 = vmatmul.mubr.bf16.gmra.mrb[0].mxu0 %v4487
        %v4525 = vpop.f32.mrb[0].mxu0
        %v4526 = vadd.f32 %v3001, %v4525
        %v4527 = vpop.f32.mrb[0].mxu0
        %v4528 = vadd.f32 %v3005, %v4527
        %v4529 = vpop.f32.mrb[0].mxu0
        %v4530 = vpop.f32.mrb[0].mxu0
        %4531 = vdwg.mxu0
        %4532 = vmatprep.subr.bf16.mxu0 %v3467
        %4533 = vmatpush1.bf16.msra.mxu0 %v3466
        %4534 = vmatprep.subr.bf16.mxu0 %v3471
        %4535 = vmatpush1.bf16.msra.mxu0 %v3470
        %4536 = vmatprep.subr.bf16.mxu0 %v3475
        %4537 = vmatpush1.bf16.msra.mxu0 %v3474
        %4538 = vmatprep.subr.bf16.mxu0 %v3479
        %4539 = vmatpush1.bf16.msra.mxu0 %v3478
        %4540 = vmatprep.subr.bf16.mxu0 %v3483
        %4541 = vmatpush1.bf16.msra.mxu0 %v3482
        %4542 = vmatprep.subr.bf16.mxu0 %v3487
        %4543 = vmatpush1.bf16.msra.mxu0 %v3486
        %4544 = vmatprep.subr.bf16.mxu0 %v3491
        %4545 = vmatpush1.bf16.msra.mxu0 %v3490
        %4546 = vmatprep.subr.bf16.mxu0 %v3495
        %4547 = vmatpush1.bf16.msra.mxu0 %v3494
        %4548 = vmatprep.subr.bf16.mxu0 %v3499
        %4549 = vmatpush1.bf16.msra.mxu0 %v3498
        %4550 = vmatprep.subr.bf16.mxu0 %v3503
        %4551 = vmatpush1.bf16.msra.mxu0 %v3502
        %4552 = vmatprep.subr.bf16.mxu0 %v3507
        %4553 = vmatpush1.bf16.msra.mxu0 %v3506
        %4554 = vmatprep.subr.bf16.mxu0 %v3511
        %4555 = vmatpush1.bf16.msra.mxu0 %v3510
        %4556 = vmatprep.subr.bf16.mxu0 %v3515
        %4557 = vmatpush1.bf16.msra.mxu0 %v3514
        %4558 = vmatprep.subr.bf16.mxu0 %v3519
        %4559 = vmatpush1.bf16.msra.mxu0 %v3518
        %4560 = vmatprep.subr.bf16.mxu0 %v3523
        %4561 = vmatpush1.bf16.msra.mxu0 %v3522
        %4562 = vmatprep.subr.bf16.mxu0 %v3527
        %4563 = vmatpush1.bf16.msra.mxu0 %v3526
        %4564 = vmatprep.mubr.bf16.mxu0 %v4490
        %4565 = vmatmul.mubr.bf16.gmra.mrb[0].mxu0 %v4489
        %v4566 = vpop.f32.mrb[0].mxu0
        %v4567 = vadd.f32 %v4526, %v4566
        %v4568 = vpop.f32.mrb[0].mxu0
        %v4569 = vadd.f32 %v4528, %v4568
        %v4570 = vpop.f32.mrb[0].mxu0
        %v4571 = vpop.f32.mrb[0].mxu0
        %4572 = vdwg.mxu0
        %4573 = vmatprep.subr.bf16.mxu0 %v3405
        %4574 = vmatpush1.bf16.msra.mxu0 %v3404
        %4575 = vmatprep.subr.bf16.mxu0 %v3409
        %4576 = vmatpush1.bf16.msra.mxu0 %v3408
        %4577 = vmatprep.subr.bf16.mxu0 %v3413
        %4578 = vmatpush1.bf16.msra.mxu0 %v3412
        %4579 = vmatprep.subr.bf16.mxu0 %v3417
        %4580 = vmatpush1.bf16.msra.mxu0 %v3416
        %4581 = vmatprep.subr.bf16.mxu0 %v3421
        %4582 = vmatpush1.bf16.msra.mxu0 %v3420
        %4583 = vmatprep.subr.bf16.mxu0 %v3425
        %4584 = vmatpush1.bf16.msra.mxu0 %v3424
        %4585 = vmatprep.subr.bf16.mxu0 %v3429
        %4586 = vmatpush1.bf16.msra.mxu0 %v3428
        %4587 = vmatprep.subr.bf16.mxu0 %v3433
        %4588 = vmatpush1.bf16.msra.mxu0 %v3432
        %4589 = vmatprep.subr.bf16.mxu0 %v3437
        %4590 = vmatpush1.bf16.msra.mxu0 %v3436
        %4591 = vmatprep.subr.bf16.mxu0 %v3441
        %4592 = vmatpush1.bf16.msra.mxu0 %v3440
        %4593 = vmatprep.subr.bf16.mxu0 %v3445
        %4594 = vmatpush1.bf16.msra.mxu0 %v3444
        %4595 = vmatprep.subr.bf16.mxu0 %v3449
        %4596 = vmatpush1.bf16.msra.mxu0 %v3448
        %4597 = vmatprep.subr.bf16.mxu0 %v3453
        %4598 = vmatpush1.bf16.msra.mxu0 %v3452
        %4599 = vmatprep.subr.bf16.mxu0 %v3457
        %4600 = vmatpush1.bf16.msra.mxu0 %v3456
        %4601 = vmatprep.subr.bf16.mxu0 %v3461
        %4602 = vmatpush1.bf16.msra.mxu0 %v3460
        %4603 = vmatprep.subr.bf16.mxu0 %v3465
        %4604 = vmatpush1.bf16.msra.mxu0 %v3464
        %4605 = vmatprep.mubr.bf16.mxu0 %v4488
        %4606 = vmatmul.mubr.bf16.gmra.mrb[0].mxu0 %v4487
        %v4607 = vpop.f32.mrb[0].mxu0
        %v4608 = vadd.f32 %v3009, %v4607
        %v4609 = vpop.f32.mrb[0].mxu0
        %v4610 = vadd.f32 %v3013, %v4609
        %v4611 = vpop.f32.mrb[0].mxu0
        %v4612 = vpop.f32.mrb[0].mxu0
        %4613 = vdwg.mxu0
        %4614 = vmatprep.subr.bf16.mxu0 %v3469
        %4615 = vmatpush1.bf16.msra.mxu0 %v3468
        %4616 = vmatprep.subr.bf16.mxu0 %v3473
        %4617 = vmatpush1.bf16.msra.mxu0 %v3472
        %4618 = vmatprep.subr.bf16.mxu0 %v3477
        %4619 = vmatpush1.bf16.msra.mxu0 %v3476
        %4620 = vmatprep.subr.bf16.mxu0 %v3481
        %4621 = vmatpush1.bf16.msra.mxu0 %v3480
        %4622 = vmatprep.subr.bf16.mxu0 %v3485
        %4623 = vmatpush1.bf16.msra.mxu0 %v3484
        %4624 = vmatprep.subr.bf16.mxu0 %v3489
        %4625 = vmatpush1.bf16.msra.mxu0 %v3488
        %4626 = vmatprep.subr.bf16.mxu0 %v3493
        %4627 = vmatpush1.bf16.msra.mxu0 %v3492
        %4628 = vmatprep.subr.bf16.mxu0 %v3497
        %4629 = vmatpush1.bf16.msra.mxu0 %v3496
        %4630 = vmatprep.subr.bf16.mxu0 %v3501
        %4631 = vmatpush1.bf16.msra.mxu0 %v3500
        %4632 = vmatprep.subr.bf16.mxu0 %v3505
        %4633 = vmatpush1.bf16.msra.mxu0 %v3504
        %4634 = vmatprep.subr.bf16.mxu0 %v3509
        %4635 = vmatpush1.bf16.msra.mxu0 %v3508
        %4636 = vmatprep.subr.bf16.mxu0 %v3513
        %4637 = vmatpush1.bf16.msra.mxu0 %v3512
        %4638 = vmatprep.subr.bf16.mxu0 %v3517
        %4639 = vmatpush1.bf16.msra.mxu0 %v3516
        %4640 = vmatprep.subr.bf16.mxu0 %v3521
        %4641 = vmatpush1.bf16.msra.mxu0 %v3520
        %4642 = vmatprep.subr.bf16.mxu0 %v3525
        %4643 = vmatpush1.bf16.msra.mxu0 %v3524
        %4644 = vmatprep.subr.bf16.mxu0 %v3529
        %4645 = vmatpush1.bf16.msra.mxu0 %v3528
        %4646 = vmatprep.mubr.bf16.mxu0 %v4490
        %4647 = vmatmul.mubr.bf16.gmra.mrb[0].mxu0 %v4489
        %v4648 = vpop.f32.mrb[0].mxu0
        %v4649 = vadd.f32 %v4608, %v4648
        %v4650 = vpop.f32.mrb[0].mxu0
        %v4651 = vadd.f32 %v4610, %v4650
        %v4652 = vpop.f32.mrb[0].mxu0
        %v4653 = vpop.f32.mrb[0].mxu0
        %4654 = vdwg.mxu0
        %v4655 = vxor.u32 %v4567, 2147483648
        %v4656 = vxor.u32 %v4569, 2147483648
        %v4657 = vxor.u32 %v4649, 2147483648
        %v4658 = vxor.u32 %v4651, 2147483648
        %v4659 = vmul.f32 %v4655, 1.442695
        %v4660 = vpow.pop %v4659
        %v4661 = vmul.f32 %v4656, 1.442695
        %v4662 = vpow.pop %v4661
        %v4663 = vmul.f32 %v4657, 1.442695
        %v4664 = vpow.pop %v4663
        %v4665 = vmul.f32 %v4658, 1.442695
        %v4666 = vpow.pop %v4665
        %v4667 = vadd.f32 %v4660, 1.0
        %v4668 = vadd.f32 %v4662, 1.0
        %v4669 = vadd.f32 %v4664, 1.0
        %v4670 = vadd.f32 %v4666, 1.0
        %v4671 = vrcp.pop %v4667
        %v4672 = vmul.f32 1.0, %v4671
        %v4673 = vrcp.pop %v4668
        %v4674 = vmul.f32 1.0, %v4673
        %v4675 = vrcp.pop %v4669
        %v4676 = vmul.f32 1.0, %v4675
        %v4677 = vrcp.pop %v4670
        %v4678 = vmul.f32 1.0, %v4677
        %v4679 = vmul.f32 %v4567, %v4672
        %v4680 = vmul.f32 %v4569, %v4674
        %v4681 = vmul.f32 %v4649, %v4676
        %v4682 = vmul.f32 %v4651, %v4678
        %v4683 = vpack.c.bf16 %v4679, %v4679
        %v4684 = vpack.c.bf16 %v4680, %v4680
        %v4685 = vpack.c.bf16 %v4681, %v4681
        %v4686 = vpack.c.bf16 %v4682, %v4682
        %4687 = vmatprep.subr.bf16.mxu0 %v4123
        %4688 = vmatpush1.bf16.msra.mxu0 %v4122
        %4689 = vmatprep.subr.bf16.mxu0 %v4125
        %4690 = vmatpush1.bf16.msra.mxu0 %v4124
        %4691 = vmatprep.subr.bf16.mxu0 %v4127
        %4692 = vmatpush1.bf16.msra.mxu0 %v4126
        %4693 = vmatprep.subr.bf16.mxu0 %v4129
        %4694 = vmatpush1.bf16.msra.mxu0 %v4128
        %4695 = vmatprep.subr.bf16.mxu0 %v4131
        %4696 = vmatpush1.bf16.msra.mxu0 %v4130
        %4697 = vmatprep.subr.bf16.mxu0 %v4133
        %4698 = vmatpush1.bf16.msra.mxu0 %v4132
        %4699 = vmatprep.subr.bf16.mxu0 %v4135
        %4700 = vmatpush1.bf16.msra.mxu0 %v4134
        %4701 = vmatprep.subr.bf16.mxu0 %v4137
        %4702 = vmatpush1.bf16.msra.mxu0 %v4136
        %4703 = vmatprep.subr.bf16.mxu0 %v4139
        %4704 = vmatpush1.bf16.msra.mxu0 %v4138
        %4705 = vmatprep.subr.bf16.mxu0 %v4141
        %4706 = vmatpush1.bf16.msra.mxu0 %v4140
        %4707 = vmatprep.subr.bf16.mxu0 %v4143
        %4708 = vmatpush1.bf16.msra.mxu0 %v4142
        %4709 = vmatprep.subr.bf16.mxu0 %v4145
        %4710 = vmatpush1.bf16.msra.mxu0 %v4144
        %4711 = vmatprep.subr.bf16.mxu0 %v4147
        %4712 = vmatpush1.bf16.msra.mxu0 %v4146
        %4713 = vmatprep.subr.bf16.mxu0 %v4149
        %4714 = vmatpush1.bf16.msra.mxu0 %v4148
        %4715 = vmatprep.subr.bf16.mxu0 %v4151
        %4716 = vmatpush1.bf16.msra.mxu0 %v4150
        %4717 = vmatprep.subr.bf16.mxu0 %v4153
        %4718 = vmatpush1.bf16.msra.mxu0 %v4152
        %4719 = vmatprep.mubr.bf16.mxu0 %v4684
        %4720 = vmatmul.mubr.bf16.gmra.mrb[0].mxu0 %v4683
        %v4721 = vpop.f32.mrb[0].mxu0
        %v4722 = vadd.f32 %v3923, %v4721
        %v4723 = vpop.f32.mrb[0].mxu0
        %v4724 = vadd.f32 %v3927, %v4723
        %v4725 = vpop.f32.mrb[0].mxu0
        %v4726 = vpop.f32.mrb[0].mxu0
        %4727 = vdwg.mxu0
        %4728 = vmatprep.subr.bf16.mxu0 %v4155
        %4729 = vmatpush1.bf16.msra.mxu0 %v4154
        %4730 = vmatprep.subr.bf16.mxu0 %v4157
        %4731 = vmatpush1.bf16.msra.mxu0 %v4156
        %4732 = vmatprep.subr.bf16.mxu0 %v4159
        %4733 = vmatpush1.bf16.msra.mxu0 %v4158
        %4734 = vmatprep.subr.bf16.mxu0 %v4161
        %4735 = vmatpush1.bf16.msra.mxu0 %v4160
        %4736 = vmatprep.subr.bf16.mxu0 %v4163
        %4737 = vmatpush1.bf16.msra.mxu0 %v4162
        %4738 = vmatprep.subr.bf16.mxu0 %v4165
        %4739 = vmatpush1.bf16.msra.mxu0 %v4164
        %4740 = vmatprep.subr.bf16.mxu0 %v4167
        %4741 = vmatpush1.bf16.msra.mxu0 %v4166
        %4742 = vmatprep.subr.bf16.mxu0 %v4169
        %4743 = vmatpush1.bf16.msra.mxu0 %v4168
        %4744 = vmatprep.subr.bf16.mxu0 %v4171
        %4745 = vmatpush1.bf16.msra.mxu0 %v4170
        %4746 = vmatprep.subr.bf16.mxu0 %v4173
        %4747 = vmatpush1.bf16.msra.mxu0 %v4172
        %4748 = vmatprep.subr.bf16.mxu0 %v4175
        %4749 = vmatpush1.bf16.msra.mxu0 %v4174
        %4750 = vmatprep.subr.bf16.mxu0 %v4177
        %4751 = vmatpush1.bf16.msra.mxu0 %v4176
        %4752 = vmatprep.subr.bf16.mxu0 %v4179
        %4753 = vmatpush1.bf16.msra.mxu0 %v4178
        %4754 = vmatprep.subr.bf16.mxu0 %v4181
        %4755 = vmatpush1.bf16.msra.mxu0 %v4180
        %4756 = vmatprep.subr.bf16.mxu0 %v4183
        %4757 = vmatpush1.bf16.msra.mxu0 %v4182
        %4758 = vmatprep.subr.bf16.mxu0 %v4185
        %4759 = vmatpush1.bf16.msra.mxu0 %v4184
        %4760 = vmatprep.mubr.bf16.mxu0 %v4686
        %4761 = vmatmul.mubr.bf16.gmra.mrb[0].mxu0 %v4685
        %v4762 = vpop.f32.mrb[0].mxu0
        %v4763 = vadd.f32 %v4722, %v4762
        %v4764 = vpop.f32.mrb[0].mxu0
        %v4765 = vadd.f32 %v4724, %v4764
        %v4766 = vpop.f32.mrb[0].mxu0
        %v4767 = vpop.f32.mrb[0].mxu0
        %4768 = vdwg.mxu0
        %v4769 = vxor.u32 %v4763, 2147483648
        %v4770 = vxor.u32 %v4765, 2147483648
        %v4771 = vmul.f32 %v4769, 1.442695
        %v4772 = vpow.pop %v4771
        %v4773 = vmul.f32 %v4770, 1.442695
        %v4774 = vpow.pop %v4773
        %v4775 = vadd.f32 %v4772, 1.0
        %v4776 = vadd.f32 %v4774, 1.0
        %v4777 = vrcp.pop %v4775
        %v4778 = vmul.f32 1.0, %v4777
        %v4779 = vrcp.pop %v4776
        %v4780 = vmul.f32 1.0, %v4779
        %v4781 = vmul.f32 %v4763, %v4778
        %v4782 = vmul.f32 %v4765, %v4780
        %v4783 = vmul.f32 %v4781, %v4350
        %v4784 = vmul.f32 %v4782, %v4354
        %v4785 = vadd.f32 %v4783, %v4784
        %4786 = vadd.xlane.f32.xlu0 %v4785
        %v4787 = vpop.xlane.xlu0 %4786
        %v4788 = vadd.f32 %v4787, %v4366
        %v4789 = vlaneseq
        %v4790 = vshrl.u32 %v4789, 7
        %v4791 = vsub.s32 1, %v4790
        %v4792 = vrot.slane %v614, %v4791
        %v4793 = vlaneseq
        %v4794 = vshrl.u32 %v4793, 7
        %v4795 = vsub.s32 5, %v4794
        %v4796 = vrot.slane %v614, %v4795
        %v4797 = vlaneseq
        %v4798 = vshrl.u32 %v4797, 7
        %v4799 = vsub.s32 1, %v4798
        %v4800 = vrot.slane %v615, %v4799
        %v4801 = vlaneseq
        %v4802 = vshrl.u32 %v4801, 7
        %v4803 = vsub.s32 5, %v4802
        %v4804 = vrot.slane %v615, %v4803
        %v4809 = vlaneseq
        %v4810 = vshrl.u32 %v4809, 7
        %v4811 = vsub.s32 1, %v4810
        %v4812 = vrot.slane %v4792, %v4811
        %v4813 = vlaneseq
        %v4814 = vshrl.u32 %v4813, 7
        %v4815 = vsub.s32 1, %v4814
        %v4816 = vrot.slane %v4796, %v4815
        %v4817 = vlaneseq
        %v4818 = vshrl.u32 %v4817, 7
        %v4819 = vsub.s32 1, %v4818
        %v4820 = vrot.slane %v4800, %v4819
        %v4821 = vlaneseq
        %v4822 = vshrl.u32 %v4821, 7
        %v4823 = vsub.s32 1, %v4822
        %v4824 = vrot.slane %v4804, %v4823
        %v4825 = vsub.f32 %v610, %v4812
        %v4826 = vsub.f32 %v611, %v4816
        %v4827 = vsub.f32 %v612, %v4820
        %v4828 = vsub.f32 %v613, %v4824
        %v4829 = vmul.f32 %v4825, %v4825
        %v4830 = vmul.f32 %v4826, %v4826
        %v4831 = vmul.f32 %v4827, %v4827
        %v4832 = vmul.f32 %v4828, %v4828
        %v4833 = vadd.f32 %v4829, %v4830
        %v4834 = vadd.f32 %v4833, %v4831
        %v4835 = vadd.f32 %v4834, %v4832
        %4836 = vadd.xlane.f32.xlu0 %v4835
        %v4837 = vpop.xlane.xlu0 %4836
        %v4838 = vrsqrt.pop %v4837
        %v4839 = vmul.f32 %v4837, %v4838
        %vm4840 = vcmp.eq.f32.partialorder %v4837, inf
        %v4841 = vsel %vm4840, %v4837, %v4839
        %vm4842 = vcmp.eq.f32.partialorder %v4837, 0.0
        %v4843 = vand.u32 %v4837, 2147483648
        %v4844 = vsel %vm4842, %v4843, %v4841
        %v4845 = vmul.f32 %v4844, 0.1
        %v4846 = vadd.f32 %v4788, %v4845
        %vm4847 = vcmp.eq.s32.totalorder %v2795, 1
        %4849 = vset.pattern.permute.xlu0 0
        %4850 = vperm.xlu0 %4849, %v4846
        %v4851 = vpop.permute.xlu0 %4850
        %v4853 = vsel %vm4847, %v4851, 0.0
        %v4854 = vadd.f32 %v4434, %v4853
        %v4855 = vlaneseq
        %v4856 = vshrl.u32 %v4855, 7
        %v4857 = vsub.s32 2, %v4856
        %v4858 = vrot.slane %v2407, %v4857
        %v4859 = vlaneseq
        %v4860 = vshrl.u32 %v4859, 7
        %v4861 = vsub.s32 2, %v4860
        %v4862 = vrot.slane %v2409, %v4861
        %v4863 = vlaneseq
        %v4864 = vshrl.u32 %v4863, 7
        %v4865 = vsub.s32 2, %v4864
        %v4866 = vrot.slane %v2489, %v4865
        %v4867 = vlaneseq
        %v4868 = vshrl.u32 %v4867, 7
        %v4869 = vsub.s32 2, %v4868
        %v4870 = vrot.slane %v2491, %v4869
        %v4871 = vadd.f32 %v1465, %v4858
        %v4872 = vadd.f32 %v1467, %v4862
        %v4873 = vadd.f32 %v1547, %v4866
        %v4874 = vadd.f32 %v1549, %v4870
        %v4875 = vadd.f32 %v4871, %v2819
        %v4876 = vadd.f32 %v4872, %v2823
        %v4877 = vadd.f32 %v4873, %v2827
        %v4878 = vadd.f32 %v4874, %v2831
        %v4879 = vxor.u32 %v4875, 2147483648
        %v4880 = vxor.u32 %v4876, 2147483648
        %v4881 = vxor.u32 %v4877, 2147483648
        %v4882 = vxor.u32 %v4878, 2147483648
        %v4883 = vmul.f32 %v4879, 1.442695
        %v4884 = vpow.pop %v4883
        %v4885 = vmul.f32 %v4880, 1.442695
        %v4886 = vpow.pop %v4885
        %v4887 = vmul.f32 %v4881, 1.442695
        %v4888 = vpow.pop %v4887
        %v4889 = vmul.f32 %v4882, 1.442695
        %v4890 = vpow.pop %v4889
        %v4891 = vadd.f32 %v4884, 1.0
        %v4892 = vadd.f32 %v4886, 1.0
        %v4893 = vadd.f32 %v4888, 1.0
        %v4894 = vadd.f32 %v4890, 1.0
        %v4895 = vrcp.pop %v4891
        %v4896 = vmul.f32 1.0, %v4895
        %v4897 = vrcp.pop %v4892
        %v4898 = vmul.f32 1.0, %v4897
        %v4899 = vrcp.pop %v4893
        %v4900 = vmul.f32 1.0, %v4899
        %v4901 = vrcp.pop %v4894
        %v4902 = vmul.f32 1.0, %v4901
        %v4903 = vmul.f32 %v4875, %v4896
        %v4904 = vmul.f32 %v4876, %v4898
        %v4905 = vmul.f32 %v4877, %v4900
        %v4906 = vmul.f32 %v4878, %v4902
        %v4907 = vpack.c.bf16 %v4903, %v4903
        %v4908 = vpack.c.bf16 %v4904, %v4904
        %v4909 = vpack.c.bf16 %v4905, %v4905
        %v4910 = vpack.c.bf16 %v4906, %v4906
        %4911 = vmatprep.subr.bf16.mxu0 %v3403
        %4912 = vmatpush1.bf16.msra.mxu0 %v3402
        %4913 = vmatprep.subr.bf16.mxu0 %v3407
        %4914 = vmatpush1.bf16.msra.mxu0 %v3406
        %4915 = vmatprep.subr.bf16.mxu0 %v3411
        %4916 = vmatpush1.bf16.msra.mxu0 %v3410
        %4917 = vmatprep.subr.bf16.mxu0 %v3415
        %4918 = vmatpush1.bf16.msra.mxu0 %v3414
        %4919 = vmatprep.subr.bf16.mxu0 %v3419
        %4920 = vmatpush1.bf16.msra.mxu0 %v3418
        %4921 = vmatprep.subr.bf16.mxu0 %v3423
        %4922 = vmatpush1.bf16.msra.mxu0 %v3422
        %4923 = vmatprep.subr.bf16.mxu0 %v3427
        %4924 = vmatpush1.bf16.msra.mxu0 %v3426
        %4925 = vmatprep.subr.bf16.mxu0 %v3431
        %4926 = vmatpush1.bf16.msra.mxu0 %v3430
        %4927 = vmatprep.subr.bf16.mxu0 %v3435
        %4928 = vmatpush1.bf16.msra.mxu0 %v3434
        %4929 = vmatprep.subr.bf16.mxu0 %v3439
        %4930 = vmatpush1.bf16.msra.mxu0 %v3438
        %4931 = vmatprep.subr.bf16.mxu0 %v3443
        %4932 = vmatpush1.bf16.msra.mxu0 %v3442
        %4933 = vmatprep.subr.bf16.mxu0 %v3447
        %4934 = vmatpush1.bf16.msra.mxu0 %v3446
        %4935 = vmatprep.subr.bf16.mxu0 %v3451
        %4936 = vmatpush1.bf16.msra.mxu0 %v3450
        %4937 = vmatprep.subr.bf16.mxu0 %v3455
        %4938 = vmatpush1.bf16.msra.mxu0 %v3454
        %4939 = vmatprep.subr.bf16.mxu0 %v3459
        %4940 = vmatpush1.bf16.msra.mxu0 %v3458
        %4941 = vmatprep.subr.bf16.mxu0 %v3463
        %4942 = vmatpush1.bf16.msra.mxu0 %v3462
        %4943 = vmatprep.mubr.bf16.mxu0 %v4908
        %4944 = vmatmul.mubr.bf16.gmra.mrb[0].mxu0 %v4907
        %v4945 = vpop.f32.mrb[0].mxu0
        %v4946 = vadd.f32 %v3001, %v4945
        %v4947 = vpop.f32.mrb[0].mxu0
        %v4948 = vadd.f32 %v3005, %v4947
        %v4949 = vpop.f32.mrb[0].mxu0
        %v4950 = vpop.f32.mrb[0].mxu0
        %4951 = vdwg.mxu0
        %4952 = vmatprep.subr.bf16.mxu0 %v3467
        %4953 = vmatpush1.bf16.msra.mxu0 %v3466
        %4954 = vmatprep.subr.bf16.mxu0 %v3471
        %4955 = vmatpush1.bf16.msra.mxu0 %v3470
        %4956 = vmatprep.subr.bf16.mxu0 %v3475
        %4957 = vmatpush1.bf16.msra.mxu0 %v3474
        %4958 = vmatprep.subr.bf16.mxu0 %v3479
        %4959 = vmatpush1.bf16.msra.mxu0 %v3478
        %4960 = vmatprep.subr.bf16.mxu0 %v3483
        %4961 = vmatpush1.bf16.msra.mxu0 %v3482
        %4962 = vmatprep.subr.bf16.mxu0 %v3487
        %4963 = vmatpush1.bf16.msra.mxu0 %v3486
        %4964 = vmatprep.subr.bf16.mxu0 %v3491
        %4965 = vmatpush1.bf16.msra.mxu0 %v3490
        %4966 = vmatprep.subr.bf16.mxu0 %v3495
        %4967 = vmatpush1.bf16.msra.mxu0 %v3494
        %4968 = vmatprep.subr.bf16.mxu0 %v3499
        %4969 = vmatpush1.bf16.msra.mxu0 %v3498
        %4970 = vmatprep.subr.bf16.mxu0 %v3503
        %4971 = vmatpush1.bf16.msra.mxu0 %v3502
        %4972 = vmatprep.subr.bf16.mxu0 %v3507
        %4973 = vmatpush1.bf16.msra.mxu0 %v3506
        %4974 = vmatprep.subr.bf16.mxu0 %v3511
        %4975 = vmatpush1.bf16.msra.mxu0 %v3510
        %4976 = vmatprep.subr.bf16.mxu0 %v3515
        %4977 = vmatpush1.bf16.msra.mxu0 %v3514
        %4978 = vmatprep.subr.bf16.mxu0 %v3519
        %4979 = vmatpush1.bf16.msra.mxu0 %v3518
        %4980 = vmatprep.subr.bf16.mxu0 %v3523
        %4981 = vmatpush1.bf16.msra.mxu0 %v3522
        %4982 = vmatprep.subr.bf16.mxu0 %v3527
        %4983 = vmatpush1.bf16.msra.mxu0 %v3526
        %4984 = vmatprep.mubr.bf16.mxu0 %v4910
        %4985 = vmatmul.mubr.bf16.gmra.mrb[0].mxu0 %v4909
        %v4986 = vpop.f32.mrb[0].mxu0
        %v4987 = vadd.f32 %v4946, %v4986
        %v4988 = vpop.f32.mrb[0].mxu0
        %v4989 = vadd.f32 %v4948, %v4988
        %v4990 = vpop.f32.mrb[0].mxu0
        %v4991 = vpop.f32.mrb[0].mxu0
        %4992 = vdwg.mxu0
        %4993 = vmatprep.subr.bf16.mxu0 %v3405
        %4994 = vmatpush1.bf16.msra.mxu0 %v3404
        %4995 = vmatprep.subr.bf16.mxu0 %v3409
        %4996 = vmatpush1.bf16.msra.mxu0 %v3408
        %4997 = vmatprep.subr.bf16.mxu0 %v3413
        %4998 = vmatpush1.bf16.msra.mxu0 %v3412
        %4999 = vmatprep.subr.bf16.mxu0 %v3417
        %5000 = vmatpush1.bf16.msra.mxu0 %v3416
        %5001 = vmatprep.subr.bf16.mxu0 %v3421
        %5002 = vmatpush1.bf16.msra.mxu0 %v3420
        %5003 = vmatprep.subr.bf16.mxu0 %v3425
        %5004 = vmatpush1.bf16.msra.mxu0 %v3424
        %5005 = vmatprep.subr.bf16.mxu0 %v3429
        %5006 = vmatpush1.bf16.msra.mxu0 %v3428
        %5007 = vmatprep.subr.bf16.mxu0 %v3433
        %5008 = vmatpush1.bf16.msra.mxu0 %v3432
        %5009 = vmatprep.subr.bf16.mxu0 %v3437
        %5010 = vmatpush1.bf16.msra.mxu0 %v3436
        %5011 = vmatprep.subr.bf16.mxu0 %v3441
        %5012 = vmatpush1.bf16.msra.mxu0 %v3440
        %5013 = vmatprep.subr.bf16.mxu0 %v3445
        %5014 = vmatpush1.bf16.msra.mxu0 %v3444
        %5015 = vmatprep.subr.bf16.mxu0 %v3449
        %5016 = vmatpush1.bf16.msra.mxu0 %v3448
        %5017 = vmatprep.subr.bf16.mxu0 %v3453
        %5018 = vmatpush1.bf16.msra.mxu0 %v3452
        %5019 = vmatprep.subr.bf16.mxu0 %v3457
        %5020 = vmatpush1.bf16.msra.mxu0 %v3456
        %5021 = vmatprep.subr.bf16.mxu0 %v3461
        %5022 = vmatpush1.bf16.msra.mxu0 %v3460
        %5023 = vmatprep.subr.bf16.mxu0 %v3465
        %5024 = vmatpush1.bf16.msra.mxu0 %v3464
        %5025 = vmatprep.mubr.bf16.mxu0 %v4908
        %5026 = vmatmul.mubr.bf16.gmra.mrb[0].mxu0 %v4907
        %v5027 = vpop.f32.mrb[0].mxu0
        %v5028 = vadd.f32 %v3009, %v5027
        %v5029 = vpop.f32.mrb[0].mxu0
        %v5030 = vadd.f32 %v3013, %v5029
        %v5031 = vpop.f32.mrb[0].mxu0
        %v5032 = vpop.f32.mrb[0].mxu0
        %5033 = vdwg.mxu0
        %5034 = vmatprep.subr.bf16.mxu0 %v3469
        %5035 = vmatpush1.bf16.msra.mxu0 %v3468
        %5036 = vmatprep.subr.bf16.mxu0 %v3473
        %5037 = vmatpush1.bf16.msra.mxu0 %v3472
        %5038 = vmatprep.subr.bf16.mxu0 %v3477
        %5039 = vmatpush1.bf16.msra.mxu0 %v3476
        %5040 = vmatprep.subr.bf16.mxu0 %v3481
        %5041 = vmatpush1.bf16.msra.mxu0 %v3480
        %5042 = vmatprep.subr.bf16.mxu0 %v3485
        %5043 = vmatpush1.bf16.msra.mxu0 %v3484
        %5044 = vmatprep.subr.bf16.mxu0 %v3489
        %5045 = vmatpush1.bf16.msra.mxu0 %v3488
        %5046 = vmatprep.subr.bf16.mxu0 %v3493
        %5047 = vmatpush1.bf16.msra.mxu0 %v3492
        %5048 = vmatprep.subr.bf16.mxu0 %v3497
        %5049 = vmatpush1.bf16.msra.mxu0 %v3496
        %5050 = vmatprep.subr.bf16.mxu0 %v3501
        %5051 = vmatpush1.bf16.msra.mxu0 %v3500
        %5052 = vmatprep.subr.bf16.mxu0 %v3505
        %5053 = vmatpush1.bf16.msra.mxu0 %v3504
        %5054 = vmatprep.subr.bf16.mxu0 %v3509
        %5055 = vmatpush1.bf16.msra.mxu0 %v3508
        %5056 = vmatprep.subr.bf16.mxu0 %v3513
        %5057 = vmatpush1.bf16.msra.mxu0 %v3512
        %5058 = vmatprep.subr.bf16.mxu0 %v3517
        %5059 = vmatpush1.bf16.msra.mxu0 %v3516
        %5060 = vmatprep.subr.bf16.mxu0 %v3521
        %5061 = vmatpush1.bf16.msra.mxu0 %v3520
        %5062 = vmatprep.subr.bf16.mxu0 %v3525
        %5063 = vmatpush1.bf16.msra.mxu0 %v3524
        %5064 = vmatprep.subr.bf16.mxu0 %v3529
        %5065 = vmatpush1.bf16.msra.mxu0 %v3528
        %5066 = vmatprep.mubr.bf16.mxu0 %v4910
        %5067 = vmatmul.mubr.bf16.gmra.mrb[0].mxu0 %v4909
        %v5068 = vpop.f32.mrb[0].mxu0
        %v5069 = vadd.f32 %v5028, %v5068
        %v5070 = vpop.f32.mrb[0].mxu0
        %v5071 = vadd.f32 %v5030, %v5070
        %v5072 = vpop.f32.mrb[0].mxu0
        %v5073 = vpop.f32.mrb[0].mxu0
        %5074 = vdwg.mxu0
        %v5075 = vxor.u32 %v4987, 2147483648
        %v5076 = vxor.u32 %v4989, 2147483648
        %v5077 = vxor.u32 %v5069, 2147483648
        %v5078 = vxor.u32 %v5071, 2147483648
        %v5079 = vmul.f32 %v5075, 1.442695
        %v5080 = vpow.pop %v5079
        %v5081 = vmul.f32 %v5076, 1.442695
        %v5082 = vpow.pop %v5081
        %v5083 = vmul.f32 %v5077, 1.442695
        %v5084 = vpow.pop %v5083
        %v5085 = vmul.f32 %v5078, 1.442695
        %v5086 = vpow.pop %v5085
        %v5087 = vadd.f32 %v5080, 1.0
        %v5088 = vadd.f32 %v5082, 1.0
        %v5089 = vadd.f32 %v5084, 1.0
        %v5090 = vadd.f32 %v5086, 1.0
        %v5091 = vrcp.pop %v5087
        %v5092 = vmul.f32 1.0, %v5091
        %v5093 = vrcp.pop %v5088
        %v5094 = vmul.f32 1.0, %v5093
        %v5095 = vrcp.pop %v5089
        %v5096 = vmul.f32 1.0, %v5095
        %v5097 = vrcp.pop %v5090
        %v5098 = vmul.f32 1.0, %v5097
        %v5099 = vmul.f32 %v4987, %v5092
        %v5100 = vmul.f32 %v4989, %v5094
        %v5101 = vmul.f32 %v5069, %v5096
        %v5102 = vmul.f32 %v5071, %v5098
        %v5103 = vpack.c.bf16 %v5099, %v5099
        %v5104 = vpack.c.bf16 %v5100, %v5100
        %v5105 = vpack.c.bf16 %v5101, %v5101
        %v5106 = vpack.c.bf16 %v5102, %v5102
        %5107 = vmatprep.subr.bf16.mxu0 %v4123
        %5108 = vmatpush1.bf16.msra.mxu0 %v4122
        %5109 = vmatprep.subr.bf16.mxu0 %v4125
        %5110 = vmatpush1.bf16.msra.mxu0 %v4124
        %5111 = vmatprep.subr.bf16.mxu0 %v4127
        %5112 = vmatpush1.bf16.msra.mxu0 %v4126
        %5113 = vmatprep.subr.bf16.mxu0 %v4129
        %5114 = vmatpush1.bf16.msra.mxu0 %v4128
        %5115 = vmatprep.subr.bf16.mxu0 %v4131
        %5116 = vmatpush1.bf16.msra.mxu0 %v4130
        %5117 = vmatprep.subr.bf16.mxu0 %v4133
        %5118 = vmatpush1.bf16.msra.mxu0 %v4132
        %5119 = vmatprep.subr.bf16.mxu0 %v4135
        %5120 = vmatpush1.bf16.msra.mxu0 %v4134
        %5121 = vmatprep.subr.bf16.mxu0 %v4137
        %5122 = vmatpush1.bf16.msra.mxu0 %v4136
        %5123 = vmatprep.subr.bf16.mxu0 %v4139
        %5124 = vmatpush1.bf16.msra.mxu0 %v4138
        %5125 = vmatprep.subr.bf16.mxu0 %v4141
        %5126 = vmatpush1.bf16.msra.mxu0 %v4140
        %5127 = vmatprep.subr.bf16.mxu0 %v4143
        %5128 = vmatpush1.bf16.msra.mxu0 %v4142
        %5129 = vmatprep.subr.bf16.mxu0 %v4145
        %5130 = vmatpush1.bf16.msra.mxu0 %v4144
        %5131 = vmatprep.subr.bf16.mxu0 %v4147
        %5132 = vmatpush1.bf16.msra.mxu0 %v4146
        %5133 = vmatprep.subr.bf16.mxu0 %v4149
        %5134 = vmatpush1.bf16.msra.mxu0 %v4148
        %5135 = vmatprep.subr.bf16.mxu0 %v4151
        %5136 = vmatpush1.bf16.msra.mxu0 %v4150
        %5137 = vmatprep.subr.bf16.mxu0 %v4153
        %5138 = vmatpush1.bf16.msra.mxu0 %v4152
        %5139 = vmatprep.mubr.bf16.mxu0 %v5104
        %5140 = vmatmul.mubr.bf16.gmra.mrb[0].mxu0 %v5103
        %v5141 = vpop.f32.mrb[0].mxu0
        %v5142 = vadd.f32 %v3923, %v5141
        %v5143 = vpop.f32.mrb[0].mxu0
        %v5144 = vadd.f32 %v3927, %v5143
        %v5145 = vpop.f32.mrb[0].mxu0
        %v5146 = vpop.f32.mrb[0].mxu0
        %5147 = vdwg.mxu0
        %5148 = vmatprep.subr.bf16.mxu0 %v4155
        %5149 = vmatpush1.bf16.msra.mxu0 %v4154
        %5150 = vmatprep.subr.bf16.mxu0 %v4157
        %5151 = vmatpush1.bf16.msra.mxu0 %v4156
        %5152 = vmatprep.subr.bf16.mxu0 %v4159
        %5153 = vmatpush1.bf16.msra.mxu0 %v4158
        %5154 = vmatprep.subr.bf16.mxu0 %v4161
        %5155 = vmatpush1.bf16.msra.mxu0 %v4160
        %5156 = vmatprep.subr.bf16.mxu0 %v4163
        %5157 = vmatpush1.bf16.msra.mxu0 %v4162
        %5158 = vmatprep.subr.bf16.mxu0 %v4165
        %5159 = vmatpush1.bf16.msra.mxu0 %v4164
        %5160 = vmatprep.subr.bf16.mxu0 %v4167
        %5161 = vmatpush1.bf16.msra.mxu0 %v4166
        %5162 = vmatprep.subr.bf16.mxu0 %v4169
        %5163 = vmatpush1.bf16.msra.mxu0 %v4168
        %5164 = vmatprep.subr.bf16.mxu0 %v4171
        %5165 = vmatpush1.bf16.msra.mxu0 %v4170
        %5166 = vmatprep.subr.bf16.mxu0 %v4173
        %5167 = vmatpush1.bf16.msra.mxu0 %v4172
        %5168 = vmatprep.subr.bf16.mxu0 %v4175
        %5169 = vmatpush1.bf16.msra.mxu0 %v4174
        %5170 = vmatprep.subr.bf16.mxu0 %v4177
        %5171 = vmatpush1.bf16.msra.mxu0 %v4176
        %5172 = vmatprep.subr.bf16.mxu0 %v4179
        %5173 = vmatpush1.bf16.msra.mxu0 %v4178
        %5174 = vmatprep.subr.bf16.mxu0 %v4181
        %5175 = vmatpush1.bf16.msra.mxu0 %v4180
        %5176 = vmatprep.subr.bf16.mxu0 %v4183
        %5177 = vmatpush1.bf16.msra.mxu0 %v4182
        %5178 = vmatprep.subr.bf16.mxu0 %v4185
        %5179 = vmatpush1.bf16.msra.mxu0 %v4184
        %5180 = vmatprep.mubr.bf16.mxu0 %v5106
        %5181 = vmatmul.mubr.bf16.gmra.mrb[0].mxu0 %v5105
        %v5182 = vpop.f32.mrb[0].mxu0
        %v5183 = vadd.f32 %v5142, %v5182
        %v5184 = vpop.f32.mrb[0].mxu0
        %v5185 = vadd.f32 %v5144, %v5184
        %v5186 = vpop.f32.mrb[0].mxu0
        %v5187 = vpop.f32.mrb[0].mxu0
        %5188 = vdwg.mxu0
        %v5189 = vxor.u32 %v5183, 2147483648
        %v5190 = vxor.u32 %v5185, 2147483648
        %v5191 = vmul.f32 %v5189, 1.442695
        %v5192 = vpow.pop %v5191
        %v5193 = vmul.f32 %v5190, 1.442695
        %v5194 = vpow.pop %v5193
        %v5195 = vadd.f32 %v5192, 1.0
        %v5196 = vadd.f32 %v5194, 1.0
        %v5197 = vrcp.pop %v5195
        %v5198 = vmul.f32 1.0, %v5197
        %v5199 = vrcp.pop %v5196
        %v5200 = vmul.f32 1.0, %v5199
        %v5201 = vmul.f32 %v5183, %v5198
        %v5202 = vmul.f32 %v5185, %v5200
        %v5203 = vmul.f32 %v5201, %v4350
        %v5204 = vmul.f32 %v5202, %v4354
        %v5205 = vadd.f32 %v5203, %v5204
        %5206 = vadd.xlane.f32.xlu0 %v5205
        %v5207 = vpop.xlane.xlu0 %5206
        %v5208 = vadd.f32 %v5207, %v4366
        %v5209 = vlaneseq
        %v5210 = vshrl.u32 %v5209, 7
        %v5211 = vsub.s32 2, %v5210
        %v5212 = vrot.slane %v614, %v5211
        %v5213 = vlaneseq
        %v5214 = vshrl.u32 %v5213, 7
        %v5215 = vsub.s32 6, %v5214
        %v5216 = vrot.slane %v614, %v5215
        %v5217 = vlaneseq
        %v5218 = vshrl.u32 %v5217, 7
        %v5219 = vsub.s32 2, %v5218
        %v5220 = vrot.slane %v615, %v5219
        %v5221 = vlaneseq
        %v5222 = vshrl.u32 %v5221, 7
        %v5223 = vsub.s32 6, %v5222
        %v5224 = vrot.slane %v615, %v5223
        %v5229 = vlaneseq
        %v5230 = vshrl.u32 %v5229, 7
        %v5231 = vsub.s32 2, %v5230
        %v5232 = vrot.slane %v5212, %v5231
        %v5233 = vlaneseq
        %v5234 = vshrl.u32 %v5233, 7
        %v5235 = vsub.s32 2, %v5234
        %v5236 = vrot.slane %v5216, %v5235
        %v5237 = vlaneseq
        %v5238 = vshrl.u32 %v5237, 7
        %v5239 = vsub.s32 2, %v5238
        %v5240 = vrot.slane %v5220, %v5239
        %v5241 = vlaneseq
        %v5242 = vshrl.u32 %v5241, 7
        %v5243 = vsub.s32 2, %v5242
        %v5244 = vrot.slane %v5224, %v5243
        %v5245 = vsub.f32 %v610, %v5232
        %v5246 = vsub.f32 %v611, %v5236
        %v5247 = vsub.f32 %v612, %v5240
        %v5248 = vsub.f32 %v613, %v5244
        %v5249 = vmul.f32 %v5245, %v5245
        %v5250 = vmul.f32 %v5246, %v5246
        %v5251 = vmul.f32 %v5247, %v5247
        %v5252 = vmul.f32 %v5248, %v5248
        %v5253 = vadd.f32 %v5249, %v5250
        %v5254 = vadd.f32 %v5253, %v5251
        %v5255 = vadd.f32 %v5254, %v5252
        %5256 = vadd.xlane.f32.xlu0 %v5255
        %v5257 = vpop.xlane.xlu0 %5256
        %v5258 = vrsqrt.pop %v5257
        %v5259 = vmul.f32 %v5257, %v5258
        %vm5260 = vcmp.eq.f32.partialorder %v5257, inf
        %v5261 = vsel %vm5260, %v5257, %v5259
        %vm5262 = vcmp.eq.f32.partialorder %v5257, 0.0
        %v5263 = vand.u32 %v5257, 2147483648
        %v5264 = vsel %vm5262, %v5263, %v5261
        %v5265 = vmul.f32 %v5264, 0.1
        %v5266 = vadd.f32 %v5208, %v5265
        %vm5267 = vcmp.eq.s32.totalorder %v2795, 2
        %5269 = vset.pattern.permute.xlu0 0
        %5270 = vperm.xlu0 %5269, %v5266
        %v5271 = vpop.permute.xlu0 %5270
        %v5273 = vsel %vm5267, %v5271, 0.0
        %v5274 = vadd.f32 %v4854, %v5273
        %v5275 = vlaneseq
        %v5276 = vshrl.u32 %v5275, 7
        %v5277 = vsub.s32 3, %v5276
        %v5278 = vrot.slane %v2407, %v5277
        %v5279 = vlaneseq
        %v5280 = vshrl.u32 %v5279, 7
        %v5281 = vsub.s32 3, %v5280
        %v5282 = vrot.slane %v2409, %v5281
        %v5283 = vlaneseq
        %v5284 = vshrl.u32 %v5283, 7
        %v5285 = vsub.s32 3, %v5284
        %v5286 = vrot.slane %v2489, %v5285
        %v5287 = vlaneseq
        %v5288 = vshrl.u32 %v5287, 7
        %v5289 = vsub.s32 3, %v5288
        %v5290 = vrot.slane %v2491, %v5289
        %v5291 = vadd.f32 %v1465, %v5278
        %v5292 = vadd.f32 %v1467, %v5282
        %v5293 = vadd.f32 %v1547, %v5286
        %v5294 = vadd.f32 %v1549, %v5290
        %v5295 = vadd.f32 %v5291, %v2819
        %v5296 = vadd.f32 %v5292, %v2823
        %v5297 = vadd.f32 %v5293, %v2827
        %v5298 = vadd.f32 %v5294, %v2831
        %v5299 = vxor.u32 %v5295, 2147483648
        %v5300 = vxor.u32 %v5296, 2147483648
        %v5301 = vxor.u32 %v5297, 2147483648
        %v5302 = vxor.u32 %v5298, 2147483648
        %v5303 = vmul.f32 %v5299, 1.442695
        %v5304 = vpow.pop %v5303
        %v5305 = vmul.f32 %v5300, 1.442695
        %v5306 = vpow.pop %v5305
        %v5307 = vmul.f32 %v5301, 1.442695
        %v5308 = vpow.pop %v5307
        %v5309 = vmul.f32 %v5302, 1.442695
        %v5310 = vpow.pop %v5309
        %v5311 = vadd.f32 %v5304, 1.0
        %v5312 = vadd.f32 %v5306, 1.0
        %v5313 = vadd.f32 %v5308, 1.0
        %v5314 = vadd.f32 %v5310, 1.0
        %v5315 = vrcp.pop %v5311
        %v5316 = vmul.f32 1.0, %v5315
        %v5317 = vrcp.pop %v5312
        %v5318 = vmul.f32 1.0, %v5317
        %v5319 = vrcp.pop %v5313
        %v5320 = vmul.f32 1.0, %v5319
        %v5321 = vrcp.pop %v5314
        %v5322 = vmul.f32 1.0, %v5321
        %v5323 = vmul.f32 %v5295, %v5316
        %v5324 = vmul.f32 %v5296, %v5318
        %v5325 = vmul.f32 %v5297, %v5320
        %v5326 = vmul.f32 %v5298, %v5322
        %v5327 = vpack.c.bf16 %v5323, %v5323
        %v5328 = vpack.c.bf16 %v5324, %v5324
        %v5329 = vpack.c.bf16 %v5325, %v5325
        %v5330 = vpack.c.bf16 %v5326, %v5326
        %5331 = vmatprep.subr.bf16.mxu0 %v3403
        %5332 = vmatpush1.bf16.msra.mxu0 %v3402
        %5333 = vmatprep.subr.bf16.mxu0 %v3407
        %5334 = vmatpush1.bf16.msra.mxu0 %v3406
        %5335 = vmatprep.subr.bf16.mxu0 %v3411
        %5336 = vmatpush1.bf16.msra.mxu0 %v3410
        %5337 = vmatprep.subr.bf16.mxu0 %v3415
        %5338 = vmatpush1.bf16.msra.mxu0 %v3414
        %5339 = vmatprep.subr.bf16.mxu0 %v3419
        %5340 = vmatpush1.bf16.msra.mxu0 %v3418
        %5341 = vmatprep.subr.bf16.mxu0 %v3423
        %5342 = vmatpush1.bf16.msra.mxu0 %v3422
        %5343 = vmatprep.subr.bf16.mxu0 %v3427
        %5344 = vmatpush1.bf16.msra.mxu0 %v3426
        %5345 = vmatprep.subr.bf16.mxu0 %v3431
        %5346 = vmatpush1.bf16.msra.mxu0 %v3430
        %5347 = vmatprep.subr.bf16.mxu0 %v3435
        %5348 = vmatpush1.bf16.msra.mxu0 %v3434
        %5349 = vmatprep.subr.bf16.mxu0 %v3439
        %5350 = vmatpush1.bf16.msra.mxu0 %v3438
        %5351 = vmatprep.subr.bf16.mxu0 %v3443
        %5352 = vmatpush1.bf16.msra.mxu0 %v3442
        %5353 = vmatprep.subr.bf16.mxu0 %v3447
        %5354 = vmatpush1.bf16.msra.mxu0 %v3446
        %5355 = vmatprep.subr.bf16.mxu0 %v3451
        %5356 = vmatpush1.bf16.msra.mxu0 %v3450
        %5357 = vmatprep.subr.bf16.mxu0 %v3455
        %5358 = vmatpush1.bf16.msra.mxu0 %v3454
        %5359 = vmatprep.subr.bf16.mxu0 %v3459
        %5360 = vmatpush1.bf16.msra.mxu0 %v3458
        %5361 = vmatprep.subr.bf16.mxu0 %v3463
        %5362 = vmatpush1.bf16.msra.mxu0 %v3462
        %5363 = vmatprep.mubr.bf16.mxu0 %v5328
        %5364 = vmatmul.mubr.bf16.gmra.mrb[0].mxu0 %v5327
        %v5365 = vpop.f32.mrb[0].mxu0
        %v5366 = vadd.f32 %v3001, %v5365
        %v5367 = vpop.f32.mrb[0].mxu0
        %v5368 = vadd.f32 %v3005, %v5367
        %v5369 = vpop.f32.mrb[0].mxu0
        %v5370 = vpop.f32.mrb[0].mxu0
        %5371 = vdwg.mxu0
        %5372 = vmatprep.subr.bf16.mxu0 %v3467
        %5373 = vmatpush1.bf16.msra.mxu0 %v3466
        %5374 = vmatprep.subr.bf16.mxu0 %v3471
        %5375 = vmatpush1.bf16.msra.mxu0 %v3470
        %5376 = vmatprep.subr.bf16.mxu0 %v3475
        %5377 = vmatpush1.bf16.msra.mxu0 %v3474
        %5378 = vmatprep.subr.bf16.mxu0 %v3479
        %5379 = vmatpush1.bf16.msra.mxu0 %v3478
        %5380 = vmatprep.subr.bf16.mxu0 %v3483
        %5381 = vmatpush1.bf16.msra.mxu0 %v3482
        %5382 = vmatprep.subr.bf16.mxu0 %v3487
        %5383 = vmatpush1.bf16.msra.mxu0 %v3486
        %5384 = vmatprep.subr.bf16.mxu0 %v3491
        %5385 = vmatpush1.bf16.msra.mxu0 %v3490
        %5386 = vmatprep.subr.bf16.mxu0 %v3495
        %5387 = vmatpush1.bf16.msra.mxu0 %v3494
        %5388 = vmatprep.subr.bf16.mxu0 %v3499
        %5389 = vmatpush1.bf16.msra.mxu0 %v3498
        %5390 = vmatprep.subr.bf16.mxu0 %v3503
        %5391 = vmatpush1.bf16.msra.mxu0 %v3502
        %5392 = vmatprep.subr.bf16.mxu0 %v3507
        %5393 = vmatpush1.bf16.msra.mxu0 %v3506
        %5394 = vmatprep.subr.bf16.mxu0 %v3511
        %5395 = vmatpush1.bf16.msra.mxu0 %v3510
        %5396 = vmatprep.subr.bf16.mxu0 %v3515
        %5397 = vmatpush1.bf16.msra.mxu0 %v3514
        %5398 = vmatprep.subr.bf16.mxu0 %v3519
        %5399 = vmatpush1.bf16.msra.mxu0 %v3518
        %5400 = vmatprep.subr.bf16.mxu0 %v3523
        %5401 = vmatpush1.bf16.msra.mxu0 %v3522
        %5402 = vmatprep.subr.bf16.mxu0 %v3527
        %5403 = vmatpush1.bf16.msra.mxu0 %v3526
        %5404 = vmatprep.mubr.bf16.mxu0 %v5330
        %5405 = vmatmul.mubr.bf16.gmra.mrb[0].mxu0 %v5329
        %v5406 = vpop.f32.mrb[0].mxu0
        %v5407 = vadd.f32 %v5366, %v5406
        %v5408 = vpop.f32.mrb[0].mxu0
        %v5409 = vadd.f32 %v5368, %v5408
        %v5410 = vpop.f32.mrb[0].mxu0
        %v5411 = vpop.f32.mrb[0].mxu0
        %5412 = vdwg.mxu0
        %5413 = vmatprep.subr.bf16.mxu0 %v3405
        %5414 = vmatpush1.bf16.msra.mxu0 %v3404
        %5415 = vmatprep.subr.bf16.mxu0 %v3409
        %5416 = vmatpush1.bf16.msra.mxu0 %v3408
        %5417 = vmatprep.subr.bf16.mxu0 %v3413
        %5418 = vmatpush1.bf16.msra.mxu0 %v3412
        %5419 = vmatprep.subr.bf16.mxu0 %v3417
        %5420 = vmatpush1.bf16.msra.mxu0 %v3416
        %5421 = vmatprep.subr.bf16.mxu0 %v3421
        %5422 = vmatpush1.bf16.msra.mxu0 %v3420
        %5423 = vmatprep.subr.bf16.mxu0 %v3425
        %5424 = vmatpush1.bf16.msra.mxu0 %v3424
        %5425 = vmatprep.subr.bf16.mxu0 %v3429
        %5426 = vmatpush1.bf16.msra.mxu0 %v3428
        %5427 = vmatprep.subr.bf16.mxu0 %v3433
        %5428 = vmatpush1.bf16.msra.mxu0 %v3432
        %5429 = vmatprep.subr.bf16.mxu0 %v3437
        %5430 = vmatpush1.bf16.msra.mxu0 %v3436
        %5431 = vmatprep.subr.bf16.mxu0 %v3441
        %5432 = vmatpush1.bf16.msra.mxu0 %v3440
        %5433 = vmatprep.subr.bf16.mxu0 %v3445
        %5434 = vmatpush1.bf16.msra.mxu0 %v3444
        %5435 = vmatprep.subr.bf16.mxu0 %v3449
        %5436 = vmatpush1.bf16.msra.mxu0 %v3448
        %5437 = vmatprep.subr.bf16.mxu0 %v3453
        %5438 = vmatpush1.bf16.msra.mxu0 %v3452
        %5439 = vmatprep.subr.bf16.mxu0 %v3457
        %5440 = vmatpush1.bf16.msra.mxu0 %v3456
        %5441 = vmatprep.subr.bf16.mxu0 %v3461
        %5442 = vmatpush1.bf16.msra.mxu0 %v3460
        %5443 = vmatprep.subr.bf16.mxu0 %v3465
        %5444 = vmatpush1.bf16.msra.mxu0 %v3464
        %5445 = vmatprep.mubr.bf16.mxu0 %v5328
        %5446 = vmatmul.mubr.bf16.gmra.mrb[0].mxu0 %v5327
        %v5447 = vpop.f32.mrb[0].mxu0
        %v5448 = vadd.f32 %v3009, %v5447
        %v5449 = vpop.f32.mrb[0].mxu0
        %v5450 = vadd.f32 %v3013, %v5449
        %v5451 = vpop.f32.mrb[0].mxu0
        %v5452 = vpop.f32.mrb[0].mxu0
        %5453 = vdwg.mxu0
        %5454 = vmatprep.subr.bf16.mxu0 %v3469
        %5455 = vmatpush1.bf16.msra.mxu0 %v3468
        %5456 = vmatprep.subr.bf16.mxu0 %v3473
        %5457 = vmatpush1.bf16.msra.mxu0 %v3472
        %5458 = vmatprep.subr.bf16.mxu0 %v3477
        %5459 = vmatpush1.bf16.msra.mxu0 %v3476
        %5460 = vmatprep.subr.bf16.mxu0 %v3481
        %5461 = vmatpush1.bf16.msra.mxu0 %v3480
        %5462 = vmatprep.subr.bf16.mxu0 %v3485
        %5463 = vmatpush1.bf16.msra.mxu0 %v3484
        %5464 = vmatprep.subr.bf16.mxu0 %v3489
        %5465 = vmatpush1.bf16.msra.mxu0 %v3488
        %5466 = vmatprep.subr.bf16.mxu0 %v3493
        %5467 = vmatpush1.bf16.msra.mxu0 %v3492
        %5468 = vmatprep.subr.bf16.mxu0 %v3497
        %5469 = vmatpush1.bf16.msra.mxu0 %v3496
        %5470 = vmatprep.subr.bf16.mxu0 %v3501
        %5471 = vmatpush1.bf16.msra.mxu0 %v3500
        %5472 = vmatprep.subr.bf16.mxu0 %v3505
        %5473 = vmatpush1.bf16.msra.mxu0 %v3504
        %5474 = vmatprep.subr.bf16.mxu0 %v3509
        %5475 = vmatpush1.bf16.msra.mxu0 %v3508
        %5476 = vmatprep.subr.bf16.mxu0 %v3513
        %5477 = vmatpush1.bf16.msra.mxu0 %v3512
        %5478 = vmatprep.subr.bf16.mxu0 %v3517
        %5479 = vmatpush1.bf16.msra.mxu0 %v3516
        %5480 = vmatprep.subr.bf16.mxu0 %v3521
        %5481 = vmatpush1.bf16.msra.mxu0 %v3520
        %5482 = vmatprep.subr.bf16.mxu0 %v3525
        %5483 = vmatpush1.bf16.msra.mxu0 %v3524
        %5484 = vmatprep.subr.bf16.mxu0 %v3529
        %5485 = vmatpush1.bf16.msra.mxu0 %v3528
        %5486 = vmatprep.mubr.bf16.mxu0 %v5330
        %5487 = vmatmul.mubr.bf16.gmra.mrb[0].mxu0 %v5329
        %v5488 = vpop.f32.mrb[0].mxu0
        %v5489 = vadd.f32 %v5448, %v5488
        %v5490 = vpop.f32.mrb[0].mxu0
        %v5491 = vadd.f32 %v5450, %v5490
        %v5492 = vpop.f32.mrb[0].mxu0
        %v5493 = vpop.f32.mrb[0].mxu0
        %5494 = vdwg.mxu0
        %v5495 = vxor.u32 %v5407, 2147483648
        %v5496 = vxor.u32 %v5409, 2147483648
        %v5497 = vxor.u32 %v5489, 2147483648
        %v5498 = vxor.u32 %v5491, 2147483648
        %v5499 = vmul.f32 %v5495, 1.442695
        %v5500 = vpow.pop %v5499
        %v5501 = vmul.f32 %v5496, 1.442695
        %v5502 = vpow.pop %v5501
        %v5503 = vmul.f32 %v5497, 1.442695
        %v5504 = vpow.pop %v5503
        %v5505 = vmul.f32 %v5498, 1.442695
        %v5506 = vpow.pop %v5505
        %v5507 = vadd.f32 %v5500, 1.0
        %v5508 = vadd.f32 %v5502, 1.0
        %v5509 = vadd.f32 %v5504, 1.0
        %v5510 = vadd.f32 %v5506, 1.0
        %v5511 = vrcp.pop %v5507
        %v5512 = vmul.f32 1.0, %v5511
        %v5513 = vrcp.pop %v5508
        %v5514 = vmul.f32 1.0, %v5513
        %v5515 = vrcp.pop %v5509
        %v5516 = vmul.f32 1.0, %v5515
        %v5517 = vrcp.pop %v5510
        %v5518 = vmul.f32 1.0, %v5517
        %v5519 = vmul.f32 %v5407, %v5512
        %v5520 = vmul.f32 %v5409, %v5514
        %v5521 = vmul.f32 %v5489, %v5516
        %v5522 = vmul.f32 %v5491, %v5518
        %v5523 = vpack.c.bf16 %v5519, %v5519
        %v5524 = vpack.c.bf16 %v5520, %v5520
        %v5525 = vpack.c.bf16 %v5521, %v5521
        %v5526 = vpack.c.bf16 %v5522, %v5522
        %5527 = vmatprep.subr.bf16.mxu0 %v4123
        %5528 = vmatpush1.bf16.msra.mxu0 %v4122
        %5529 = vmatprep.subr.bf16.mxu0 %v4125
        %5530 = vmatpush1.bf16.msra.mxu0 %v4124
        %5531 = vmatprep.subr.bf16.mxu0 %v4127
        %5532 = vmatpush1.bf16.msra.mxu0 %v4126
        %5533 = vmatprep.subr.bf16.mxu0 %v4129
        %5534 = vmatpush1.bf16.msra.mxu0 %v4128
        %5535 = vmatprep.subr.bf16.mxu0 %v4131
        %5536 = vmatpush1.bf16.msra.mxu0 %v4130
        %5537 = vmatprep.subr.bf16.mxu0 %v4133
        %5538 = vmatpush1.bf16.msra.mxu0 %v4132
        %5539 = vmatprep.subr.bf16.mxu0 %v4135
        %5540 = vmatpush1.bf16.msra.mxu0 %v4134
        %5541 = vmatprep.subr.bf16.mxu0 %v4137
        %5542 = vmatpush1.bf16.msra.mxu0 %v4136
        %5543 = vmatprep.subr.bf16.mxu0 %v4139
        %5544 = vmatpush1.bf16.msra.mxu0 %v4138
        %5545 = vmatprep.subr.bf16.mxu0 %v4141
        %5546 = vmatpush1.bf16.msra.mxu0 %v4140
        %5547 = vmatprep.subr.bf16.mxu0 %v4143
        %5548 = vmatpush1.bf16.msra.mxu0 %v4142
        %5549 = vmatprep.subr.bf16.mxu0 %v4145
        %5550 = vmatpush1.bf16.msra.mxu0 %v4144
        %5551 = vmatprep.subr.bf16.mxu0 %v4147
        %5552 = vmatpush1.bf16.msra.mxu0 %v4146
        %5553 = vmatprep.subr.bf16.mxu0 %v4149
        %5554 = vmatpush1.bf16.msra.mxu0 %v4148
        %5555 = vmatprep.subr.bf16.mxu0 %v4151
        %5556 = vmatpush1.bf16.msra.mxu0 %v4150
        %5557 = vmatprep.subr.bf16.mxu0 %v4153
        %5558 = vmatpush1.bf16.msra.mxu0 %v4152
        %5559 = vmatprep.mubr.bf16.mxu0 %v5524
        %5560 = vmatmul.mubr.bf16.gmra.mrb[0].mxu0 %v5523
        %v5561 = vpop.f32.mrb[0].mxu0
        %v5562 = vadd.f32 %v3923, %v5561
        %v5563 = vpop.f32.mrb[0].mxu0
        %v5564 = vadd.f32 %v3927, %v5563
        %v5565 = vpop.f32.mrb[0].mxu0
        %v5566 = vpop.f32.mrb[0].mxu0
        %5567 = vdwg.mxu0
        %5568 = vmatprep.subr.bf16.mxu0 %v4155
        %5569 = vmatpush1.bf16.msra.mxu0 %v4154
        %5570 = vmatprep.subr.bf16.mxu0 %v4157
        %5571 = vmatpush1.bf16.msra.mxu0 %v4156
        %5572 = vmatprep.subr.bf16.mxu0 %v4159
        %5573 = vmatpush1.bf16.msra.mxu0 %v4158
        %5574 = vmatprep.subr.bf16.mxu0 %v4161
        %5575 = vmatpush1.bf16.msra.mxu0 %v4160
        %5576 = vmatprep.subr.bf16.mxu0 %v4163
        %5577 = vmatpush1.bf16.msra.mxu0 %v4162
        %5578 = vmatprep.subr.bf16.mxu0 %v4165
        %5579 = vmatpush1.bf16.msra.mxu0 %v4164
        %5580 = vmatprep.subr.bf16.mxu0 %v4167
        %5581 = vmatpush1.bf16.msra.mxu0 %v4166
        %5582 = vmatprep.subr.bf16.mxu0 %v4169
        %5583 = vmatpush1.bf16.msra.mxu0 %v4168
        %5584 = vmatprep.subr.bf16.mxu0 %v4171
        %5585 = vmatpush1.bf16.msra.mxu0 %v4170
        %5586 = vmatprep.subr.bf16.mxu0 %v4173
        %5587 = vmatpush1.bf16.msra.mxu0 %v4172
        %5588 = vmatprep.subr.bf16.mxu0 %v4175
        %5589 = vmatpush1.bf16.msra.mxu0 %v4174
        %5590 = vmatprep.subr.bf16.mxu0 %v4177
        %5591 = vmatpush1.bf16.msra.mxu0 %v4176
        %5592 = vmatprep.subr.bf16.mxu0 %v4179
        %5593 = vmatpush1.bf16.msra.mxu0 %v4178
        %5594 = vmatprep.subr.bf16.mxu0 %v4181
        %5595 = vmatpush1.bf16.msra.mxu0 %v4180
        %5596 = vmatprep.subr.bf16.mxu0 %v4183
        %5597 = vmatpush1.bf16.msra.mxu0 %v4182
        %5598 = vmatprep.subr.bf16.mxu0 %v4185
        %5599 = vmatpush1.bf16.msra.mxu0 %v4184
        %5600 = vmatprep.mubr.bf16.mxu0 %v5526
        %5601 = vmatmul.mubr.bf16.gmra.mrb[0].mxu0 %v5525
        %v5602 = vpop.f32.mrb[0].mxu0
        %v5603 = vadd.f32 %v5562, %v5602
        %v5604 = vpop.f32.mrb[0].mxu0
        %v5605 = vadd.f32 %v5564, %v5604
        %v5606 = vpop.f32.mrb[0].mxu0
        %v5607 = vpop.f32.mrb[0].mxu0
        %5608 = vdwg.mxu0
        %v5609 = vxor.u32 %v5603, 2147483648
        %v5610 = vxor.u32 %v5605, 2147483648
        %v5611 = vmul.f32 %v5609, 1.442695
        %v5612 = vpow.pop %v5611
        %v5613 = vmul.f32 %v5610, 1.442695
        %v5614 = vpow.pop %v5613
        %v5615 = vadd.f32 %v5612, 1.0
        %v5616 = vadd.f32 %v5614, 1.0
        %v5617 = vrcp.pop %v5615
        %v5618 = vmul.f32 1.0, %v5617
        %v5619 = vrcp.pop %v5616
        %v5620 = vmul.f32 1.0, %v5619
        %v5621 = vmul.f32 %v5603, %v5618
        %v5622 = vmul.f32 %v5605, %v5620
        %v5623 = vmul.f32 %v5621, %v4350
        %v5624 = vmul.f32 %v5622, %v4354
        %v5625 = vadd.f32 %v5623, %v5624
        %5626 = vadd.xlane.f32.xlu0 %v5625
        %v5627 = vpop.xlane.xlu0 %5626
        %v5628 = vadd.f32 %v5627, %v4366
        %v5629 = vlaneseq
        %v5630 = vshrl.u32 %v5629, 7
        %v5631 = vsub.s32 3, %v5630
        %v5632 = vrot.slane %v614, %v5631
        %v5633 = vlaneseq
        %v5634 = vshrl.u32 %v5633, 7
        %v5635 = vsub.s32 7, %v5634
        %v5636 = vrot.slane %v614, %v5635
        %v5637 = vlaneseq
        %v5638 = vshrl.u32 %v5637, 7
        %v5639 = vsub.s32 3, %v5638
        %v5640 = vrot.slane %v615, %v5639
        %v5641 = vlaneseq
        %v5642 = vshrl.u32 %v5641, 7
        %v5643 = vsub.s32 7, %v5642
        %v5644 = vrot.slane %v615, %v5643
        %v5649 = vlaneseq
        %v5650 = vshrl.u32 %v5649, 7
        %v5651 = vsub.s32 3, %v5650
        %v5652 = vrot.slane %v5632, %v5651
        %v5653 = vlaneseq
        %v5654 = vshrl.u32 %v5653, 7
        %v5655 = vsub.s32 3, %v5654
        %v5656 = vrot.slane %v5636, %v5655
        %v5657 = vlaneseq
        %v5658 = vshrl.u32 %v5657, 7
        %v5659 = vsub.s32 3, %v5658
        %v5660 = vrot.slane %v5640, %v5659
        %v5661 = vlaneseq
        %v5662 = vshrl.u32 %v5661, 7
        %v5663 = vsub.s32 3, %v5662
        %v5664 = vrot.slane %v5644, %v5663
        %v5665 = vsub.f32 %v610, %v5652
        %v5666 = vsub.f32 %v611, %v5656
        %v5667 = vsub.f32 %v612, %v5660
        %v5668 = vsub.f32 %v613, %v5664
        %v5669 = vmul.f32 %v5665, %v5665
        %v5670 = vmul.f32 %v5666, %v5666
        %v5671 = vmul.f32 %v5667, %v5667
        %v5672 = vmul.f32 %v5668, %v5668
        %v5673 = vadd.f32 %v5669, %v5670
        %v5674 = vadd.f32 %v5673, %v5671
        %v5675 = vadd.f32 %v5674, %v5672
        %5676 = vadd.xlane.f32.xlu0 %v5675
        %v5677 = vpop.xlane.xlu0 %5676
        %v5678 = vrsqrt.pop %v5677
        %v5679 = vmul.f32 %v5677, %v5678
        %vm5680 = vcmp.eq.f32.partialorder %v5677, inf
        %v5681 = vsel %vm5680, %v5677, %v5679
        %vm5682 = vcmp.eq.f32.partialorder %v5677, 0.0
        %v5683 = vand.u32 %v5677, 2147483648
        %v5684 = vsel %vm5682, %v5683, %v5681
        %v5685 = vmul.f32 %v5684, 0.1
        %v5686 = vadd.f32 %v5628, %v5685
        %vm5687 = vcmp.eq.s32.totalorder %v2795, 3
        %5689 = vset.pattern.permute.xlu0 0
        %5690 = vperm.xlu0 %5689, %v5686
        %v5691 = vpop.permute.xlu0 %5690
        %v5693 = vsel %vm5687, %v5691, 0.0
        %v5694 = vadd.f32 %v5274, %v5693
        %vm5695 = vcmask 31744
        %5696 = vst.msk [vmem:[%s608] sm:$0xff] %vm5695, %v5694
        %p5697 = scmp.lt.s32.totalorder %s38, 1
        %s5698 = scalar_select %p5697, %s38, 1
        %p5699 = scmp.lt.s32.totalorder %s39, 2
        %s5700 = scalar_select %p5699, %s39, 2
        %s5701 = smul.addr %s5698, 3
        %s5702 = sadd.s32 %s5700, %s5701
        %s5703 = smul.addr %s5702, 8
        %s5704 = scalar_lea.vmem %s13, %s5703
        // Predicated region
        $region101: #{tpu_custom_call.1} parent=71 // pred_check
          %p5705 = pneg %p356
        $region102: #{tpu_custom_call.1} parent=71 // pred_check_branch
          %5707 = sbr.rel (%p5705) target = $region104
        $region103: #{tpu_custom_call.1} parent=71 // pred_region
          _
        $region104: #{tpu_custom_call.1} parent=71 // pred_fallthru
          _
      $region72: #{tpu_custom_call.1} parent=5 // pred_fallthru
        _
      %p5708 = scmp.le.s32.totalorder 2, %s29
      // Predicated region
      $region105: #{tpu_custom_call.1} parent=5 // pred_check
        %p5709 = pneg %p5708
      $region106: #{tpu_custom_call.1} parent=5 // pred_check_branch
        %5711 = sbr.rel (%p5709) target = $region108
      $region107: #{tpu_custom_call.1} parent=5 // pred_region
        %s5712 = ssub.s32 %s29, 2
        // Predicated region
        $region109: #{tpu_custom_call.1} parent=107 // pred_check
          %p5713 = pneg %p362
        $region110: #{tpu_custom_call.1} parent=107 // pred_check_branch
          %5715 = sbr.rel (%p5713) target = $region112
        $region111: #{tpu_custom_call.1} parent=107 // pred_region
          %p5716 = scmp.lt.s32.totalorder %s40, 1
          %s5717 = scalar_select %p5716, %s40, 1
          %p5718 = scmp.lt.s32.totalorder %s41, 2
          %s5719 = scalar_select %p5718, %s41, 2
          %s5720 = smul.addr %s5717, 3
          %s5721 = sadd.s32 %s5719, %s5720
          %s5722 = smul.addr %s5721, 8
          %s5723 = scalar_lea.vmem %s13, %s5722
        $region112: #{tpu_custom_call.1} parent=107 // pred_fallthru
          _
      $region108: #{tpu_custom_call.1} parent=5 // pred_fallthru
        _
    $region6: #{tpu_custom_call.1} parent=1 // loop_footer
      %s33 = sadd.s32 1, %s29
    $region7: #{tpu_custom_call.1} parent=1 // loop_footer_branch
      %28 = sbr.rel target = $region3
    $region8: #{tpu_custom_call.1} parent=1 // loop_exit
      _
    %5724 = vsyncpa [#allocation4], 1
    %s5725 = scalar_lea.sflag [#allocation4], 1
    %5726 = vsyncpa %s5725, 1
    %5727 = vsyncpa [#allocation6], 1
    %s5728 = scalar_lea.sflag [#allocation6], 1
    %5729 = vsyncpa %s5728, 1
    %5730 = vsyncpa [#allocation9], 1
    %5731 = vsyncpa [#allocation12], 1

</llo_original>
